<compile_context>
chip_gen: v6e
topology: v6e:2x2x1
jax: 0.10.0
libtpu: 0.0.40
codegen_flags: <defaults>
</compile_context>

<pallas_src>
import jax
import jax.numpy as jnp
from jax import lax
from jax.experimental import pallas as pl
from jax.experimental.pallas import tpu as pltpu

EPS = 1e-5  # PyTorch BatchNorm2d default eps


def _spec(shape):
    nd = len(shape)
    return pl.BlockSpec(shape, lambda i, _nd=nd: (0,) * _nd)


# ------------------- in-kernel helpers (traced, iota-built) ---------------- #

def _group_mats(c, w):
    """G (c*w, c): G[i, ch] = 1 iff i belongs to channel ch; plus transpose."""
    ncols = c * w
    ri = lax.broadcasted_iota(jnp.int32, (ncols, c), 0)
    ci = lax.broadcasted_iota(jnp.int32, (ncols, c), 1)
    g = ((ri >= ci * w) & (ri < (ci + 1) * w)).astype(jnp.float32)
    rj = lax.broadcasted_iota(jnp.int32, (c, ncols), 0)
    cj = lax.broadcasted_iota(jnp.int32, (c, ncols), 1)
    gt = ((cj >= rj * w) & (cj < (rj + 1) * w)).astype(jnp.float32)
    return g, gt


def _pool_select_mats(n_in):
    """0/1 matrices (n_in, n_in//2) selecting even / odd lane positions."""
    n_out = n_in // 2
    i = lax.broadcasted_iota(jnp.int32, (n_in, n_out), 0)
    j = lax.broadcasted_iota(jnp.int32, (n_in, n_out), 1)
    se = (i == 2 * j).astype(jnp.float32)
    so = (i == 2 * j + 1).astype(jnp.float32)
    return se, so


def _bn_relu(y, gamma, beta, c, w, count):
    """Training-mode BatchNorm (biased batch stats, one pass) + ReLU.

    y: (rows, c*w) with lanes ordered (channel, width); gamma/beta: (1, c).
    """
    f32 = jnp.float32
    g, gt = _group_mats(c, w)
    s = jnp.sum(y, axis=0, keepdims=True)                 # (1, c*w)
    q = jnp.sum(y * y, axis=0, keepdims=True)             # (1, c*w)
    inv = 1.0 / count
    mean = jnp.dot(s, g, preferred_element_type=f32) * inv            # (1, c)
    var = jnp.dot(q, g, preferred_element_type=f32) * inv - mean * mean
    scale = gamma * lax.rsqrt(var + EPS)                  # (1, c)
    shift = beta - mean * scale
    scale_col = jnp.dot(scale, gt, preferred_element_type=f32)        # (1, c*w)
    shift_col = jnp.dot(shift, gt, preferred_element_type=f32)
    return jnp.maximum(y * scale_col + shift_col, 0.0)


def _pool_w(y, n_in):
    """Max over adjacent (even, odd) lane pairs via two plain 2-D matmuls."""
    f32 = jnp.float32
    se, so = _pool_select_mats(n_in)
    return jnp.maximum(jnp.dot(y, se, preferred_element_type=f32),
                       jnp.dot(y, so, preferred_element_type=f32))


# ------------------------------ fused kernel ------------------------------ #

def lenet5_kernel(x_ref, wc1_ref, bc1_ref, g1_ref, be1_ref,
                  wc2_ref, bc2_ref, g2_ref, be2_ref,
                  wf1_ref, bf1_ref, wf2_ref, bf2_ref, wf3_ref, bf3_ref,
                  out1_ref, out2_ref, out3_ref):
    f32 = jnp.float32
    n = x_ref.shape[0]
    x = x_ref[...]                                        # (N, 32, 32)

    # ---- conv1 (5x5, 1->6): 5 banded MXU matmuls; rows=(n,oh), lanes=c*28+ow
    acc1 = jnp.zeros((n * 28, 6 * 28), f32)
    for kh in range(5):
        xs = x[:, kh:kh + 28, :].reshape(n * 28, 32)
        acc1 = acc1 + jnp.dot(xs, wc1_ref[kh], preferred_element_type=f32)
    y1 = _bn_relu(acc1 + bc1_ref[...], g1_ref[...], be1_ref[...],
                  6, 28, float(n * 28 * 28))

    # 2x2/2 max pool: H via leading-dim pair split, W via even/odd selection
    y1 = jnp.max(y1.reshape(n, 14, 2, 6 * 28), axis=2).reshape(n * 14, 6 * 28)
    a1 = _pool_w(y1, 6 * 28)                              # (N*14, 84), c*14+ow
    out1_ref[...] = a1.reshape(n, 14, 84)

    # ---- conv2 (5x5, 6->16): 5 banded MXU matmuls; lanes=c*10+ow
    a1_3d = a1.reshape(n, 14, 84)
    acc2 = jnp.zeros((n * 10, 16 * 10), f32)
    for kh in range(5):
        s = a1_3d[:, kh:kh + 10, :].reshape(n * 10, 84)
        acc2 = acc2 + jnp.dot(s, wc2_ref[kh], preferred_element_type=f32)
    y2 = _bn_relu(acc2 + bc2_ref[...], g2_ref[...], be2_ref[...],
                  16, 10, float(n * 10 * 10))

    y2 = jnp.max(y2.reshape(n, 5, 2, 16 * 10), axis=2).reshape(n * 5, 16 * 10)
    a2 = _pool_w(y2, 16 * 10)                             # (N*5, 80), c*5+ow
    out2_ref[...] = a2.reshape(n, 5, 80)

    # ---- fully connected head: 400 -> 120 -> 84 -> nc
    # fc1 weight was pre-permuted to (5, 80, 120) = (oh, c*5+ow, out), so the
    # CHW flatten is realized as 5 consolidated (N,80)x(80,120) matmuls.
    a2_3d = a2.reshape(n, 5, 80)
    h1 = jnp.zeros((n, 120), f32)
    for oh in range(5):
        h1 = h1 + jnp.dot(a2_3d[:, oh, :], wf1_ref[oh],
                          preferred_element_type=f32)
    h1 = jnp.maximum(h1 + bf1_ref[...], 0.0)
    h2 = jnp.maximum(jnp.dot(h1, wf2_ref[...], preferred_element_type=f32)
                     + bf2_ref[...], 0.0)
    out3_ref[...] = (jnp.dot(h2, wf3_ref[...], preferred_element_type=f32)
                     + bf3_ref[...])


# ------------------------------ host wrapper ------------------------------ #

def _banded_conv_weight(w, w_in, w_out):
    """(Cout, Cin, 5, 5) conv weight -> (5, Cin*w_in, Cout*w_out) banded form.

    out[kh, ci*w_in + iw, co*w_out + ow] = w[co, ci, kh, iw-ow] (0 if not a tap),
    so `rows(x) @ out[kh]` performs the W-axis convolution for row offset kh.
    """
    cout, cin, kh, kw = w.shape
    diff = jnp.arange(w_in)[:, None] - jnp.arange(w_out)[None, :]
    valid = (diff >= 0) & (diff < kw)
    idx = jnp.clip(diff, 0, kw - 1)
    g = jnp.take(w, idx, axis=3)                          # (co, ci, kh, iw, ow)
    g = jnp.where(valid[None, None, None, :, :], g, 0.0)
    g = jnp.transpose(g, (2, 1, 3, 0, 4))                 # (kh, ci, iw, co, ow)
    return g.reshape(kh, cin * w_in, cout * w_out).astype(jnp.float32)


def lenet5_forward(x, params):
    """Equivalent of LeNet5.forward(x, module_out=True) -> [out1, out2, out3]."""
    n = x.shape[0]
    nc = params['w_f3'].shape[1]
    f32 = jnp.float32

    x3 = x.reshape(n, 32, 32).astype(f32)                 # drop the Cin=1 axis

    # One-time parameter layout prep (tiny, outside the kernel).
    wc1 = _banded_conv_weight(params['w_c1'], 32, 28)     # (5, 32, 168)
    wc2 = _banded_conv_weight(params['w_c2'], 14, 10)     # (5, 84, 160)
    wf1p = (params['w_f1'].reshape(16, 5, 5, 120)
            .transpose(1, 0, 2, 3).reshape(5, 80, 120))   # (oh, c*5+ow, out)
    bc1 = jnp.repeat(params['b_c1'], 28)[None, :]         # (1, 168)
    bc2 = jnp.repeat(params['b_c2'], 10)[None, :]         # (1, 160)

    args = (
        x3,
        wc1, bc1, params['g_c1'].reshape(1, 6), params['be_c1'].reshape(1, 6),
        wc2, bc2, params['g_c2'].reshape(1, 16), params['be_c2'].reshape(1, 16),
        wf1p, params['b_f1'].reshape(1, 120),
        params['w_f2'], params['b_f2'].reshape(1, 84),
        params['w_f3'], params['b_f3'].reshape(1, nc),
    )

    out_shapes = (
        jax.ShapeDtypeStruct((n, 14, 84), f32),           # pooled conv1 slab
        jax.ShapeDtypeStruct((n, 5, 80), f32),            # pooled conv2 slab
        jax.ShapeDtypeStruct((n, nc), f32),               # logits
    )

    o1, o2, o3 = pl.pallas_call(
        lenet5_kernel,
        out_shape=out_shapes,
        grid=(1,),
        in_specs=[_spec(a.shape) for a in args],
        out_specs=[_spec(s.shape) for s in out_shapes],
        compiler_params=pltpu.CompilerParams(
            dimension_semantics=("arbitrary",)),
    )(*args)

    # NCHW copies once, only for PyTorch API compatibility.
    out1 = o1.reshape(n, 14, 6, 14).transpose(0, 2, 1, 3)   # (N, 6, 14, 14)
    out2 = o2.reshape(n, 5, 16, 5).transpose(0, 2, 1, 3)    # (N, 16, 5, 5)
    return [out1, out2, o3]


# ------------------------- pure-JAX reference check ------------------------ #

def _reference_forward(x, params):
    prec = lax.Precision.HIGHEST

    def conv_bn_relu_pool(inp, w, b, g, be):
        y = lax.conv_general_dilated(
            inp, w, (1, 1), 'VALID',
            dimension_numbers=('NCHW', 'OIHW', 'NCHW'), precision=prec)
        y = y + b.reshape(1, -1, 1, 1)
        mean = jnp.mean(y, axis=(0, 2, 3), keepdims=True)
        var = jnp.mean((y - mean) ** 2, axis=(0, 2, 3), keepdims=True)
        y = (y - mean) * lax.rsqrt(var + EPS)
        y = jnp.maximum(y * g.reshape(1, -1, 1, 1) + be.reshape(1, -1, 1, 1), 0.0)
        nb, cb, hb, wb = y.shape
        return y.reshape(nb, cb, hb // 2, 2, wb // 2, 2).max(axis=(3, 5))

    o1 = conv_bn_relu_pool(x, params['w_c1'], params['b_c1'],
                           params['g_c1'], params['be_c1'])
    o2 = conv_bn_relu_pool(o1, params['w_c2'], params['b_c2'],
                           params['g_c2'], params['be_c2'])
    f = o2.reshape(o2.shape[0], -1)
    h1 = jnp.maximum(jnp.dot(f, params['w_f1'], precision=prec)
                     + params['b_f1'], 0.0)
    h2 = jnp.maximum(jnp.dot(h1, params['w_f2'], precision=prec)
                     + params['b_f2'], 0.0)
    o3 = jnp.dot(h2, params['w_f3'], precision=prec) + params['b_f3']
    return o1, o2, o3


def init_params(key, num_classes):
    ks = jax.random.split(key, 8)
    f32 = jnp.float32
    return {
        'w_c1': 0.1 * jax.random.normal(ks[0], (6, 1, 5, 5), f32),
        'b_c1': 0.1 * jax.random.normal(ks[1], (6,), f32),
        'g_c1': jnp.ones((6,), f32), 'be_c1': jnp.zeros((6,), f32),
        'w_c2': 0.1 * jax.random.normal(ks[2], (16, 6, 5, 5), f32),
        'b_c2': 0.1 * jax.random.normal(ks[3], (16,), f32),
        'g_c2': jnp.ones((16,), f32), 'be_c2': jnp.zeros((16,), f32),
        'w_f1': 0.05 * jax.random.normal(ks[4], (400, 120), f32),
        'b_f1': jnp.zeros((1, 120), f32),
        'w_f2': 0.05 * jax.random.normal(ks[5], (120, 84), f32),
        'b_f2': jnp.zeros((1, 84), f32),
        'w_f3': 0.05 * jax.random.normal(ks[6], (84, num_classes), f32),
        'b_f3': jnp.zeros((1, num_classes), f32),
    }


if __name__ == "__main__":
    num_classes = 10
    key = jax.random.PRNGKey(0)
    k_x, k_p = jax.random.split(key)
    # LeNet5 requires 32x32 single-channel input so that the flatten is 400.
    x = jax.random.normal(k_x, (2, 1, 32, 32), jnp.float32)
    params = init_params(k_p, num_classes)

    out1, out2, out3 = jax.jit(lenet5_forward)(x, params)
    jax.block_until_ready((out1, out2, out3))

    assert out1.shape == (2, 6, 14, 14), out1.shape
    assert out2.shape == (2, 16, 5, 5), out2.shape
    assert out3.shape == (2, num_classes), out3.shape

    r1, r2, r3 = jax.jit(_reference_forward)(x, params)
    jax.block_until_ready((r1, r2, r3))
    assert bool(jnp.allclose(out1, r1, atol=1e-3, rtol=1e-3))
    assert bool(jnp.allclose(out2, r2, atol=1e-3, rtol=1e-3))
    assert bool(jnp.allclose(out3, r3, atol=1e-3, rtol=1e-3))
    assert all(bool(jnp.isfinite(o).all()) for o in (out1, out2, out3))
    print("KERNEL_OK")
</pallas_src>

<mosaic_0001>
module attributes {stable_mosaic.version = 11 : i64} {
  func.func @lenet5_kernel(%arg0: i32, %arg1: memref<2x32x32xf32, #tpu.memory_space<vmem>>, %arg2: memref<5x32x168xf32, #tpu.memory_space<vmem>>, %arg3: memref<1x168xf32, #tpu.memory_space<vmem>>, %arg4: memref<1x6xf32, #tpu.memory_space<vmem>>, %arg5: memref<1x6xf32, #tpu.memory_space<vmem>>, %arg6: memref<5x84x160xf32, #tpu.memory_space<vmem>>, %arg7: memref<1x160xf32, #tpu.memory_space<vmem>>, %arg8: memref<1x16xf32, #tpu.memory_space<vmem>>, %arg9: memref<1x16xf32, #tpu.memory_space<vmem>>, %arg10: memref<5x80x120xf32, #tpu.memory_space<vmem>>, %arg11: memref<1x120xf32, #tpu.memory_space<vmem>>, %arg12: memref<120x84xf32, #tpu.memory_space<vmem>>, %arg13: memref<1x84xf32, #tpu.memory_space<vmem>>, %arg14: memref<84x10xf32, #tpu.memory_space<vmem>>, %arg15: memref<1x10xf32, #tpu.memory_space<vmem>>, %arg16: memref<2x14x84xf32, #tpu.memory_space<vmem>>, %arg17: memref<2x5x80xf32, #tpu.memory_space<vmem>>, %arg18: memref<2x10xf32, #tpu.memory_space<vmem>>) attributes {dimension_semantics = [#tpu.dimension_semantics<arbitrary>], iteration_bounds = array<i64: 1>, scalar_prefetch = 0 : i64, scratch_operands = 0 : i64, tpu.core_type = #tpu.core_type<tc>, window_params = [{pipeline_mode = #tpu.pipeline_mode<synchronous>, transform_indices = @transform_0, window_bounds = array<i64: 2, 32, 32>}, {pipeline_mode = #tpu.pipeline_mode<synchronous>, transform_indices = @transform_1, window_bounds = array<i64: 5, 32, 168>}, {pipeline_mode = #tpu.pipeline_mode<synchronous>, transform_indices = @transform_2, window_bounds = array<i64: 1, 168>}, {pipeline_mode = #tpu.pipeline_mode<synchronous>, transform_indices = @transform_3, window_bounds = array<i64: 1, 6>}, {pipeline_mode = #tpu.pipeline_mode<synchronous>, transform_indices = @transform_4, window_bounds = array<i64: 1, 6>}, {pipeline_mode = #tpu.pipeline_mode<synchronous>, transform_indices = @transform_5, window_bounds = array<i64: 5, 84, 160>}, {pipeline_mode = #tpu.pipeline_mode<synchronous>, transform_indices = @transform_6, window_bounds = array<i64: 1, 160>}, {pipeline_mode = #tpu.pipeline_mode<synchronous>, transform_indices = @transform_7, window_bounds = array<i64: 1, 16>}, {pipeline_mode = #tpu.pipeline_mode<synchronous>, transform_indices = @transform_8, window_bounds = array<i64: 1, 16>}, {pipeline_mode = #tpu.pipeline_mode<synchronous>, transform_indices = @transform_9, window_bounds = array<i64: 5, 80, 120>}, {pipeline_mode = #tpu.pipeline_mode<synchronous>, transform_indices = @transform_10, window_bounds = array<i64: 1, 120>}, {pipeline_mode = #tpu.pipeline_mode<synchronous>, transform_indices = @transform_11, window_bounds = array<i64: 120, 84>}, {pipeline_mode = #tpu.pipeline_mode<synchronous>, transform_indices = @transform_12, window_bounds = array<i64: 1, 84>}, {pipeline_mode = #tpu.pipeline_mode<synchronous>, transform_indices = @transform_13, window_bounds = array<i64: 84, 10>}, {pipeline_mode = #tpu.pipeline_mode<synchronous>, transform_indices = @transform_14, window_bounds = array<i64: 1, 10>}, {pipeline_mode = #tpu.pipeline_mode<synchronous>, transform_indices = @transform_15, window_bounds = array<i64: 2, 14, 84>}, {pipeline_mode = #tpu.pipeline_mode<synchronous>, transform_indices = @transform_16, window_bounds = array<i64: 2, 5, 80>}, {pipeline_mode = #tpu.pipeline_mode<synchronous>, transform_indices = @transform_17, window_bounds = array<i64: 2, 10>}]} {
    %c0 = arith.constant 0 : index
    %c0_0 = arith.constant 0 : index
    %c0_1 = arith.constant 0 : index
    %0 = vector.load %arg1[%c0, %c0_0, %c0_1] : memref<2x32x32xf32, #tpu.memory_space<vmem>>, vector<2x32x32xf32>
    %cst = arith.constant 0.000000e+00 : f32
    %1 = vector.broadcast %cst : f32 to vector<56x168xf32>
    %2 = vector.extract_strided_slice %0 {offsets = [0, 0, 0], sizes = [2, 28, 32], strides = [1, 1, 1]} : vector<2x32x32xf32> to vector<2x28x32xf32>
    %3 = vector.shape_cast %2 : vector<2x28x32xf32> to vector<56x32xf32>
    %c0_2 = arith.constant 0 : index
    %c0_3 = arith.constant 0 : index
    %c0_4 = arith.constant 0 : index
    %4 = vector.load %arg2[%c0_2, %c0_3, %c0_4] : memref<5x32x168xf32, #tpu.memory_space<vmem>>, vector<1x32x168xf32>
    %5 = vector.shape_cast %4 : vector<1x32x168xf32> to vector<32x168xf32>
    %cst_5 = arith.constant dense<0.000000e+00> : vector<56x168xf32>
    %6 = tpu.matmul %3, %5, %cst_5 {dimension_numbers = #tpu.dot_dimension_numbers<[1], [0], [0], [1], [0, 0, 1, 1], [], []>} : vector<56x32xf32>, vector<32x168xf32>, vector<56x168xf32> -> vector<56x168xf32>
    %7 = arith.addf %1, %6 : vector<56x168xf32>
    %8 = vector.extract_strided_slice %0 {offsets = [0, 1, 0], sizes = [2, 28, 32], strides = [1, 1, 1]} : vector<2x32x32xf32> to vector<2x28x32xf32>
    %9 = vector.shape_cast %8 : vector<2x28x32xf32> to vector<56x32xf32>
    %c1 = arith.constant 1 : index
    %c0_6 = arith.constant 0 : index
    %c0_7 = arith.constant 0 : index
    %10 = vector.load %arg2[%c1, %c0_6, %c0_7] : memref<5x32x168xf32, #tpu.memory_space<vmem>>, vector<1x32x168xf32>
    %11 = vector.shape_cast %10 : vector<1x32x168xf32> to vector<32x168xf32>
    %cst_8 = arith.constant dense<0.000000e+00> : vector<56x168xf32>
    %12 = tpu.matmul %9, %11, %cst_8 {dimension_numbers = #tpu.dot_dimension_numbers<[1], [0], [0], [1], [0, 0, 1, 1], [], []>} : vector<56x32xf32>, vector<32x168xf32>, vector<56x168xf32> -> vector<56x168xf32>
    %13 = arith.addf %7, %12 : vector<56x168xf32>
    %14 = vector.extract_strided_slice %0 {offsets = [0, 2, 0], sizes = [2, 28, 32], strides = [1, 1, 1]} : vector<2x32x32xf32> to vector<2x28x32xf32>
    %15 = vector.shape_cast %14 : vector<2x28x32xf32> to vector<56x32xf32>
    %c2 = arith.constant 2 : index
    %c0_9 = arith.constant 0 : index
    %c0_10 = arith.constant 0 : index
    %16 = vector.load %arg2[%c2, %c0_9, %c0_10] : memref<5x32x168xf32, #tpu.memory_space<vmem>>, vector<1x32x168xf32>
    %17 = vector.shape_cast %16 : vector<1x32x168xf32> to vector<32x168xf32>
    %cst_11 = arith.constant dense<0.000000e+00> : vector<56x168xf32>
    %18 = tpu.matmul %15, %17, %cst_11 {dimension_numbers = #tpu.dot_dimension_numbers<[1], [0], [0], [1], [0, 0, 1, 1], [], []>} : vector<56x32xf32>, vector<32x168xf32>, vector<56x168xf32> -> vector<56x168xf32>
    %19 = arith.addf %13, %18 : vector<56x168xf32>
    %20 = vector.extract_strided_slice %0 {offsets = [0, 3, 0], sizes = [2, 28, 32], strides = [1, 1, 1]} : vector<2x32x32xf32> to vector<2x28x32xf32>
    %21 = vector.shape_cast %20 : vector<2x28x32xf32> to vector<56x32xf32>
    %c3 = arith.constant 3 : index
    %c0_12 = arith.constant 0 : index
    %c0_13 = arith.constant 0 : index
    %22 = vector.load %arg2[%c3, %c0_12, %c0_13] : memref<5x32x168xf32, #tpu.memory_space<vmem>>, vector<1x32x168xf32>
    %23 = vector.shape_cast %22 : vector<1x32x168xf32> to vector<32x168xf32>
    %cst_14 = arith.constant dense<0.000000e+00> : vector<56x168xf32>
    %24 = tpu.matmul %21, %23, %cst_14 {dimension_numbers = #tpu.dot_dimension_numbers<[1], [0], [0], [1], [0, 0, 1, 1], [], []>} : vector<56x32xf32>, vector<32x168xf32>, vector<56x168xf32> -> vector<56x168xf32>
    %25 = arith.addf %19, %24 : vector<56x168xf32>
    %26 = vector.extract_strided_slice %0 {offsets = [0, 4, 0], sizes = [2, 28, 32], strides = [1, 1, 1]} : vector<2x32x32xf32> to vector<2x28x32xf32>
    %27 = vector.shape_cast %26 : vector<2x28x32xf32> to vector<56x32xf32>
    %c4 = arith.constant 4 : index
    %c0_15 = arith.constant 0 : index
    %c0_16 = arith.constant 0 : index
    %28 = vector.load %arg2[%c4, %c0_15, %c0_16] : memref<5x32x168xf32, #tpu.memory_space<vmem>>, vector<1x32x168xf32>
    %29 = vector.shape_cast %28 : vector<1x32x168xf32> to vector<32x168xf32>
    %cst_17 = arith.constant dense<0.000000e+00> : vector<56x168xf32>
    %30 = tpu.matmul %27, %29, %cst_17 {dimension_numbers = #tpu.dot_dimension_numbers<[1], [0], [0], [1], [0, 0, 1, 1], [], []>} : vector<56x32xf32>, vector<32x168xf32>, vector<56x168xf32> -> vector<56x168xf32>
    %31 = arith.addf %25, %30 : vector<56x168xf32>
    %c0_18 = arith.constant 0 : index
    %c0_19 = arith.constant 0 : index
    %32 = vector.load %arg3[%c0_18, %c0_19] : memref<1x168xf32, #tpu.memory_space<vmem>>, vector<1x168xf32>
    %33 = vector.broadcast %32 : vector<1x168xf32> to vector<56x168xf32>
    %34 = arith.addf %31, %33 : vector<56x168xf32>
    %c0_20 = arith.constant 0 : index
    %c0_21 = arith.constant 0 : index
    %35 = vector.load %arg4[%c0_20, %c0_21] : memref<1x6xf32, #tpu.memory_space<vmem>>, vector<1x6xf32>
    %c0_22 = arith.constant 0 : index
    %c0_23 = arith.constant 0 : index
    %36 = vector.load %arg5[%c0_22, %c0_23] : memref<1x6xf32, #tpu.memory_space<vmem>>, vector<1x6xf32>
    %37 = tpu.iota {dimensions = array<i32: 0>} : vector<168x6xi32>
    %38 = tpu.iota {dimensions = array<i32: 1>} : vector<168x6xi32>
    %c28_i32 = arith.constant 28 : i32
    %39 = vector.broadcast %c28_i32 : i32 to vector<168x6xi32>
    %40 = arith.muli %38, %39 : vector<168x6xi32>
    %41 = arith.cmpi sge, %37, %40 : vector<168x6xi32>
    %c1_i32 = arith.constant 1 : i32
    %42 = vector.broadcast %c1_i32 : i32 to vector<168x6xi32>
    %43 = arith.addi %38, %42 : vector<168x6xi32>
    %c28_i32_24 = arith.constant 28 : i32
    %44 = vector.broadcast %c28_i32_24 : i32 to vector<168x6xi32>
    %45 = arith.muli %43, %44 : vector<168x6xi32>
    %46 = arith.cmpi slt, %37, %45 : vector<168x6xi32>
    %47 = arith.andi %41, %46 : vector<168x6xi1>
    %48 = arith.extui %47 : vector<168x6xi1> to vector<168x6xi32>
    %49 = arith.sitofp %48 : vector<168x6xi32> to vector<168x6xf32>
    %50 = tpu.iota {dimensions = array<i32: 0>} : vector<6x168xi32>
    %51 = tpu.iota {dimensions = array<i32: 1>} : vector<6x168xi32>
    %c28_i32_25 = arith.constant 28 : i32
    %52 = vector.broadcast %c28_i32_25 : i32 to vector<6x168xi32>
    %53 = arith.muli %50, %52 : vector<6x168xi32>
    %54 = arith.cmpi sge, %51, %53 : vector<6x168xi32>
    %c1_i32_26 = arith.constant 1 : i32
    %55 = vector.broadcast %c1_i32_26 : i32 to vector<6x168xi32>
    %56 = arith.addi %50, %55 : vector<6x168xi32>
    %c28_i32_27 = arith.constant 28 : i32
    %57 = vector.broadcast %c28_i32_27 : i32 to vector<6x168xi32>
    %58 = arith.muli %56, %57 : vector<6x168xi32>
    %59 = arith.cmpi slt, %51, %58 : vector<6x168xi32>
    %60 = arith.andi %54, %59 : vector<6x168xi1>
    %61 = arith.extui %60 : vector<6x168xi1> to vector<6x168xi32>
    %62 = arith.sitofp %61 : vector<6x168xi32> to vector<6x168xf32>
    %cst_28 = arith.constant dense<0.000000e+00> : vector<168xf32>
    %63 = vector.multi_reduction <add>, %34, %cst_28 [0] : vector<56x168xf32> to vector<168xf32>
    %64 = vector.shape_cast %63 : vector<168xf32> to vector<1x168xf32>
    %65 = arith.mulf %34, %34 : vector<56x168xf32>
    %cst_29 = arith.constant dense<0.000000e+00> : vector<168xf32>
    %66 = vector.multi_reduction <add>, %65, %cst_29 [0] : vector<56x168xf32> to vector<168xf32>
    %67 = vector.shape_cast %66 : vector<168xf32> to vector<1x168xf32>
    %cst_30 = arith.constant dense<0.000000e+00> : vector<1x6xf32>
    %68 = tpu.matmul %64, %49, %cst_30 {dimension_numbers = #tpu.dot_dimension_numbers<[1], [0], [0], [1], [0, 0, 1, 1], [], []>} : vector<1x168xf32>, vector<168x6xf32>, vector<1x6xf32> -> vector<1x6xf32>
    %cst_31 = arith.constant 6.37755089E-4 : f32
    %69 = vector.broadcast %cst_31 : f32 to vector<1x6xf32>
    %70 = arith.mulf %68, %69 : vector<1x6xf32>
    %cst_32 = arith.constant dense<0.000000e+00> : vector<1x6xf32>
    %71 = tpu.matmul %67, %49, %cst_32 {dimension_numbers = #tpu.dot_dimension_numbers<[1], [0], [0], [1], [0, 0, 1, 1], [], []>} : vector<1x168xf32>, vector<168x6xf32>, vector<1x6xf32> -> vector<1x6xf32>
    %cst_33 = arith.constant 6.37755089E-4 : f32
    %72 = vector.broadcast %cst_33 : f32 to vector<1x6xf32>
    %73 = arith.mulf %71, %72 : vector<1x6xf32>
    %74 = arith.mulf %70, %70 : vector<1x6xf32>
    %75 = arith.subf %73, %74 : vector<1x6xf32>
    %cst_34 = arith.constant 9.99999974E-6 : f32
    %76 = vector.broadcast %cst_34 : f32 to vector<1x6xf32>
    %77 = arith.addf %75, %76 : vector<1x6xf32>
    %78 = math.rsqrt %77 : vector<1x6xf32>
    %79 = arith.mulf %35, %78 : vector<1x6xf32>
    %80 = arith.mulf %70, %79 : vector<1x6xf32>
    %81 = arith.subf %36, %80 : vector<1x6xf32>
    %cst_35 = arith.constant dense<0.000000e+00> : vector<1x168xf32>
    %82 = tpu.matmul %79, %62, %cst_35 {dimension_numbers = #tpu.dot_dimension_numbers<[1], [0], [0], [1], [0, 0, 1, 1], [], []>} : vector<1x6xf32>, vector<6x168xf32>, vector<1x168xf32> -> vector<1x168xf32>
    %cst_36 = arith.constant dense<0.000000e+00> : vector<1x168xf32>
    %83 = tpu.matmul %81, %62, %cst_36 {dimension_numbers = #tpu.dot_dimension_numbers<[1], [0], [0], [1], [0, 0, 1, 1], [], []>} : vector<1x6xf32>, vector<6x168xf32>, vector<1x168xf32> -> vector<1x168xf32>
    %84 = vector.broadcast %82 : vector<1x168xf32> to vector<56x168xf32>
    %85 = arith.mulf %34, %84 : vector<56x168xf32>
    %86 = vector.broadcast %83 : vector<1x168xf32> to vector<56x168xf32>
    %87 = arith.addf %85, %86 : vector<56x168xf32>
    %cst_37 = arith.constant 0.000000e+00 : f32
    %88 = vector.broadcast %cst_37 : f32 to vector<56x168xf32>
    %89 = arith.maximumf %87, %88 : vector<56x168xf32>
    %90 = vector.shape_cast %89 : vector<56x168xf32> to vector<2x14x2x168xf32>
    %cst_38 = arith.constant dense<0xFF800000> : vector<2x14x168xf32>
    %91 = vector.multi_reduction <maximumf>, %90, %cst_38 [2] : vector<2x14x2x168xf32> to vector<2x14x168xf32>
    %92 = vector.shape_cast %91 : vector<2x14x168xf32> to vector<28x168xf32>
    %93 = tpu.iota {dimensions = array<i32: 0>} : vector<168x84xi32>
    %94 = tpu.iota {dimensions = array<i32: 1>} : vector<168x84xi32>
    %c2_i32 = arith.constant 2 : i32
    %95 = vector.broadcast %c2_i32 : i32 to vector<168x84xi32>
    %96 = arith.muli %95, %94 : vector<168x84xi32>
    %97 = arith.cmpi eq, %93, %96 : vector<168x84xi32>
    %98 = arith.extui %97 : vector<168x84xi1> to vector<168x84xi32>
    %99 = arith.sitofp %98 : vector<168x84xi32> to vector<168x84xf32>
    %c2_i32_39 = arith.constant 2 : i32
    %100 = vector.broadcast %c2_i32_39 : i32 to vector<168x84xi32>
    %101 = arith.muli %100, %94 : vector<168x84xi32>
    %c1_i32_40 = arith.constant 1 : i32
    %102 = vector.broadcast %c1_i32_40 : i32 to vector<168x84xi32>
    %103 = arith.addi %101, %102 : vector<168x84xi32>
    %104 = arith.cmpi eq, %93, %103 : vector<168x84xi32>
    %105 = arith.extui %104 : vector<168x84xi1> to vector<168x84xi32>
    %106 = arith.sitofp %105 : vector<168x84xi32> to vector<168x84xf32>
    %cst_41 = arith.constant dense<0.000000e+00> : vector<28x84xf32>
    %107 = tpu.matmul %92, %99, %cst_41 {dimension_numbers = #tpu.dot_dimension_numbers<[1], [0], [0], [1], [0, 0, 1, 1], [], []>} : vector<28x168xf32>, vector<168x84xf32>, vector<28x84xf32> -> vector<28x84xf32>
    %cst_42 = arith.constant dense<0.000000e+00> : vector<28x84xf32>
    %108 = tpu.matmul %92, %106, %cst_42 {dimension_numbers = #tpu.dot_dimension_numbers<[1], [0], [0], [1], [0, 0, 1, 1], [], []>} : vector<28x168xf32>, vector<168x84xf32>, vector<28x84xf32> -> vector<28x84xf32>
    %109 = arith.maximumf %107, %108 : vector<28x84xf32>
    %110 = vector.shape_cast %109 : vector<28x84xf32> to vector<2x14x84xf32>
    %c0_43 = arith.constant 0 : index
    %c0_44 = arith.constant 0 : index
    %c0_45 = arith.constant 0 : index
    %111 = vector.load %arg16[%c0_43, %c0_44, %c0_45] : memref<2x14x84xf32, #tpu.memory_space<vmem>>, vector<2x14x84xf32>
    tpu.vector_store %arg16[%c0_43, %c0_44, %c0_45], %110 {strides = array<i32>} : memref<2x14x84xf32, #tpu.memory_space<vmem>>, vector<2x14x84xf32>,
    %112 = vector.shape_cast %109 : vector<28x84xf32> to vector<2x14x84xf32>
    %cst_46 = arith.constant 0.000000e+00 : f32
    %113 = vector.broadcast %cst_46 : f32 to vector<20x160xf32>
    %114 = vector.extract_strided_slice %112 {offsets = [0, 0, 0], sizes = [2, 10, 84], strides = [1, 1, 1]} : vector<2x14x84xf32> to vector<2x10x84xf32>
    %115 = vector.shape_cast %114 : vector<2x10x84xf32> to vector<20x84xf32>
    %c0_47 = arith.constant 0 : index
    %c0_48 = arith.constant 0 : index
    %c0_49 = arith.constant 0 : index
    %116 = vector.load %arg6[%c0_47, %c0_48, %c0_49] : memref<5x84x160xf32, #tpu.memory_space<vmem>>, vector<1x84x160xf32>
    %117 = vector.shape_cast %116 : vector<1x84x160xf32> to vector<84x160xf32>
    %cst_50 = arith.constant dense<0.000000e+00> : vector<20x160xf32>
    %118 = tpu.matmul %115, %117, %cst_50 {dimension_numbers = #tpu.dot_dimension_numbers<[1], [0], [0], [1], [0, 0, 1, 1], [], []>} : vector<20x84xf32>, vector<84x160xf32>, vector<20x160xf32> -> vector<20x160xf32>
    %119 = arith.addf %113, %118 : vector<20x160xf32>
    %120 = vector.extract_strided_slice %112 {offsets = [0, 1, 0], sizes = [2, 10, 84], strides = [1, 1, 1]} : vector<2x14x84xf32> to vector<2x10x84xf32>
    %121 = vector.shape_cast %120 : vector<2x10x84xf32> to vector<20x84xf32>
    %c1_51 = arith.constant 1 : index
    %c0_52 = arith.constant 0 : index
    %c0_53 = arith.constant 0 : index
    %122 = vector.load %arg6[%c1_51, %c0_52, %c0_53] : memref<5x84x160xf32, #tpu.memory_space<vmem>>, vector<1x84x160xf32>
    %123 = vector.shape_cast %122 : vector<1x84x160xf32> to vector<84x160xf32>
    %cst_54 = arith.constant dense<0.000000e+00> : vector<20x160xf32>
    %124 = tpu.matmul %121, %123, %cst_54 {dimension_numbers = #tpu.dot_dimension_numbers<[1], [0], [0], [1], [0, 0, 1, 1], [], []>} : vector<20x84xf32>, vector<84x160xf32>, vector<20x160xf32> -> vector<20x160xf32>
    %125 = arith.addf %119, %124 : vector<20x160xf32>
    %126 = vector.extract_strided_slice %112 {offsets = [0, 2, 0], sizes = [2, 10, 84], strides = [1, 1, 1]} : vector<2x14x84xf32> to vector<2x10x84xf32>
    %127 = vector.shape_cast %126 : vector<2x10x84xf32> to vector<20x84xf32>
    %c2_55 = arith.constant 2 : index
    %c0_56 = arith.constant 0 : index
    %c0_57 = arith.constant 0 : index
    %128 = vector.load %arg6[%c2_55, %c0_56, %c0_57] : memref<5x84x160xf32, #tpu.memory_space<vmem>>, vector<1x84x160xf32>
    %129 = vector.shape_cast %128 : vector<1x84x160xf32> to vector<84x160xf32>
    %cst_58 = arith.constant dense<0.000000e+00> : vector<20x160xf32>
    %130 = tpu.matmul %127, %129, %cst_58 {dimension_numbers = #tpu.dot_dimension_numbers<[1], [0], [0], [1], [0, 0, 1, 1], [], []>} : vector<20x84xf32>, vector<84x160xf32>, vector<20x160xf32> -> vector<20x160xf32>
    %131 = arith.addf %125, %130 : vector<20x160xf32>
    %132 = vector.extract_strided_slice %112 {offsets = [0, 3, 0], sizes = [2, 10, 84], strides = [1, 1, 1]} : vector<2x14x84xf32> to vector<2x10x84xf32>
    %133 = vector.shape_cast %132 : vector<2x10x84xf32> to vector<20x84xf32>
    %c3_59 = arith.constant 3 : index
    %c0_60 = arith.constant 0 : index
    %c0_61 = arith.constant 0 : index
    %134 = vector.load %arg6[%c3_59, %c0_60, %c0_61] : memref<5x84x160xf32, #tpu.memory_space<vmem>>, vector<1x84x160xf32>
    %135 = vector.shape_cast %134 : vector<1x84x160xf32> to vector<84x160xf32>
    %cst_62 = arith.constant dense<0.000000e+00> : vector<20x160xf32>
    %136 = tpu.matmul %133, %135, %cst_62 {dimension_numbers = #tpu.dot_dimension_numbers<[1], [0], [0], [1], [0, 0, 1, 1], [], []>} : vector<20x84xf32>, vector<84x160xf32>, vector<20x160xf32> -> vector<20x160xf32>
    %137 = arith.addf %131, %136 : vector<20x160xf32>
    %138 = vector.extract_strided_slice %112 {offsets = [0, 4, 0], sizes = [2, 10, 84], strides = [1, 1, 1]} : vector<2x14x84xf32> to vector<2x10x84xf32>
    %139 = vector.shape_cast %138 : vector<2x10x84xf32> to vector<20x84xf32>
    %c4_63 = arith.constant 4 : index
    %c0_64 = arith.constant 0 : index
    %c0_65 = arith.constant 0 : index
    %140 = vector.load %arg6[%c4_63, %c0_64, %c0_65] : memref<5x84x160xf32, #tpu.memory_space<vmem>>, vector<1x84x160xf32>
    %141 = vector.shape_cast %140 : vector<1x84x160xf32> to vector<84x160xf32>
    %cst_66 = arith.constant dense<0.000000e+00> : vector<20x160xf32>
    %142 = tpu.matmul %139, %141, %cst_66 {dimension_numbers = #tpu.dot_dimension_numbers<[1], [0], [0], [1], [0, 0, 1, 1], [], []>} : vector<20x84xf32>, vector<84x160xf32>, vector<20x160xf32> -> vector<20x160xf32>
    %143 = arith.addf %137, %142 : vector<20x160xf32>
    %c0_67 = arith.constant 0 : index
    %c0_68 = arith.constant 0 : index
    %144 = vector.load %arg7[%c0_67, %c0_68] : memref<1x160xf32, #tpu.memory_space<vmem>>, vector<1x160xf32>
    %145 = vector.broadcast %144 : vector<1x160xf32> to vector<20x160xf32>
    %146 = arith.addf %143, %145 : vector<20x160xf32>
    %c0_69 = arith.constant 0 : index
    %c0_70 = arith.constant 0 : index
    %147 = vector.load %arg8[%c0_69, %c0_70] : memref<1x16xf32, #tpu.memory_space<vmem>>, vector<1x16xf32>
    %c0_71 = arith.constant 0 : index
    %c0_72 = arith.constant 0 : index
    %148 = vector.load %arg9[%c0_71, %c0_72] : memref<1x16xf32, #tpu.memory_space<vmem>>, vector<1x16xf32>
    %149 = tpu.iota {dimensions = array<i32: 0>} : vector<160x16xi32>
    %150 = tpu.iota {dimensions = array<i32: 1>} : vector<160x16xi32>
    %c10_i32 = arith.constant 10 : i32
    %151 = vector.broadcast %c10_i32 : i32 to vector<160x16xi32>
    %152 = arith.muli %150, %151 : vector<160x16xi32>
    %153 = arith.cmpi sge, %149, %152 : vector<160x16xi32>
    %c1_i32_73 = arith.constant 1 : i32
    %154 = vector.broadcast %c1_i32_73 : i32 to vector<160x16xi32>
    %155 = arith.addi %150, %154 : vector<160x16xi32>
    %c10_i32_74 = arith.constant 10 : i32
    %156 = vector.broadcast %c10_i32_74 : i32 to vector<160x16xi32>
    %157 = arith.muli %155, %156 : vector<160x16xi32>
    %158 = arith.cmpi slt, %149, %157 : vector<160x16xi32>
    %159 = arith.andi %153, %158 : vector<160x16xi1>
    %160 = arith.extui %159 : vector<160x16xi1> to vector<160x16xi32>
    %161 = arith.sitofp %160 : vector<160x16xi32> to vector<160x16xf32>
    %162 = tpu.iota {dimensions = array<i32: 0>} : vector<16x160xi32>
    %163 = tpu.iota {dimensions = array<i32: 1>} : vector<16x160xi32>
    %c10_i32_75 = arith.constant 10 : i32
    %164 = vector.broadcast %c10_i32_75 : i32 to vector<16x160xi32>
    %165 = arith.muli %162, %164 : vector<16x160xi32>
    %166 = arith.cmpi sge, %163, %165 : vector<16x160xi32>
    %c1_i32_76 = arith.constant 1 : i32
    %167 = vector.broadcast %c1_i32_76 : i32 to vector<16x160xi32>
    %168 = arith.addi %162, %167 : vector<16x160xi32>
    %c10_i32_77 = arith.constant 10 : i32
    %169 = vector.broadcast %c10_i32_77 : i32 to vector<16x160xi32>
    %170 = arith.muli %168, %169 : vector<16x160xi32>
    %171 = arith.cmpi slt, %163, %170 : vector<16x160xi32>
    %172 = arith.andi %166, %171 : vector<16x160xi1>
    %173 = arith.extui %172 : vector<16x160xi1> to vector<16x160xi32>
    %174 = arith.sitofp %173 : vector<16x160xi32> to vector<16x160xf32>
    %cst_78 = arith.constant dense<0.000000e+00> : vector<160xf32>
    %175 = vector.multi_reduction <add>, %146, %cst_78 [0] : vector<20x160xf32> to vector<160xf32>
    %176 = vector.shape_cast %175 : vector<160xf32> to vector<1x160xf32>
    %177 = arith.mulf %146, %146 : vector<20x160xf32>
    %cst_79 = arith.constant dense<0.000000e+00> : vector<160xf32>
    %178 = vector.multi_reduction <add>, %177, %cst_79 [0] : vector<20x160xf32> to vector<160xf32>
    %179 = vector.shape_cast %178 : vector<160xf32> to vector<1x160xf32>
    %cst_80 = arith.constant dense<0.000000e+00> : vector<1x16xf32>
    %180 = tpu.matmul %176, %161, %cst_80 {dimension_numbers = #tpu.dot_dimension_numbers<[1], [0], [0], [1], [0, 0, 1, 1], [], []>} : vector<1x160xf32>, vector<160x16xf32>, vector<1x16xf32> -> vector<1x16xf32>
    %cst_81 = arith.constant 5.000000e-03 : f32
    %181 = vector.broadcast %cst_81 : f32 to vector<1x16xf32>
    %182 = arith.mulf %180, %181 : vector<1x16xf32>
    %cst_82 = arith.constant dense<0.000000e+00> : vector<1x16xf32>
    %183 = tpu.matmul %179, %161, %cst_82 {dimension_numbers = #tpu.dot_dimension_numbers<[1], [0], [0], [1], [0, 0, 1, 1], [], []>} : vector<1x160xf32>, vector<160x16xf32>, vector<1x16xf32> -> vector<1x16xf32>
    %cst_83 = arith.constant 5.000000e-03 : f32
    %184 = vector.broadcast %cst_83 : f32 to vector<1x16xf32>
    %185 = arith.mulf %183, %184 : vector<1x16xf32>
    %186 = arith.mulf %182, %182 : vector<1x16xf32>
    %187 = arith.subf %185, %186 : vector<1x16xf32>
    %cst_84 = arith.constant 9.99999974E-6 : f32
    %188 = vector.broadcast %cst_84 : f32 to vector<1x16xf32>
    %189 = arith.addf %187, %188 : vector<1x16xf32>
    %190 = math.rsqrt %189 : vector<1x16xf32>
    %191 = arith.mulf %147, %190 : vector<1x16xf32>
    %192 = arith.mulf %182, %191 : vector<1x16xf32>
    %193 = arith.subf %148, %192 : vector<1x16xf32>
    %cst_85 = arith.constant dense<0.000000e+00> : vector<1x160xf32>
    %194 = tpu.matmul %191, %174, %cst_85 {dimension_numbers = #tpu.dot_dimension_numbers<[1], [0], [0], [1], [0, 0, 1, 1], [], []>} : vector<1x16xf32>, vector<16x160xf32>, vector<1x160xf32> -> vector<1x160xf32>
    %cst_86 = arith.constant dense<0.000000e+00> : vector<1x160xf32>
    %195 = tpu.matmul %193, %174, %cst_86 {dimension_numbers = #tpu.dot_dimension_numbers<[1], [0], [0], [1], [0, 0, 1, 1], [], []>} : vector<1x16xf32>, vector<16x160xf32>, vector<1x160xf32> -> vector<1x160xf32>
    %196 = vector.broadcast %194 : vector<1x160xf32> to vector<20x160xf32>
    %197 = arith.mulf %146, %196 : vector<20x160xf32>
    %198 = vector.broadcast %195 : vector<1x160xf32> to vector<20x160xf32>
    %199 = arith.addf %197, %198 : vector<20x160xf32>
    %cst_87 = arith.constant 0.000000e+00 : f32
    %200 = vector.broadcast %cst_87 : f32 to vector<20x160xf32>
    %201 = arith.maximumf %199, %200 : vector<20x160xf32>
    %202 = vector.shape_cast %201 : vector<20x160xf32> to vector<2x5x2x160xf32>
    %cst_88 = arith.constant dense<0xFF800000> : vector<2x5x160xf32>
    %203 = vector.multi_reduction <maximumf>, %202, %cst_88 [2] : vector<2x5x2x160xf32> to vector<2x5x160xf32>
    %204 = vector.shape_cast %203 : vector<2x5x160xf32> to vector<10x160xf32>
    %205 = tpu.iota {dimensions = array<i32: 0>} : vector<160x80xi32>
    %206 = tpu.iota {dimensions = array<i32: 1>} : vector<160x80xi32>
    %c2_i32_89 = arith.constant 2 : i32
    %207 = vector.broadcast %c2_i32_89 : i32 to vector<160x80xi32>
    %208 = arith.muli %207, %206 : vector<160x80xi32>
    %209 = arith.cmpi eq, %205, %208 : vector<160x80xi32>
    %210 = arith.extui %209 : vector<160x80xi1> to vector<160x80xi32>
    %211 = arith.sitofp %210 : vector<160x80xi32> to vector<160x80xf32>
    %c2_i32_90 = arith.constant 2 : i32
    %212 = vector.broadcast %c2_i32_90 : i32 to vector<160x80xi32>
    %213 = arith.muli %212, %206 : vector<160x80xi32>
    %c1_i32_91 = arith.constant 1 : i32
    %214 = vector.broadcast %c1_i32_91 : i32 to vector<160x80xi32>
    %215 = arith.addi %213, %214 : vector<160x80xi32>
    %216 = arith.cmpi eq, %205, %215 : vector<160x80xi32>
    %217 = arith.extui %216 : vector<160x80xi1> to vector<160x80xi32>
    %218 = arith.sitofp %217 : vector<160x80xi32> to vector<160x80xf32>
    %cst_92 = arith.constant dense<0.000000e+00> : vector<10x80xf32>
    %219 = tpu.matmul %204, %211, %cst_92 {dimension_numbers = #tpu.dot_dimension_numbers<[1], [0], [0], [1], [0, 0, 1, 1], [], []>} : vector<10x160xf32>, vector<160x80xf32>, vector<10x80xf32> -> vector<10x80xf32>
    %cst_93 = arith.constant dense<0.000000e+00> : vector<10x80xf32>
    %220 = tpu.matmul %204, %218, %cst_93 {dimension_numbers = #tpu.dot_dimension_numbers<[1], [0], [0], [1], [0, 0, 1, 1], [], []>} : vector<10x160xf32>, vector<160x80xf32>, vector<10x80xf32> -> vector<10x80xf32>
    %221 = arith.maximumf %219, %220 : vector<10x80xf32>
    %222 = vector.shape_cast %221 : vector<10x80xf32> to vector<2x5x80xf32>
    %c0_94 = arith.constant 0 : index
    %c0_95 = arith.constant 0 : index
    %c0_96 = arith.constant 0 : index
    %223 = vector.load %arg17[%c0_94, %c0_95, %c0_96] : memref<2x5x80xf32, #tpu.memory_space<vmem>>, vector<2x5x80xf32>
    tpu.vector_store %arg17[%c0_94, %c0_95, %c0_96], %222 {strides = array<i32>} : memref<2x5x80xf32, #tpu.memory_space<vmem>>, vector<2x5x80xf32>,
    %224 = vector.shape_cast %221 : vector<10x80xf32> to vector<2x5x80xf32>
    %cst_97 = arith.constant 0.000000e+00 : f32
    %225 = vector.broadcast %cst_97 : f32 to vector<2x120xf32>
    %226 = vector.extract_strided_slice %224 {offsets = [0, 0, 0], sizes = [2, 1, 80], strides = [1, 1, 1]} : vector<2x5x80xf32> to vector<2x1x80xf32>
    %227 = vector.shape_cast %226 : vector<2x1x80xf32> to vector<2x80xf32>
    %c0_98 = arith.constant 0 : index
    %c0_99 = arith.constant 0 : index
    %c0_100 = arith.constant 0 : index
    %228 = vector.load %arg10[%c0_98, %c0_99, %c0_100] : memref<5x80x120xf32, #tpu.memory_space<vmem>>, vector<1x80x120xf32>
    %229 = vector.shape_cast %228 : vector<1x80x120xf32> to vector<80x120xf32>
    %cst_101 = arith.constant dense<0.000000e+00> : vector<2x120xf32>
    %230 = tpu.matmul %227, %229, %cst_101 {dimension_numbers = #tpu.dot_dimension_numbers<[1], [0], [0], [1], [0, 0, 1, 1], [], []>} : vector<2x80xf32>, vector<80x120xf32>, vector<2x120xf32> -> vector<2x120xf32>
    %231 = arith.addf %225, %230 : vector<2x120xf32>
    %232 = vector.extract_strided_slice %224 {offsets = [0, 1, 0], sizes = [2, 1, 80], strides = [1, 1, 1]} : vector<2x5x80xf32> to vector<2x1x80xf32>
    %233 = vector.shape_cast %232 : vector<2x1x80xf32> to vector<2x80xf32>
    %c1_102 = arith.constant 1 : index
    %c0_103 = arith.constant 0 : index
    %c0_104 = arith.constant 0 : index
    %234 = vector.load %arg10[%c1_102, %c0_103, %c0_104] : memref<5x80x120xf32, #tpu.memory_space<vmem>>, vector<1x80x120xf32>
    %235 = vector.shape_cast %234 : vector<1x80x120xf32> to vector<80x120xf32>
    %cst_105 = arith.constant dense<0.000000e+00> : vector<2x120xf32>
    %236 = tpu.matmul %233, %235, %cst_105 {dimension_numbers = #tpu.dot_dimension_numbers<[1], [0], [0], [1], [0, 0, 1, 1], [], []>} : vector<2x80xf32>, vector<80x120xf32>, vector<2x120xf32> -> vector<2x120xf32>
    %237 = arith.addf %231, %236 : vector<2x120xf32>
    %238 = vector.extract_strided_slice %224 {offsets = [0, 2, 0], sizes = [2, 1, 80], strides = [1, 1, 1]} : vector<2x5x80xf32> to vector<2x1x80xf32>
    %239 = vector.shape_cast %238 : vector<2x1x80xf32> to vector<2x80xf32>
    %c2_106 = arith.constant 2 : index
    %c0_107 = arith.constant 0 : index
    %c0_108 = arith.constant 0 : index
    %240 = vector.load %arg10[%c2_106, %c0_107, %c0_108] : memref<5x80x120xf32, #tpu.memory_space<vmem>>, vector<1x80x120xf32>
    %241 = vector.shape_cast %240 : vector<1x80x120xf32> to vector<80x120xf32>
    %cst_109 = arith.constant dense<0.000000e+00> : vector<2x120xf32>
    %242 = tpu.matmul %239, %241, %cst_109 {dimension_numbers = #tpu.dot_dimension_numbers<[1], [0], [0], [1], [0, 0, 1, 1], [], []>} : vector<2x80xf32>, vector<80x120xf32>, vector<2x120xf32> -> vector<2x120xf32>
    %243 = arith.addf %237, %242 : vector<2x120xf32>
    %244 = vector.extract_strided_slice %224 {offsets = [0, 3, 0], sizes = [2, 1, 80], strides = [1, 1, 1]} : vector<2x5x80xf32> to vector<2x1x80xf32>
    %245 = vector.shape_cast %244 : vector<2x1x80xf32> to vector<2x80xf32>
    %c3_110 = arith.constant 3 : index
    %c0_111 = arith.constant 0 : index
    %c0_112 = arith.constant 0 : index
    %246 = vector.load %arg10[%c3_110, %c0_111, %c0_112] : memref<5x80x120xf32, #tpu.memory_space<vmem>>, vector<1x80x120xf32>
    %247 = vector.shape_cast %246 : vector<1x80x120xf32> to vector<80x120xf32>
    %cst_113 = arith.constant dense<0.000000e+00> : vector<2x120xf32>
    %248 = tpu.matmul %245, %247, %cst_113 {dimension_numbers = #tpu.dot_dimension_numbers<[1], [0], [0], [1], [0, 0, 1, 1], [], []>} : vector<2x80xf32>, vector<80x120xf32>, vector<2x120xf32> -> vector<2x120xf32>
    %249 = arith.addf %243, %248 : vector<2x120xf32>
    %250 = vector.extract_strided_slice %224 {offsets = [0, 4, 0], sizes = [2, 1, 80], strides = [1, 1, 1]} : vector<2x5x80xf32> to vector<2x1x80xf32>
    %251 = vector.shape_cast %250 : vector<2x1x80xf32> to vector<2x80xf32>
    %c4_114 = arith.constant 4 : index
    %c0_115 = arith.constant 0 : index
    %c0_116 = arith.constant 0 : index
    %252 = vector.load %arg10[%c4_114, %c0_115, %c0_116] : memref<5x80x120xf32, #tpu.memory_space<vmem>>, vector<1x80x120xf32>
    %253 = vector.shape_cast %252 : vector<1x80x120xf32> to vector<80x120xf32>
    %cst_117 = arith.constant dense<0.000000e+00> : vector<2x120xf32>
    %254 = tpu.matmul %251, %253, %cst_117 {dimension_numbers = #tpu.dot_dimension_numbers<[1], [0], [0], [1], [0, 0, 1, 1], [], []>} : vector<2x80xf32>, vector<80x120xf32>, vector<2x120xf32> -> vector<2x120xf32>
    %255 = arith.addf %249, %254 : vector<2x120xf32>
    %c0_118 = arith.constant 0 : index
    %c0_119 = arith.constant 0 : index
    %256 = vector.load %arg11[%c0_118, %c0_119] : memref<1x120xf32, #tpu.memory_space<vmem>>, vector<1x120xf32>
    %257 = vector.broadcast %256 : vector<1x120xf32> to vector<2x120xf32>
    %258 = arith.addf %255, %257 : vector<2x120xf32>
    %cst_120 = arith.constant 0.000000e+00 : f32
    %259 = vector.broadcast %cst_120 : f32 to vector<2x120xf32>
    %260 = arith.maximumf %258, %259 : vector<2x120xf32>
    %c0_121 = arith.constant 0 : index
    %c0_122 = arith.constant 0 : index
    %261 = vector.load %arg12[%c0_121, %c0_122] : memref<120x84xf32, #tpu.memory_space<vmem>>, vector<120x84xf32>
    %cst_123 = arith.constant dense<0.000000e+00> : vector<2x84xf32>
    %262 = tpu.matmul %260, %261, %cst_123 {dimension_numbers = #tpu.dot_dimension_numbers<[1], [0], [0], [1], [0, 0, 1, 1], [], []>} : vector<2x120xf32>, vector<120x84xf32>, vector<2x84xf32> -> vector<2x84xf32>
    %c0_124 = arith.constant 0 : index
    %c0_125 = arith.constant 0 : index
    %263 = vector.load %arg13[%c0_124, %c0_125] : memref<1x84xf32, #tpu.memory_space<vmem>>, vector<1x84xf32>
    %264 = vector.broadcast %263 : vector<1x84xf32> to vector<2x84xf32>
    %265 = arith.addf %262, %264 : vector<2x84xf32>
    %cst_126 = arith.constant 0.000000e+00 : f32
    %266 = vector.broadcast %cst_126 : f32 to vector<2x84xf32>
    %267 = arith.maximumf %265, %266 : vector<2x84xf32>
    %c0_127 = arith.constant 0 : index
    %c0_128 = arith.constant 0 : index
    %268 = vector.load %arg14[%c0_127, %c0_128] : memref<84x10xf32, #tpu.memory_space<vmem>>, vector<84x10xf32>
    %cst_129 = arith.constant dense<0.000000e+00> : vector<2x10xf32>
    %269 = tpu.matmul %267, %268, %cst_129 {dimension_numbers = #tpu.dot_dimension_numbers<[1], [0], [0], [1], [0, 0, 1, 1], [], []>} : vector<2x84xf32>, vector<84x10xf32>, vector<2x10xf32> -> vector<2x10xf32>
    %c0_130 = arith.constant 0 : index
    %c0_131 = arith.constant 0 : index
    %270 = vector.load %arg15[%c0_130, %c0_131] : memref<1x10xf32, #tpu.memory_space<vmem>>, vector<1x10xf32>
    %271 = vector.broadcast %270 : vector<1x10xf32> to vector<2x10xf32>
    %272 = arith.addf %269, %271 : vector<2x10xf32>
    %c0_132 = arith.constant 0 : index
    %c0_133 = arith.constant 0 : index
    %273 = vector.load %arg18[%c0_132, %c0_133] : memref<2x10xf32, #tpu.memory_space<vmem>>, vector<2x10xf32>
    tpu.vector_store %arg18[%c0_132, %c0_133], %272 {strides = array<i32>} : memref<2x10xf32, #tpu.memory_space<vmem>>, vector<2x10xf32>,
    return
  }
  func.func @transform_0(%arg0: i32) -> (i32, i32, i32) {
    %c0_i32 = arith.constant 0 : i32
    %c0_i32_0 = arith.constant 0 : i32
    %c0_i32_1 = arith.constant 0 : i32
    %c0_i32_2 = arith.constant 0 : i32
    return %c0_i32, %c0_i32_0, %c0_i32_1 : i32, i32, i32
  }
  func.func @transform_1(%arg0: i32) -> (i32, i32, i32) {
    %c0_i32 = arith.constant 0 : i32
    %c0_i32_0 = arith.constant 0 : i32
    %c0_i32_1 = arith.constant 0 : i32
    %c0_i32_2 = arith.constant 0 : i32
    return %c0_i32, %c0_i32_0, %c0_i32_1 : i32, i32, i32
  }
  func.func @transform_2(%arg0: i32) -> (i32, i32) {
    %c0_i32 = arith.constant 0 : i32
    %c0_i32_0 = arith.constant 0 : i32
    %c0_i32_1 = arith.constant 0 : i32
    return %c0_i32, %c0_i32_0 : i32, i32
  }
  func.func @transform_3(%arg0: i32) -> (i32, i32) {
    %c0_i32 = arith.constant 0 : i32
    %c0_i32_0 = arith.constant 0 : i32
    %c0_i32_1 = arith.constant 0 : i32
    return %c0_i32, %c0_i32_0 : i32, i32
  }
  func.func @transform_4(%arg0: i32) -> (i32, i32) {
    %c0_i32 = arith.constant 0 : i32
    %c0_i32_0 = arith.constant 0 : i32
    %c0_i32_1 = arith.constant 0 : i32
    return %c0_i32, %c0_i32_0 : i32, i32
  }
  func.func @transform_5(%arg0: i32) -> (i32, i32, i32) {
    %c0_i32 = arith.constant 0 : i32
    %c0_i32_0 = arith.constant 0 : i32
    %c0_i32_1 = arith.constant 0 : i32
    %c0_i32_2 = arith.constant 0 : i32
    return %c0_i32, %c0_i32_0, %c0_i32_1 : i32, i32, i32
  }
  func.func @transform_6(%arg0: i32) -> (i32, i32) {
    %c0_i32 = arith.constant 0 : i32
    %c0_i32_0 = arith.constant 0 : i32
    %c0_i32_1 = arith.constant 0 : i32
    return %c0_i32, %c0_i32_0 : i32, i32
  }
  func.func @transform_7(%arg0: i32) -> (i32, i32) {
    %c0_i32 = arith.constant 0 : i32
    %c0_i32_0 = arith.constant 0 : i32
    %c0_i32_1 = arith.constant 0 : i32
    return %c0_i32, %c0_i32_0 : i32, i32
  }
  func.func @transform_8(%arg0: i32) -> (i32, i32) {
    %c0_i32 = arith.constant 0 : i32
    %c0_i32_0 = arith.constant 0 : i32
    %c0_i32_1 = arith.constant 0 : i32
    return %c0_i32, %c0_i32_0 : i32, i32
  }
  func.func @transform_9(%arg0: i32) -> (i32, i32, i32) {
    %c0_i32 = arith.constant 0 : i32
    %c0_i32_0 = arith.constant 0 : i32
    %c0_i32_1 = arith.constant 0 : i32
    %c0_i32_2 = arith.constant 0 : i32
    return %c0_i32, %c0_i32_0, %c0_i32_1 : i32, i32, i32
  }
  func.func @transform_10(%arg0: i32) -> (i32, i32) {
    %c0_i32 = arith.constant 0 : i32
    %c0_i32_0 = arith.constant 0 : i32
    %c0_i32_1 = arith.constant 0 : i32
    return %c0_i32, %c0_i32_0 : i32, i32
  }
  func.func @transform_11(%arg0: i32) -> (i32, i32) {
    %c0_i32 = arith.constant 0 : i32
    %c0_i32_0 = arith.constant 0 : i32
    %c0_i32_1 = arith.constant 0 : i32
    return %c0_i32, %c0_i32_0 : i32, i32
  }
  func.func @transform_12(%arg0: i32) -> (i32, i32) {
    %c0_i32 = arith.constant 0 : i32
    %c0_i32_0 = arith.constant 0 : i32
    %c0_i32_1 = arith.constant 0 : i32
    return %c0_i32, %c0_i32_0 : i32, i32
  }
  func.func @transform_13(%arg0: i32) -> (i32, i32) {
    %c0_i32 = arith.constant 0 : i32
    %c0_i32_0 = arith.constant 0 : i32
    %c0_i32_1 = arith.constant 0 : i32
    return %c0_i32, %c0_i32_0 : i32, i32
  }
  func.func @transform_14(%arg0: i32) -> (i32, i32) {
    %c0_i32 = arith.constant 0 : i32
    %c0_i32_0 = arith.constant 0 : i32
    %c0_i32_1 = arith.constant 0 : i32
    return %c0_i32, %c0_i32_0 : i32, i32
  }
  func.func @transform_15(%arg0: i32) -> (i32, i32, i32) {
    %c0_i32 = arith.constant 0 : i32
    %c0_i32_0 = arith.constant 0 : i32
    %c0_i32_1 = arith.constant 0 : i32
    %c0_i32_2 = arith.constant 0 : i32
    return %c0_i32, %c0_i32_0, %c0_i32_1 : i32, i32, i32
  }
  func.func @transform_16(%arg0: i32) -> (i32, i32, i32) {
    %c0_i32 = arith.constant 0 : i32
    %c0_i32_0 = arith.constant 0 : i32
    %c0_i32_1 = arith.constant 0 : i32
    %c0_i32_2 = arith.constant 0 : i32
    return %c0_i32, %c0_i32_0, %c0_i32_1 : i32, i32, i32
  }
  func.func @transform_17(%arg0: i32) -> (i32, i32) {
    %c0_i32 = arith.constant 0 : i32
    %c0_i32_0 = arith.constant 0 : i32
    %c0_i32_1 = arith.constant 0 : i32
    return %c0_i32, %c0_i32_0 : i32, i32
  }
}

</mosaic_0001>

<llo_original>
// kernel: lenet5_forward.1
$region0: #{lenet5_forward.1}
  #allocation0 [shape = 'u32[]', space=smem, size = 0x4, offset = 0x4, fixed_abs, tag = 'smem constant byte address 0x4 - core index']
  #allocation1 [shape = 'u32[144,128]{1,0:T(1,128)}', space=vmem, size = 0x12000, scoped, tag = 'internal scratch']
  %s0 = inlined_call_operand.vmem [shape: f32[2,32,32], index: 0, kind: input, shape index: {}]
  %s1 = inlined_call_operand.vmem [shape: f32[5,32,168], index: 1, kind: input, shape index: {}]
  %s2 = inlined_call_operand.vmem [shape: f32[1,168], index: 2, kind: input, shape index: {}]
  %s3 = inlined_call_operand.vmem [shape: f32[1,6], index: 3, kind: input, shape index: {}]
  %s4 = inlined_call_operand.vmem [shape: f32[1,6], index: 4, kind: input, shape index: {}]
  %s5 = inlined_call_operand.vmem [shape: f32[5,84,160], index: 5, kind: input, shape index: {}]
  %s6 = inlined_call_operand.vmem [shape: f32[1,160], index: 6, kind: input, shape index: {}]
  %s7 = inlined_call_operand.vmem [shape: f32[1,16], index: 7, kind: input, shape index: {}]
  %s8 = inlined_call_operand.vmem [shape: f32[1,16], index: 8, kind: input, shape index: {}]
  %s9 = inlined_call_operand.vmem [shape: f32[5,80,120], index: 9, kind: input, shape index: {}]
  %s10 = inlined_call_operand.vmem [shape: f32[1,120], index: 10, kind: input, shape index: {}]
  %s11 = inlined_call_operand.vmem [shape: f32[120,84], index: 11, kind: input, shape index: {}]
  %s12 = inlined_call_operand.vmem [shape: f32[1,84], index: 12, kind: input, shape index: {}]
  %s13 = inlined_call_operand.vmem [shape: f32[84,10], index: 13, kind: input, shape index: {}]
  %s14 = inlined_call_operand.vmem [shape: f32[1,10], index: 14, kind: input, shape index: {}]
  %s15 = inlined_call_operand.vmem [shape: f32[2,14,84], index: 15, kind: output, shape index: {0}]
  %s16 = inlined_call_operand.vmem [shape: f32[2,5,80], index: 16, kind: output, shape index: {1}]
  %s17 = inlined_call_operand.hbm [shape: f32[2,10], index: 17, kind: output, shape index: {2}]
  %18 = xla_tuple %s15, %s16, %s17
  %s19 = sld [smem:[#allocation0]]
  $region86: #{lenet5_forward.1} parent=0
    _
  %s21 = ssub.s32 1, %s19
  %s22 = scalar_select 0, %s21, %s19
  $region1: #{lenet5_forward.1} parent=0
    #allocation2 [shape = 'u8[1024]{0}', space=vmem, size = 0x400, scoped, tag = 'output window, operand 2, single buffered']
    #allocation3 [shape = 's32[1]{0}', space=sflag, size = 0x4, scoped, tag = 'scoped memory for lenet5_forward.1']
    %23 = vsyncpa [#allocation3], 0
    // Predicated region
    $region2: #{lenet5_forward.1} parent=1 // pred_check
      _
    $region3: #{lenet5_forward.1} parent=1 // pred_check_branch
      %25 = sbr.rel (0) target = $region5
    $region4: #{lenet5_forward.1} parent=1 // pred_region
      _
    $region5: #{lenet5_forward.1} parent=1 // pred_fallthru
      _
    // Predicated region
    $region6: #{lenet5_forward.1} parent=1 // pred_check
      _
    $region7: #{lenet5_forward.1} parent=1 // pred_check_branch
      %27 = sbr.rel (0) target = $region9
    $region8: #{lenet5_forward.1} parent=1 // pred_region
      _
    $region9: #{lenet5_forward.1} parent=1 // pred_fallthru
      _
    // Predicated region
    $region10: #{lenet5_forward.1} parent=1 // pred_check
      _
    $region11: #{lenet5_forward.1} parent=1 // pred_check_branch
      %29 = sbr.rel (0) target = $region13
    $region12: #{lenet5_forward.1} parent=1 // pred_region
      _
    $region13: #{lenet5_forward.1} parent=1 // pred_fallthru
      _
    // Predicated region
    $region14: #{lenet5_forward.1} parent=1 // pred_check
      _
    $region15: #{lenet5_forward.1} parent=1 // pred_check_branch
      %31 = sbr.rel (0) target = $region17
    $region16: #{lenet5_forward.1} parent=1 // pred_region
      _
    $region17: #{lenet5_forward.1} parent=1 // pred_fallthru
      _
    // Predicated region
    $region18: #{lenet5_forward.1} parent=1 // pred_check
      _
    $region19: #{lenet5_forward.1} parent=1 // pred_check_branch
      %33 = sbr.rel (0) target = $region21
    $region20: #{lenet5_forward.1} parent=1 // pred_region
      _
    $region21: #{lenet5_forward.1} parent=1 // pred_fallthru
      _
    // Predicated region
    $region22: #{lenet5_forward.1} parent=1 // pred_check
      _
    $region23: #{lenet5_forward.1} parent=1 // pred_check_branch
      %35 = sbr.rel (0) target = $region25
    $region24: #{lenet5_forward.1} parent=1 // pred_region
      _
    $region25: #{lenet5_forward.1} parent=1 // pred_fallthru
      _
    // Predicated region
    $region26: #{lenet5_forward.1} parent=1 // pred_check
      _
    $region27: #{lenet5_forward.1} parent=1 // pred_check_branch
      %37 = sbr.rel (0) target = $region29
    $region28: #{lenet5_forward.1} parent=1 // pred_region
      _
    $region29: #{lenet5_forward.1} parent=1 // pred_fallthru
      _
    // Predicated region
    $region30: #{lenet5_forward.1} parent=1 // pred_check
      _
    $region31: #{lenet5_forward.1} parent=1 // pred_check_branch
      %39 = sbr.rel (0) target = $region33
    $region32: #{lenet5_forward.1} parent=1 // pred_region
      _
    $region33: #{lenet5_forward.1} parent=1 // pred_fallthru
      _
    // Predicated region
    $region34: #{lenet5_forward.1} parent=1 // pred_check
      _
    $region35: #{lenet5_forward.1} parent=1 // pred_check_branch
      %41 = sbr.rel (0) target = $region37
    $region36: #{lenet5_forward.1} parent=1 // pred_region
      _
    $region37: #{lenet5_forward.1} parent=1 // pred_fallthru
      _
    // Predicated region
    $region38: #{lenet5_forward.1} parent=1 // pred_check
      _
    $region39: #{lenet5_forward.1} parent=1 // pred_check_branch
      %43 = sbr.rel (0) target = $region41
    $region40: #{lenet5_forward.1} parent=1 // pred_region
      _
    $region41: #{lenet5_forward.1} parent=1 // pred_fallthru
      _
    // Predicated region
    $region42: #{lenet5_forward.1} parent=1 // pred_check
      _
    $region43: #{lenet5_forward.1} parent=1 // pred_check_branch
      %45 = sbr.rel (0) target = $region45
    $region44: #{lenet5_forward.1} parent=1 // pred_region
      _
    $region45: #{lenet5_forward.1} parent=1 // pred_fallthru
      _
    // Predicated region
    $region46: #{lenet5_forward.1} parent=1 // pred_check
      _
    $region47: #{lenet5_forward.1} parent=1 // pred_check_branch
      %47 = sbr.rel (0) target = $region49
    $region48: #{lenet5_forward.1} parent=1 // pred_region
      _
    $region49: #{lenet5_forward.1} parent=1 // pred_fallthru
      _
    // Predicated region
    $region50: #{lenet5_forward.1} parent=1 // pred_check
      _
    $region51: #{lenet5_forward.1} parent=1 // pred_check_branch
      %49 = sbr.rel (0) target = $region53
    $region52: #{lenet5_forward.1} parent=1 // pred_region
      _
    $region53: #{lenet5_forward.1} parent=1 // pred_fallthru
      _
    // Predicated region
    $region54: #{lenet5_forward.1} parent=1 // pred_check
      _
    $region55: #{lenet5_forward.1} parent=1 // pred_check_branch
      %51 = sbr.rel (0) target = $region57
    $region56: #{lenet5_forward.1} parent=1 // pred_region
      _
    $region57: #{lenet5_forward.1} parent=1 // pred_fallthru
      _
    // Predicated region
    $region58: #{lenet5_forward.1} parent=1 // pred_check
      _
    $region59: #{lenet5_forward.1} parent=1 // pred_check_branch
      %53 = sbr.rel (0) target = $region61
    $region60: #{lenet5_forward.1} parent=1 // pred_region
      _
    $region61: #{lenet5_forward.1} parent=1 // pred_fallthru
      _
    %v54 = vld [vmem:[%s0] sm:$0xff]
    %v55 = vld [vmem:[%s0 + $0x8] sm:$0xff]
    %v56 = vld [vmem:[%s0 + $0x10] sm:$0xff]
    %v57 = vld [vmem:[%s0 + $0x18] sm:$0xff]
    %v58 = vld [vmem:[%s0 + $0x20] sm:$0xff]
    %v59 = vld [vmem:[%s0 + $0x28] sm:$0xff]
    %v60 = vld [vmem:[%s0 + $0x30] sm:$0xff]
    %v61 = vld [vmem:[%s0 + $0x38] sm:$0xff]
    %v70 = vcombine.high %v54, %v54
    %v71 = vcombine.high %v55, %v55
    %v72 = vcombine.high %v56, %v56
    %v73 = vcombine.high %v58, %v58
    %v74 = vcombine.high %v59, %v59
    %v75 = vcombine.high %v60, %v60
    %v76 = vld [vmem:[%s1] sm:$0xff]
    %v77 = vld [vmem:[%s1 + $0x8] sm:$0xff]
    %v78 = vld [vmem:[%s1 + $0x10] sm:$0xff]
    %v79 = vld [vmem:[%s1 + $0x18] sm:$0xff]
    %v80 = vld [vmem:[%s1 + $0x20] sm:$0xff]
    %v81 = vld [vmem:[%s1 + $0x28] sm:$0xff]
    %v82 = vld [vmem:[%s1 + $0x30] sm:$0xff]
    %v83 = vld [vmem:[%s1 + $0x38] sm:$0xff]
    %v84 = vcombine.high %v57, %v57
    %v85 = vcombine.high %v61, %v61
    %vm86 = vcmask 1042432
    %vm87 = vcmask 1046532
    %vm88 = vmor %vm86, %vm87
    %v89 = vrot.slane %v54, 5
    %v90 = vrot.slane %v89, 4
    %v91 = vrot.slane %v70, 5
    %v92 = vsel %vm88, %v90, %v91
    %v93 = vrot.slane %v91, 4
    %v94 = vrot.slane %v55, 5
    %v95 = vsel %vm88, %v93, %v94
    %v96 = vrot.slane %v94, 4
    %v97 = vrot.slane %v71, 5
    %v98 = vsel %vm88, %v96, %v97
    %v99 = vrot.slane %v97, 4
    %v100 = vrot.slane %v56, 5
    %v101 = vsel %vm88, %v99, %v100
    %v102 = vrot.slane %v100, 4
    %v103 = vrot.slane %v72, 5
    %v104 = vsel %vm88, %v102, %v103
    %v105 = vrot.slane %v103, 4
    %v106 = vrot.slane %v57, 5
    %v107 = vsel %vm88, %v105, %v106
    %v108 = vrot.slane %v106, 4
    %v109 = vrot.slane %v84, 5
    %v110 = vsel %vm88, %v108, %v109
    %v111 = vrot.slane %v58, 5
    %v112 = vrot.slane %v111, 4
    %v113 = vrot.slane %v73, 5
    %v114 = vsel %vm88, %v112, %v113
    %v115 = vrot.slane %v113, 4
    %v116 = vrot.slane %v59, 5
    %v117 = vsel %vm88, %v115, %v116
    %v118 = vrot.slane %v116, 4
    %v119 = vrot.slane %v74, 5
    %v120 = vsel %vm88, %v118, %v119
    %v121 = vrot.slane %v119, 4
    %v122 = vrot.slane %v60, 5
    %v123 = vsel %vm88, %v121, %v122
    %v124 = vrot.slane %v122, 4
    %v125 = vrot.slane %v75, 5
    %v126 = vsel %vm88, %v124, %v125
    %v127 = vrot.slane %v125, 4
    %v128 = vrot.slane %v61, 5
    %v129 = vsel %vm88, %v127, %v128
    %v130 = vrot.slane %v128, 4
    %v131 = vrot.slane %v85, 5
    %v132 = vsel %vm88, %v130, %v131
    %s133 = scalar_lea.vmem %s1, 64
    %v134 = vld [vmem:[%s133] sm:$0xff]
    %v135 = vld [vmem:[%s133 + $0x8] sm:$0xff]
    %v136 = vld [vmem:[%s133 + $0x10] sm:$0xff]
    %v137 = vld [vmem:[%s133 + $0x18] sm:$0xff]
    %v138 = vld [vmem:[%s133 + $0x20] sm:$0xff]
    %v139 = vld [vmem:[%s133 + $0x28] sm:$0xff]
    %v140 = vld [vmem:[%s133 + $0x30] sm:$0xff]
    %v141 = vld [vmem:[%s133 + $0x38] sm:$0xff]
    %v142 = vcombine.low %v92, %v95
    %v143 = vcombine.low %v98, %v101
    %v144 = vcombine.low %v104, %v107
    %v145 = vcombine.low %v110, %v114
    %v146 = vcombine.low %v117, %v120
    %v147 = vcombine.low %v123, %v126
    %v148 = vcombine.low %v129, %v132
    %vm149 = vcmask 261120
    %v150 = vsel %vm149, %v142, 0
    %v152 = vsel %vm149, %v143, 0
    %v154 = vsel %vm149, %v144, 0
    %v156 = vsel %vm149, %v145, 0
    %v158 = vsel %vm149, %v146, 0
    %v160 = vsel %vm149, %v147, 0
    %v162 = vsel %vm149, %v148, 0
    %164 = vmatprep.subr.mxu0 0.0
    %165 = vmatpush1.msra.mxu0 0.0
    %166 = vmatprep.subr.mxu0 0.0
    %167 = vmatpush1.msra.mxu0 0.0
    %168 = vmatprep.subr.mxu0 0.0
    %169 = vmatpush1.msra.mxu0 0.0
    %170 = vmatprep.subr.mxu0 0.0
    %171 = vmatpush1.msra.mxu0 0.0
    %172 = vmatprep.subr.mxu0 0.0
    %173 = vmatpush1.msra.mxu0 0.0
    %174 = vmatprep.subr.mxu0 0.0
    %175 = vmatpush1.msra.mxu0 0.0
    %176 = vmatprep.subr.mxu0 0.0
    %177 = vmatpush1.msra.mxu0 0.0
    %178 = vmatprep.subr.mxu0 0.0
    %179 = vmatpush1.msra.mxu0 0.0
    %180 = vmatprep.subr.mxu0 0.0
    %181 = vmatpush1.msra.mxu0 0.0
    %182 = vmatprep.subr.mxu0 0.0
    %183 = vmatpush1.msra.mxu0 0.0
    %184 = vmatprep.subr.mxu0 0.0
    %185 = vmatpush1.msra.mxu0 0.0
    %186 = vmatprep.subr.mxu0 0.0
    %187 = vmatpush1.msra.mxu0 0.0
    %188 = vmatprep.subr.mxu0 %v141
    %189 = vmatpush1.msra.mxu0 %v140
    %190 = vmatprep.subr.mxu0 %v139
    %191 = vmatpush1.msra.mxu0 %v138
    %192 = vmatprep.subr.mxu0 %v137
    %193 = vmatpush1.msra.mxu0 %v136
    %194 = vmatprep.subr.mxu0 %v135
    %195 = vmatpush1.msra.mxu0 %v134
    %196 = vmatprep.subr.mxu0 0.0
    %197 = vmatpush2.msra.mxu0 0.0
    %198 = vmatprep.subr.mxu0 0.0
    %199 = vmatpush2.msra.mxu0 0.0
    %200 = vmatprep.subr.mxu0 0.0
    %201 = vmatpush2.msra.mxu0 0.0
    %202 = vmatprep.subr.mxu0 0.0
    %203 = vmatpush2.msra.mxu0 0.0
    %204 = vmatprep.subr.mxu0 0.0
    %205 = vmatpush2.msra.mxu0 0.0
    %206 = vmatprep.subr.mxu0 0.0
    %207 = vmatpush2.msra.mxu0 0.0
    %208 = vmatprep.subr.mxu0 0.0
    %209 = vmatpush2.msra.mxu0 0.0
    %210 = vmatprep.subr.mxu0 0.0
    %211 = vmatpush2.msra.mxu0 0.0
    %212 = vmatprep.subr.mxu0 0.0
    %213 = vmatpush2.msra.mxu0 0.0
    %214 = vmatprep.subr.mxu0 0.0
    %215 = vmatpush2.msra.mxu0 0.0
    %216 = vmatprep.subr.mxu0 0.0
    %217 = vmatpush2.msra.mxu0 0.0
    %218 = vmatprep.subr.mxu0 0.0
    %219 = vmatpush2.msra.mxu0 0.0
    %220 = vmatprep.subr.mxu0 0.0
    %221 = vmatpush2.msra.mxu0 0.0
    %222 = vmatprep.subr.mxu0 0.0
    %223 = vmatpush2.msra.mxu0 0.0
    %224 = vmatprep.subr.mxu0 0.0
    %225 = vmatpush2.msra.mxu0 0.0
    %226 = vmatprep.subr.mxu0 0.0
    %227 = vmatpush2.msra.mxu0 0.0
    %228 = vmatprep.mubr.f32.mxu0 0.0
    %229 = vmatmul.mubr.f32.gmra.mxu0 %v150
    %v230 = vpop.f32.mrf.mxu0
    %v231 = vadd.f32 0.0, %v230
    %v232 = vpop.f32.mrf.mxu0
    %v233 = vadd.f32 0.0, %v232
    %234 = vmatprep.mubr.f32.mxu0 0.0
    %235 = vmatmul.mubr.f32.gmra.mxu0 %v152
    %v236 = vpop.f32.mrf.mxu0
    %v237 = vadd.f32 0.0, %v236
    %v238 = vpop.f32.mrf.mxu0
    %v239 = vadd.f32 0.0, %v238
    %240 = vmatprep.mubr.f32.mxu0 0.0
    %241 = vmatmul.mubr.f32.gmra.mxu0 %v154
    %v242 = vpop.f32.mrf.mxu0
    %v243 = vadd.f32 0.0, %v242
    %v244 = vpop.f32.mrf.mxu0
    %v245 = vadd.f32 0.0, %v244
    %246 = vmatprep.mubr.f32.mxu0 0.0
    %247 = vmatmul.mubr.f32.gmra.mxu0 %v156
    %v248 = vpop.f32.mrf.mxu0
    %v249 = vadd.f32 0.0, %v248
    %v250 = vpop.f32.mrf.mxu0
    %v251 = vadd.f32 0.0, %v250
    %252 = vmatprep.mubr.f32.mxu0 0.0
    %253 = vmatmul.mubr.f32.gmra.mxu0 %v158
    %v254 = vpop.f32.mrf.mxu0
    %v255 = vadd.f32 0.0, %v254
    %v256 = vpop.f32.mrf.mxu0
    %v257 = vadd.f32 0.0, %v256
    %258 = vmatprep.mubr.f32.mxu0 0.0
    %259 = vmatmul.mubr.f32.gmra.mxu0 %v160
    %v260 = vpop.f32.mrf.mxu0
    %v261 = vadd.f32 0.0, %v260
    %v262 = vpop.f32.mrf.mxu0
    %v263 = vadd.f32 0.0, %v262
    %264 = vmatprep.mubr.f32.mxu0 0.0
    %265 = vmatmul.mubr.f32.gmra.mxu0 %v162
    %v266 = vpop.f32.mrf.mxu0
    %v267 = vadd.f32 0.0, %v266
    %v268 = vpop.f32.mrf.mxu0
    %v269 = vadd.f32 0.0, %v268
    %270 = vdwg.mxu0
    %v271 = vcombine.low %v54, %v70
    %v272 = vcombine.low %v55, %v71
    %v273 = vcombine.low %v56, %v72
    %v274 = vcombine.low %v57, %v58
    %v275 = vcombine.low %v73, %v59
    %v276 = vcombine.low %v74, %v60
    %v277 = vcombine.low %v75, %v61
    %v278 = vsel %vm149, %v271, 0
    %v280 = vsel %vm149, %v272, 0
    %v282 = vsel %vm149, %v273, 0
    %v284 = vsel %vm149, %v274, 0
    %v286 = vsel %vm149, %v275, 0
    %v288 = vsel %vm149, %v276, 0
    %v290 = vsel %vm149, %v277, 0
    %292 = vmatprep.subr.mxu0 0.0
    %293 = vmatpush1.msra.mxu0 0.0
    %294 = vmatprep.subr.mxu0 0.0
    %295 = vmatpush1.msra.mxu0 0.0
    %296 = vmatprep.subr.mxu0 0.0
    %297 = vmatpush1.msra.mxu0 0.0
    %298 = vmatprep.subr.mxu0 0.0
    %299 = vmatpush1.msra.mxu0 0.0
    %300 = vmatprep.subr.mxu0 0.0
    %301 = vmatpush1.msra.mxu0 0.0
    %302 = vmatprep.subr.mxu0 0.0
    %303 = vmatpush1.msra.mxu0 0.0
    %304 = vmatprep.subr.mxu0 0.0
    %305 = vmatpush1.msra.mxu0 0.0
    %306 = vmatprep.subr.mxu0 0.0
    %307 = vmatpush1.msra.mxu0 0.0
    %308 = vmatprep.subr.mxu0 0.0
    %309 = vmatpush1.msra.mxu0 0.0
    %310 = vmatprep.subr.mxu0 0.0
    %311 = vmatpush1.msra.mxu0 0.0
    %312 = vmatprep.subr.mxu0 0.0
    %313 = vmatpush1.msra.mxu0 0.0
    %314 = vmatprep.subr.mxu0 0.0
    %315 = vmatpush1.msra.mxu0 0.0
    %316 = vmatprep.subr.mxu0 %v83
    %317 = vmatpush1.msra.mxu0 %v82
    %318 = vmatprep.subr.mxu0 %v81
    %319 = vmatpush1.msra.mxu0 %v80
    %320 = vmatprep.subr.mxu0 %v79
    %321 = vmatpush1.msra.mxu0 %v78
    %322 = vmatprep.subr.mxu0 %v77
    %323 = vmatpush1.msra.mxu0 %v76
    %324 = vmatprep.subr.mxu0 0.0
    %325 = vmatpush2.msra.mxu0 0.0
    %326 = vmatprep.subr.mxu0 0.0
    %327 = vmatpush2.msra.mxu0 0.0
    %328 = vmatprep.subr.mxu0 0.0
    %329 = vmatpush2.msra.mxu0 0.0
    %330 = vmatprep.subr.mxu0 0.0
    %331 = vmatpush2.msra.mxu0 0.0
    %332 = vmatprep.subr.mxu0 0.0
    %333 = vmatpush2.msra.mxu0 0.0
    %334 = vmatprep.subr.mxu0 0.0
    %335 = vmatpush2.msra.mxu0 0.0
    %336 = vmatprep.subr.mxu0 0.0
    %337 = vmatpush2.msra.mxu0 0.0
    %338 = vmatprep.subr.mxu0 0.0
    %339 = vmatpush2.msra.mxu0 0.0
    %340 = vmatprep.subr.mxu0 0.0
    %341 = vmatpush2.msra.mxu0 0.0
    %342 = vmatprep.subr.mxu0 0.0
    %343 = vmatpush2.msra.mxu0 0.0
    %344 = vmatprep.subr.mxu0 0.0
    %345 = vmatpush2.msra.mxu0 0.0
    %346 = vmatprep.subr.mxu0 0.0
    %347 = vmatpush2.msra.mxu0 0.0
    %348 = vmatprep.subr.mxu0 0.0
    %349 = vmatpush2.msra.mxu0 0.0
    %350 = vmatprep.subr.mxu0 0.0
    %351 = vmatpush2.msra.mxu0 0.0
    %352 = vmatprep.subr.mxu0 0.0
    %353 = vmatpush2.msra.mxu0 0.0
    %354 = vmatprep.subr.mxu0 0.0
    %355 = vmatpush2.msra.mxu0 0.0
    %356 = vmatprep.mubr.f32.mxu0 0.0
    %357 = vmatmul.mubr.f32.gmra.mxu0 %v278
    %v358 = vpop.f32.mrf.mxu0
    %v359 = vadd.f32 %v231, %v358
    %v360 = vpop.f32.mrf.mxu0
    %v361 = vadd.f32 %v233, %v360
    %362 = vmatprep.mubr.f32.mxu0 0.0
    %363 = vmatmul.mubr.f32.gmra.mxu0 %v280
    %v364 = vpop.f32.mrf.mxu0
    %v365 = vadd.f32 %v237, %v364
    %v366 = vpop.f32.mrf.mxu0
    %v367 = vadd.f32 %v239, %v366
    %368 = vmatprep.mubr.f32.mxu0 0.0
    %369 = vmatmul.mubr.f32.gmra.mxu0 %v282
    %v370 = vpop.f32.mrf.mxu0
    %v371 = vadd.f32 %v243, %v370
    %v372 = vpop.f32.mrf.mxu0
    %v373 = vadd.f32 %v245, %v372
    %374 = vmatprep.mubr.f32.mxu0 0.0
    %375 = vmatmul.mubr.f32.gmra.mxu0 %v284
    %v376 = vpop.f32.mrf.mxu0
    %v377 = vadd.f32 %v249, %v376
    %v378 = vpop.f32.mrf.mxu0
    %v379 = vadd.f32 %v251, %v378
    %380 = vmatprep.mubr.f32.mxu0 0.0
    %381 = vmatmul.mubr.f32.gmra.mxu0 %v286
    %v382 = vpop.f32.mrf.mxu0
    %v383 = vadd.f32 %v255, %v382
    %v384 = vpop.f32.mrf.mxu0
    %v385 = vadd.f32 %v257, %v384
    %386 = vmatprep.mubr.f32.mxu0 0.0
    %387 = vmatmul.mubr.f32.gmra.mxu0 %v288
    %v388 = vpop.f32.mrf.mxu0
    %v389 = vadd.f32 %v261, %v388
    %v390 = vpop.f32.mrf.mxu0
    %v391 = vadd.f32 %v263, %v390
    %392 = vmatprep.mubr.f32.mxu0 0.0
    %393 = vmatmul.mubr.f32.gmra.mxu0 %v290
    %v394 = vpop.f32.mrf.mxu0
    %v395 = vadd.f32 %v267, %v394
    %v396 = vpop.f32.mrf.mxu0
    %v397 = vadd.f32 %v269, %v396
    %398 = vdwg.mxu0
    %vm399 = vcmask 1041408
    %vm400 = vcmask 1045508
    %vm401 = vmor %vm399, %vm400
    %v402 = vrot.slane %v54, 6
    %v403 = vrot.slane %v402, 4
    %v404 = vrot.slane %v70, 6
    %v405 = vsel %vm401, %v403, %v404
    %v406 = vrot.slane %v404, 4
    %v407 = vrot.slane %v55, 6
    %v408 = vsel %vm401, %v406, %v407
    %v409 = vrot.slane %v407, 4
    %v410 = vrot.slane %v71, 6
    %v411 = vsel %vm401, %v409, %v410
    %v412 = vrot.slane %v410, 4
    %v413 = vrot.slane %v56, 6
    %v414 = vsel %vm401, %v412, %v413
    %v415 = vrot.slane %v413, 4
    %v416 = vrot.slane %v72, 6
    %v417 = vsel %vm401, %v415, %v416
    %v418 = vrot.slane %v416, 4
    %v419 = vrot.slane %v57, 6
    %v420 = vsel %vm401, %v418, %v419
    %v421 = vrot.slane %v419, 4
    %v422 = vrot.slane %v84, 6
    %v423 = vsel %vm401, %v421, %v422
    %v424 = vrot.slane %v58, 6
    %v425 = vrot.slane %v424, 4
    %v426 = vrot.slane %v73, 6
    %v427 = vsel %vm401, %v425, %v426
    %v428 = vrot.slane %v426, 4
    %v429 = vrot.slane %v59, 6
    %v430 = vsel %vm401, %v428, %v429
    %v431 = vrot.slane %v429, 4
    %v432 = vrot.slane %v74, 6
    %v433 = vsel %vm401, %v431, %v432
    %v434 = vrot.slane %v432, 4
    %v435 = vrot.slane %v60, 6
    %v436 = vsel %vm401, %v434, %v435
    %v437 = vrot.slane %v435, 4
    %v438 = vrot.slane %v75, 6
    %v439 = vsel %vm401, %v437, %v438
    %v440 = vrot.slane %v438, 4
    %v441 = vrot.slane %v61, 6
    %v442 = vsel %vm401, %v440, %v441
    %v443 = vrot.slane %v441, 4
    %v444 = vrot.slane %v85, 6
    %v445 = vsel %vm401, %v443, %v444
    %s446 = scalar_lea.vmem %s1, 128
    %v447 = vld [vmem:[%s446] sm:$0xff]
    %v448 = vld [vmem:[%s446 + $0x8] sm:$0xff]
    %v449 = vld [vmem:[%s446 + $0x10] sm:$0xff]
    %v450 = vld [vmem:[%s446 + $0x18] sm:$0xff]
    %v451 = vld [vmem:[%s446 + $0x20] sm:$0xff]
    %v452 = vld [vmem:[%s446 + $0x28] sm:$0xff]
    %v453 = vld [vmem:[%s446 + $0x30] sm:$0xff]
    %v454 = vld [vmem:[%s446 + $0x38] sm:$0xff]
    %v455 = vcombine.low %v405, %v408
    %v456 = vcombine.low %v411, %v414
    %v457 = vcombine.low %v417, %v420
    %v458 = vcombine.low %v423, %v427
    %v459 = vcombine.low %v430, %v433
    %v460 = vcombine.low %v436, %v439
    %v461 = vcombine.low %v442, %v445
    %v462 = vsel %vm149, %v455, 0
    %v464 = vsel %vm149, %v456, 0
    %v466 = vsel %vm149, %v457, 0
    %v468 = vsel %vm149, %v458, 0
    %v470 = vsel %vm149, %v459, 0
    %v472 = vsel %vm149, %v460, 0
    %v474 = vsel %vm149, %v461, 0
    %476 = vmatprep.subr.mxu0 0.0
    %477 = vmatpush1.msra.mxu0 0.0
    %478 = vmatprep.subr.mxu0 0.0
    %479 = vmatpush1.msra.mxu0 0.0
    %480 = vmatprep.subr.mxu0 0.0
    %481 = vmatpush1.msra.mxu0 0.0
    %482 = vmatprep.subr.mxu0 0.0
    %483 = vmatpush1.msra.mxu0 0.0
    %484 = vmatprep.subr.mxu0 0.0
    %485 = vmatpush1.msra.mxu0 0.0
    %486 = vmatprep.subr.mxu0 0.0
    %487 = vmatpush1.msra.mxu0 0.0
    %488 = vmatprep.subr.mxu0 0.0
    %489 = vmatpush1.msra.mxu0 0.0
    %490 = vmatprep.subr.mxu0 0.0
    %491 = vmatpush1.msra.mxu0 0.0
    %492 = vmatprep.subr.mxu0 0.0
    %493 = vmatpush1.msra.mxu0 0.0
    %494 = vmatprep.subr.mxu0 0.0
    %495 = vmatpush1.msra.mxu0 0.0
    %496 = vmatprep.subr.mxu0 0.0
    %497 = vmatpush1.msra.mxu0 0.0
    %498 = vmatprep.subr.mxu0 0.0
    %499 = vmatpush1.msra.mxu0 0.0
    %500 = vmatprep.subr.mxu0 %v454
    %501 = vmatpush1.msra.mxu0 %v453
    %502 = vmatprep.subr.mxu0 %v452
    %503 = vmatpush1.msra.mxu0 %v451
    %504 = vmatprep.subr.mxu0 %v450
    %505 = vmatpush1.msra.mxu0 %v449
    %506 = vmatprep.subr.mxu0 %v448
    %507 = vmatpush1.msra.mxu0 %v447
    %508 = vmatprep.subr.mxu0 0.0
    %509 = vmatpush2.msra.mxu0 0.0
    %510 = vmatprep.subr.mxu0 0.0
    %511 = vmatpush2.msra.mxu0 0.0
    %512 = vmatprep.subr.mxu0 0.0
    %513 = vmatpush2.msra.mxu0 0.0
    %514 = vmatprep.subr.mxu0 0.0
    %515 = vmatpush2.msra.mxu0 0.0
    %516 = vmatprep.subr.mxu0 0.0
    %517 = vmatpush2.msra.mxu0 0.0
    %518 = vmatprep.subr.mxu0 0.0
    %519 = vmatpush2.msra.mxu0 0.0
    %520 = vmatprep.subr.mxu0 0.0
    %521 = vmatpush2.msra.mxu0 0.0
    %522 = vmatprep.subr.mxu0 0.0
    %523 = vmatpush2.msra.mxu0 0.0
    %524 = vmatprep.subr.mxu0 0.0
    %525 = vmatpush2.msra.mxu0 0.0
    %526 = vmatprep.subr.mxu0 0.0
    %527 = vmatpush2.msra.mxu0 0.0
    %528 = vmatprep.subr.mxu0 0.0
    %529 = vmatpush2.msra.mxu0 0.0
    %530 = vmatprep.subr.mxu0 0.0
    %531 = vmatpush2.msra.mxu0 0.0
    %532 = vmatprep.subr.mxu0 0.0
    %533 = vmatpush2.msra.mxu0 0.0
    %534 = vmatprep.subr.mxu0 0.0
    %535 = vmatpush2.msra.mxu0 0.0
    %536 = vmatprep.subr.mxu0 0.0
    %537 = vmatpush2.msra.mxu0 0.0
    %538 = vmatprep.subr.mxu0 0.0
    %539 = vmatpush2.msra.mxu0 0.0
    %540 = vmatprep.mubr.f32.mxu0 0.0
    %541 = vmatmul.mubr.f32.gmra.mxu0 %v462
    %v542 = vpop.f32.mrf.mxu0
    %v543 = vadd.f32 0.0, %v542
    %v544 = vpop.f32.mrf.mxu0
    %v545 = vadd.f32 0.0, %v544
    %546 = vmatprep.mubr.f32.mxu0 0.0
    %547 = vmatmul.mubr.f32.gmra.mxu0 %v464
    %v548 = vpop.f32.mrf.mxu0
    %v549 = vadd.f32 0.0, %v548
    %v550 = vpop.f32.mrf.mxu0
    %v551 = vadd.f32 0.0, %v550
    %552 = vmatprep.mubr.f32.mxu0 0.0
    %553 = vmatmul.mubr.f32.gmra.mxu0 %v466
    %v554 = vpop.f32.mrf.mxu0
    %v555 = vadd.f32 0.0, %v554
    %v556 = vpop.f32.mrf.mxu0
    %v557 = vadd.f32 0.0, %v556
    %558 = vmatprep.mubr.f32.mxu0 0.0
    %559 = vmatmul.mubr.f32.gmra.mxu0 %v468
    %v560 = vpop.f32.mrf.mxu0
    %v561 = vadd.f32 0.0, %v560
    %v562 = vpop.f32.mrf.mxu0
    %v563 = vadd.f32 0.0, %v562
    %564 = vmatprep.mubr.f32.mxu0 0.0
    %565 = vmatmul.mubr.f32.gmra.mxu0 %v470
    %v566 = vpop.f32.mrf.mxu0
    %v567 = vadd.f32 0.0, %v566
    %v568 = vpop.f32.mrf.mxu0
    %v569 = vadd.f32 0.0, %v568
    %570 = vmatprep.mubr.f32.mxu0 0.0
    %571 = vmatmul.mubr.f32.gmra.mxu0 %v472
    %v572 = vpop.f32.mrf.mxu0
    %v573 = vadd.f32 0.0, %v572
    %v574 = vpop.f32.mrf.mxu0
    %v575 = vadd.f32 0.0, %v574
    %576 = vmatprep.mubr.f32.mxu0 0.0
    %577 = vmatmul.mubr.f32.gmra.mxu0 %v474
    %v578 = vpop.f32.mrf.mxu0
    %v579 = vadd.f32 0.0, %v578
    %v580 = vpop.f32.mrf.mxu0
    %v581 = vadd.f32 0.0, %v580
    %582 = vdwg.mxu0
    %v583 = vadd.f32 %v359, %v543
    %v584 = vadd.f32 %v361, %v545
    %v585 = vadd.f32 %v365, %v549
    %v586 = vadd.f32 %v367, %v551
    %v587 = vadd.f32 %v371, %v555
    %v588 = vadd.f32 %v373, %v557
    %v589 = vadd.f32 %v377, %v561
    %v590 = vadd.f32 %v379, %v563
    %v591 = vadd.f32 %v383, %v567
    %v592 = vadd.f32 %v385, %v569
    %v593 = vadd.f32 %v389, %v573
    %v594 = vadd.f32 %v391, %v575
    %v595 = vadd.f32 %v395, %v579
    %v596 = vadd.f32 %v397, %v581
    %vm597 = vcmask 1040384
    %vm598 = vcmask 1044484
    %vm599 = vmor %vm597, %vm598
    %v600 = vrot.slane %v54, 7
    %v601 = vrot.slane %v600, 4
    %v602 = vrot.slane %v70, 7
    %v603 = vsel %vm599, %v601, %v602
    %v604 = vrot.slane %v602, 4
    %v605 = vrot.slane %v55, 7
    %v606 = vsel %vm599, %v604, %v605
    %v607 = vrot.slane %v605, 4
    %v608 = vrot.slane %v71, 7
    %v609 = vsel %vm599, %v607, %v608
    %v610 = vrot.slane %v608, 4
    %v611 = vrot.slane %v56, 7
    %v612 = vsel %vm599, %v610, %v611
    %v613 = vrot.slane %v611, 4
    %v614 = vrot.slane %v72, 7
    %v615 = vsel %vm599, %v613, %v614
    %v616 = vrot.slane %v614, 4
    %v617 = vrot.slane %v57, 7
    %v618 = vsel %vm599, %v616, %v617
    %v619 = vrot.slane %v617, 4
    %v620 = vrot.slane %v84, 7
    %v621 = vsel %vm599, %v619, %v620
    %v622 = vrot.slane %v58, 7
    %v623 = vrot.slane %v622, 4
    %v624 = vrot.slane %v73, 7
    %v625 = vsel %vm599, %v623, %v624
    %v626 = vrot.slane %v624, 4
    %v627 = vrot.slane %v59, 7
    %v628 = vsel %vm599, %v626, %v627
    %v629 = vrot.slane %v627, 4
    %v630 = vrot.slane %v74, 7
    %v631 = vsel %vm599, %v629, %v630
    %v632 = vrot.slane %v630, 4
    %v633 = vrot.slane %v60, 7
    %v634 = vsel %vm599, %v632, %v633
    %v635 = vrot.slane %v633, 4
    %v636 = vrot.slane %v75, 7
    %v637 = vsel %vm599, %v635, %v636
    %v638 = vrot.slane %v636, 4
    %v639 = vrot.slane %v61, 7
    %v640 = vsel %vm599, %v638, %v639
    %v641 = vrot.slane %v639, 4
    %v642 = vrot.slane %v85, 7
    %v643 = vsel %vm599, %v641, %v642
    %s644 = scalar_lea.vmem %s1, 192
    %v645 = vld [vmem:[%s644] sm:$0xff]
    %v646 = vld [vmem:[%s644 + $0x8] sm:$0xff]
    %v647 = vld [vmem:[%s644 + $0x10] sm:$0xff]
    %v648 = vld [vmem:[%s644 + $0x18] sm:$0xff]
    %v649 = vld [vmem:[%s644 + $0x20] sm:$0xff]
    %v650 = vld [vmem:[%s644 + $0x28] sm:$0xff]
    %v651 = vld [vmem:[%s644 + $0x30] sm:$0xff]
    %v652 = vld [vmem:[%s644 + $0x38] sm:$0xff]
    %v653 = vcombine.low %v603, %v606
    %v654 = vcombine.low %v609, %v612
    %v655 = vcombine.low %v615, %v618
    %v656 = vcombine.low %v621, %v625
    %v657 = vcombine.low %v628, %v631
    %v658 = vcombine.low %v634, %v637
    %v659 = vcombine.low %v640, %v643
    %v660 = vsel %vm149, %v653, 0
    %v662 = vsel %vm149, %v654, 0
    %v664 = vsel %vm149, %v655, 0
    %v666 = vsel %vm149, %v656, 0
    %v668 = vsel %vm149, %v657, 0
    %v670 = vsel %vm149, %v658, 0
    %v672 = vsel %vm149, %v659, 0
    %674 = vmatprep.subr.mxu0 0.0
    %675 = vmatpush1.msra.mxu0 0.0
    %676 = vmatprep.subr.mxu0 0.0
    %677 = vmatpush1.msra.mxu0 0.0
    %678 = vmatprep.subr.mxu0 0.0
    %679 = vmatpush1.msra.mxu0 0.0
    %680 = vmatprep.subr.mxu0 0.0
    %681 = vmatpush1.msra.mxu0 0.0
    %682 = vmatprep.subr.mxu0 0.0
    %683 = vmatpush1.msra.mxu0 0.0
    %684 = vmatprep.subr.mxu0 0.0
    %685 = vmatpush1.msra.mxu0 0.0
    %686 = vmatprep.subr.mxu0 0.0
    %687 = vmatpush1.msra.mxu0 0.0
    %688 = vmatprep.subr.mxu0 0.0
    %689 = vmatpush1.msra.mxu0 0.0
    %690 = vmatprep.subr.mxu0 0.0
    %691 = vmatpush1.msra.mxu0 0.0
    %692 = vmatprep.subr.mxu0 0.0
    %693 = vmatpush1.msra.mxu0 0.0
    %694 = vmatprep.subr.mxu0 0.0
    %695 = vmatpush1.msra.mxu0 0.0
    %696 = vmatprep.subr.mxu0 0.0
    %697 = vmatpush1.msra.mxu0 0.0
    %698 = vmatprep.subr.mxu0 %v652
    %699 = vmatpush1.msra.mxu0 %v651
    %700 = vmatprep.subr.mxu0 %v650
    %701 = vmatpush1.msra.mxu0 %v649
    %702 = vmatprep.subr.mxu0 %v648
    %703 = vmatpush1.msra.mxu0 %v647
    %704 = vmatprep.subr.mxu0 %v646
    %705 = vmatpush1.msra.mxu0 %v645
    %706 = vmatprep.subr.mxu0 0.0
    %707 = vmatpush2.msra.mxu0 0.0
    %708 = vmatprep.subr.mxu0 0.0
    %709 = vmatpush2.msra.mxu0 0.0
    %710 = vmatprep.subr.mxu0 0.0
    %711 = vmatpush2.msra.mxu0 0.0
    %712 = vmatprep.subr.mxu0 0.0
    %713 = vmatpush2.msra.mxu0 0.0
    %714 = vmatprep.subr.mxu0 0.0
    %715 = vmatpush2.msra.mxu0 0.0
    %716 = vmatprep.subr.mxu0 0.0
    %717 = vmatpush2.msra.mxu0 0.0
    %718 = vmatprep.subr.mxu0 0.0
    %719 = vmatpush2.msra.mxu0 0.0
    %720 = vmatprep.subr.mxu0 0.0
    %721 = vmatpush2.msra.mxu0 0.0
    %722 = vmatprep.subr.mxu0 0.0
    %723 = vmatpush2.msra.mxu0 0.0
    %724 = vmatprep.subr.mxu0 0.0
    %725 = vmatpush2.msra.mxu0 0.0
    %726 = vmatprep.subr.mxu0 0.0
    %727 = vmatpush2.msra.mxu0 0.0
    %728 = vmatprep.subr.mxu0 0.0
    %729 = vmatpush2.msra.mxu0 0.0
    %730 = vmatprep.subr.mxu0 0.0
    %731 = vmatpush2.msra.mxu0 0.0
    %732 = vmatprep.subr.mxu0 0.0
    %733 = vmatpush2.msra.mxu0 0.0
    %734 = vmatprep.subr.mxu0 0.0
    %735 = vmatpush2.msra.mxu0 0.0
    %736 = vmatprep.subr.mxu0 0.0
    %737 = vmatpush2.msra.mxu0 0.0
    %738 = vmatprep.mubr.f32.mxu0 0.0
    %739 = vmatmul.mubr.f32.gmra.mxu0 %v660
    %v740 = vpop.f32.mrf.mxu0
    %v741 = vadd.f32 0.0, %v740
    %v742 = vpop.f32.mrf.mxu0
    %v743 = vadd.f32 0.0, %v742
    %744 = vmatprep.mubr.f32.mxu0 0.0
    %745 = vmatmul.mubr.f32.gmra.mxu0 %v662
    %v746 = vpop.f32.mrf.mxu0
    %v747 = vadd.f32 0.0, %v746
    %v748 = vpop.f32.mrf.mxu0
    %v749 = vadd.f32 0.0, %v748
    %750 = vmatprep.mubr.f32.mxu0 0.0
    %751 = vmatmul.mubr.f32.gmra.mxu0 %v664
    %v752 = vpop.f32.mrf.mxu0
    %v753 = vadd.f32 0.0, %v752
    %v754 = vpop.f32.mrf.mxu0
    %v755 = vadd.f32 0.0, %v754
    %756 = vmatprep.mubr.f32.mxu0 0.0
    %757 = vmatmul.mubr.f32.gmra.mxu0 %v666
    %v758 = vpop.f32.mrf.mxu0
    %v759 = vadd.f32 0.0, %v758
    %v760 = vpop.f32.mrf.mxu0
    %v761 = vadd.f32 0.0, %v760
    %762 = vmatprep.mubr.f32.mxu0 0.0
    %763 = vmatmul.mubr.f32.gmra.mxu0 %v668
    %v764 = vpop.f32.mrf.mxu0
    %v765 = vadd.f32 0.0, %v764
    %v766 = vpop.f32.mrf.mxu0
    %v767 = vadd.f32 0.0, %v766
    %768 = vmatprep.mubr.f32.mxu0 0.0
    %769 = vmatmul.mubr.f32.gmra.mxu0 %v670
    %v770 = vpop.f32.mrf.mxu0
    %v771 = vadd.f32 0.0, %v770
    %v772 = vpop.f32.mrf.mxu0
    %v773 = vadd.f32 0.0, %v772
    %774 = vmatprep.mubr.f32.mxu0 0.0
    %775 = vmatmul.mubr.f32.gmra.mxu0 %v672
    %v776 = vpop.f32.mrf.mxu0
    %v777 = vadd.f32 0.0, %v776
    %v778 = vpop.f32.mrf.mxu0
    %v779 = vadd.f32 0.0, %v778
    %780 = vdwg.mxu0
    %v781 = vadd.f32 %v583, %v741
    %v782 = vadd.f32 %v584, %v743
    %v783 = vadd.f32 %v585, %v747
    %v784 = vadd.f32 %v586, %v749
    %v785 = vadd.f32 %v587, %v753
    %v786 = vadd.f32 %v588, %v755
    %v787 = vadd.f32 %v589, %v759
    %v788 = vadd.f32 %v590, %v761
    %v789 = vadd.f32 %v591, %v765
    %v790 = vadd.f32 %v592, %v767
    %v791 = vadd.f32 %v593, %v771
    %v792 = vadd.f32 %v594, %v773
    %v793 = vadd.f32 %v595, %v777
    %v794 = vadd.f32 %v596, %v779
    %s795 = scalar_lea.vmem %s1, 256
    %v796 = vld [vmem:[%s795] sm:$0xff]
    %v797 = vld [vmem:[%s795 + $0x8] sm:$0xff]
    %v798 = vld [vmem:[%s795 + $0x10] sm:$0xff]
    %v799 = vld [vmem:[%s795 + $0x18] sm:$0xff]
    %v800 = vld [vmem:[%s795 + $0x20] sm:$0xff]
    %v801 = vld [vmem:[%s795 + $0x28] sm:$0xff]
    %v802 = vld [vmem:[%s795 + $0x30] sm:$0xff]
    %v803 = vld [vmem:[%s795 + $0x38] sm:$0xff]
    %v804 = vcombine.low %v70, %v55
    %v805 = vcombine.low %v71, %v56
    %v806 = vcombine.low %v72, %v57
    %v807 = vcombine.low %v84, %v73
    %v808 = vcombine.low %v59, %v74
    %v809 = vcombine.low %v60, %v75
    %v810 = vcombine.low %v61, %v85
    %v811 = vsel %vm149, %v804, 0
    %v813 = vsel %vm149, %v805, 0
    %v815 = vsel %vm149, %v806, 0
    %v817 = vsel %vm149, %v807, 0
    %v819 = vsel %vm149, %v808, 0
    %v821 = vsel %vm149, %v809, 0
    %v823 = vsel %vm149, %v810, 0
    %825 = vmatprep.subr.mxu0 0.0
    %826 = vmatpush1.msra.mxu0 0.0
    %827 = vmatprep.subr.mxu0 0.0
    %828 = vmatpush1.msra.mxu0 0.0
    %829 = vmatprep.subr.mxu0 0.0
    %830 = vmatpush1.msra.mxu0 0.0
    %831 = vmatprep.subr.mxu0 0.0
    %832 = vmatpush1.msra.mxu0 0.0
    %833 = vmatprep.subr.mxu0 0.0
    %834 = vmatpush1.msra.mxu0 0.0
    %835 = vmatprep.subr.mxu0 0.0
    %836 = vmatpush1.msra.mxu0 0.0
    %837 = vmatprep.subr.mxu0 0.0
    %838 = vmatpush1.msra.mxu0 0.0
    %839 = vmatprep.subr.mxu0 0.0
    %840 = vmatpush1.msra.mxu0 0.0
    %841 = vmatprep.subr.mxu0 0.0
    %842 = vmatpush1.msra.mxu0 0.0
    %843 = vmatprep.subr.mxu0 0.0
    %844 = vmatpush1.msra.mxu0 0.0
    %845 = vmatprep.subr.mxu0 0.0
    %846 = vmatpush1.msra.mxu0 0.0
    %847 = vmatprep.subr.mxu0 0.0
    %848 = vmatpush1.msra.mxu0 0.0
    %849 = vmatprep.subr.mxu0 %v803
    %850 = vmatpush1.msra.mxu0 %v802
    %851 = vmatprep.subr.mxu0 %v801
    %852 = vmatpush1.msra.mxu0 %v800
    %853 = vmatprep.subr.mxu0 %v799
    %854 = vmatpush1.msra.mxu0 %v798
    %855 = vmatprep.subr.mxu0 %v797
    %856 = vmatpush1.msra.mxu0 %v796
    %857 = vmatprep.subr.mxu0 0.0
    %858 = vmatpush2.msra.mxu0 0.0
    %859 = vmatprep.subr.mxu0 0.0
    %860 = vmatpush2.msra.mxu0 0.0
    %861 = vmatprep.subr.mxu0 0.0
    %862 = vmatpush2.msra.mxu0 0.0
    %863 = vmatprep.subr.mxu0 0.0
    %864 = vmatpush2.msra.mxu0 0.0
    %865 = vmatprep.subr.mxu0 0.0
    %866 = vmatpush2.msra.mxu0 0.0
    %867 = vmatprep.subr.mxu0 0.0
    %868 = vmatpush2.msra.mxu0 0.0
    %869 = vmatprep.subr.mxu0 0.0
    %870 = vmatpush2.msra.mxu0 0.0
    %871 = vmatprep.subr.mxu0 0.0
    %872 = vmatpush2.msra.mxu0 0.0
    %873 = vmatprep.subr.mxu0 0.0
    %874 = vmatpush2.msra.mxu0 0.0
    %875 = vmatprep.subr.mxu0 0.0
    %876 = vmatpush2.msra.mxu0 0.0
    %877 = vmatprep.subr.mxu0 0.0
    %878 = vmatpush2.msra.mxu0 0.0
    %879 = vmatprep.subr.mxu0 0.0
    %880 = vmatpush2.msra.mxu0 0.0
    %881 = vmatprep.subr.mxu0 0.0
    %882 = vmatpush2.msra.mxu0 0.0
    %883 = vmatprep.subr.mxu0 0.0
    %884 = vmatpush2.msra.mxu0 0.0
    %885 = vmatprep.subr.mxu0 0.0
    %886 = vmatpush2.msra.mxu0 0.0
    %887 = vmatprep.subr.mxu0 0.0
    %888 = vmatpush2.msra.mxu0 0.0
    %889 = vmatprep.mubr.f32.mxu0 0.0
    %890 = vmatmul.mubr.f32.gmra.mxu0 %v811
    %v891 = vpop.f32.mrf.mxu0
    %v892 = vadd.f32 0.0, %v891
    %v893 = vpop.f32.mrf.mxu0
    %v894 = vadd.f32 0.0, %v893
    %895 = vmatprep.mubr.f32.mxu0 0.0
    %896 = vmatmul.mubr.f32.gmra.mxu0 %v813
    %v897 = vpop.f32.mrf.mxu0
    %v898 = vadd.f32 0.0, %v897
    %v899 = vpop.f32.mrf.mxu0
    %v900 = vadd.f32 0.0, %v899
    %901 = vmatprep.mubr.f32.mxu0 0.0
    %902 = vmatmul.mubr.f32.gmra.mxu0 %v815
    %v903 = vpop.f32.mrf.mxu0
    %v904 = vadd.f32 0.0, %v903
    %v905 = vpop.f32.mrf.mxu0
    %v906 = vadd.f32 0.0, %v905
    %907 = vmatprep.mubr.f32.mxu0 0.0
    %908 = vmatmul.mubr.f32.gmra.mxu0 %v817
    %v909 = vpop.f32.mrf.mxu0
    %v910 = vadd.f32 0.0, %v909
    %v911 = vpop.f32.mrf.mxu0
    %v912 = vadd.f32 0.0, %v911
    %913 = vmatprep.mubr.f32.mxu0 0.0
    %914 = vmatmul.mubr.f32.gmra.mxu0 %v819
    %v915 = vpop.f32.mrf.mxu0
    %v916 = vadd.f32 0.0, %v915
    %v917 = vpop.f32.mrf.mxu0
    %v918 = vadd.f32 0.0, %v917
    %919 = vmatprep.mubr.f32.mxu0 0.0
    %920 = vmatmul.mubr.f32.gmra.mxu0 %v821
    %v921 = vpop.f32.mrf.mxu0
    %v922 = vadd.f32 0.0, %v921
    %v923 = vpop.f32.mrf.mxu0
    %v924 = vadd.f32 0.0, %v923
    %925 = vmatprep.mubr.f32.mxu0 0.0
    %926 = vmatmul.mubr.f32.gmra.mxu0 %v823
    %v927 = vpop.f32.mrf.mxu0
    %v928 = vadd.f32 0.0, %v927
    %v929 = vpop.f32.mrf.mxu0
    %v930 = vadd.f32 0.0, %v929
    %931 = vdwg.mxu0
    %v932 = vadd.f32 %v781, %v892
    %v933 = vadd.f32 %v782, %v894
    %v934 = vadd.f32 %v783, %v898
    %v935 = vadd.f32 %v784, %v900
    %v936 = vadd.f32 %v785, %v904
    %v937 = vadd.f32 %v786, %v906
    %v938 = vadd.f32 %v787, %v910
    %v939 = vadd.f32 %v788, %v912
    %v940 = vadd.f32 %v789, %v916
    %v941 = vadd.f32 %v790, %v918
    %v942 = vadd.f32 %v791, %v922
    %v943 = vadd.f32 %v792, %v924
    %v944 = vadd.f32 %v793, %v928
    %v945 = vadd.f32 %v794, %v930
    %v946 = vld [vmem:[%s2] sm:$0x3]
    %v948 = vlaneseq
    %v949 = vshrl.u32 %v948, 7
    %v950 = vsub.s32 0, %v949
    %v951 = vrot.slane %v946, %v950
    %v952 = vlaneseq
    %v953 = vshrl.u32 %v952, 7
    %v954 = vsub.s32 1, %v953
    %v955 = vrot.slane %v946, %v954
    %v958 = vadd.f32 %v932, %v951
    %v959 = vadd.f32 %v933, %v955
    %v960 = vadd.f32 %v934, %v951
    %v961 = vadd.f32 %v935, %v955
    %v962 = vadd.f32 %v936, %v951
    %v963 = vadd.f32 %v937, %v955
    %v964 = vadd.f32 %v938, %v951
    %v965 = vadd.f32 %v939, %v955
    %v966 = vadd.f32 %v940, %v951
    %v967 = vadd.f32 %v941, %v955
    %v968 = vadd.f32 %v942, %v951
    %v969 = vadd.f32 %v943, %v955
    %v970 = vadd.f32 %v944, %v951
    %v971 = vadd.f32 %v945, %v955
    %v972 = vld [vmem:[%s3] sm:$0x1]
    %v973 = vld [vmem:[%s4] sm:$0x1]
    %v974 = vlaneseq
    %v975 = vshrl.u32 %v974, 7
    %v976 = vadd.s32 %v975, 8
    %v977 = vadd.s32 %v975, 16
    %v978 = vadd.s32 %v975, 24
    %v979 = vadd.s32 %v975, 32
    %v980 = vadd.s32 %v975, 40
    %v981 = vadd.s32 %v975, 48
    %v982 = vadd.s32 %v975, 56
    %v983 = vadd.s32 %v975, 64
    %v984 = vadd.s32 %v975, 72
    %v985 = vadd.s32 %v975, 80
    %v986 = vadd.s32 %v975, 88
    %v987 = vadd.s32 %v975, 96
    %v988 = vadd.s32 %v975, 104
    %v989 = vadd.s32 %v975, 112
    %v990 = vadd.s32 %v975, 120
    %v991 = vadd.s32 %v975, 128
    %v992 = vadd.s32 %v975, 136
    %v993 = vadd.s32 %v975, 144
    %v994 = vadd.s32 %v975, 152
    %v995 = vadd.s32 %v975, 160
    %v996 = vlaneseq
    %v997 = vand.u32 %v996, 127
    %v998 = vmul.u32 %v997, 28
    %vm999 = vcmp.ge.s32.totalorder %v975, %v998
    %vm1000 = vcmp.ge.s32.totalorder %v976, %v998
    %vm1001 = vcmp.ge.s32.totalorder %v977, %v998
    %vm1002 = vcmp.ge.s32.totalorder %v978, %v998
    %vm1003 = vcmp.ge.s32.totalorder %v979, %v998
    %vm1004 = vcmp.ge.s32.totalorder %v980, %v998
    %vm1005 = vcmp.ge.s32.totalorder %v981, %v998
    %vm1006 = vcmp.ge.s32.totalorder %v982, %v998
    %vm1007 = vcmp.ge.s32.totalorder %v983, %v998
    %vm1008 = vcmp.ge.s32.totalorder %v984, %v998
    %vm1009 = vcmp.ge.s32.totalorder %v985, %v998
    %vm1010 = vcmp.ge.s32.totalorder %v986, %v998
    %vm1011 = vcmp.ge.s32.totalorder %v987, %v998
    %vm1012 = vcmp.ge.s32.totalorder %v988, %v998
    %vm1013 = vcmp.ge.s32.totalorder %v989, %v998
    %vm1014 = vcmp.ge.s32.totalorder %v990, %v998
    %vm1015 = vcmp.ge.s32.totalorder %v991, %v998
    %vm1016 = vcmp.ge.s32.totalorder %v992, %v998
    %vm1017 = vcmp.ge.s32.totalorder %v993, %v998
    %vm1018 = vcmp.ge.s32.totalorder %v994, %v998
    %vm1019 = vcmp.ge.s32.totalorder %v995, %v998
    %v1020 = vadd.s32 %v997, 1
    %v1021 = vmul.u32 %v1020, 28
    %vm1022 = vcmp.lt.s32.totalorder %v975, %v1021
    %vm1023 = vcmp.lt.s32.totalorder %v976, %v1021
    %vm1024 = vcmp.lt.s32.totalorder %v977, %v1021
    %vm1025 = vcmp.lt.s32.totalorder %v978, %v1021
    %vm1026 = vcmp.lt.s32.totalorder %v979, %v1021
    %vm1027 = vcmp.lt.s32.totalorder %v980, %v1021
    %vm1028 = vcmp.lt.s32.totalorder %v981, %v1021
    %vm1029 = vcmp.lt.s32.totalorder %v982, %v1021
    %vm1030 = vcmp.lt.s32.totalorder %v983, %v1021
    %vm1031 = vcmp.lt.s32.totalorder %v984, %v1021
    %vm1032 = vcmp.lt.s32.totalorder %v985, %v1021
    %vm1033 = vcmp.lt.s32.totalorder %v986, %v1021
    %vm1034 = vcmp.lt.s32.totalorder %v987, %v1021
    %vm1035 = vcmp.lt.s32.totalorder %v988, %v1021
    %vm1036 = vcmp.lt.s32.totalorder %v989, %v1021
    %vm1037 = vcmp.lt.s32.totalorder %v990, %v1021
    %vm1038 = vcmp.lt.s32.totalorder %v991, %v1021
    %vm1039 = vcmp.lt.s32.totalorder %v992, %v1021
    %vm1040 = vcmp.lt.s32.totalorder %v993, %v1021
    %vm1041 = vcmp.lt.s32.totalorder %v994, %v1021
    %vm1042 = vcmp.lt.s32.totalorder %v995, %v1021
    %vm1043 = vmand %vm999, %vm1022
    %vm1044 = vmand %vm1000, %vm1023
    %vm1045 = vmand %vm1001, %vm1024
    %vm1046 = vmand %vm1002, %vm1025
    %vm1047 = vmand %vm1003, %vm1026
    %vm1048 = vmand %vm1004, %vm1027
    %vm1049 = vmand %vm1005, %vm1028
    %vm1050 = vmand %vm1006, %vm1029
    %vm1051 = vmand %vm1007, %vm1030
    %vm1052 = vmand %vm1008, %vm1031
    %vm1053 = vmand %vm1009, %vm1032
    %vm1054 = vmand %vm1010, %vm1033
    %vm1055 = vmand %vm1011, %vm1034
    %vm1056 = vmand %vm1012, %vm1035
    %vm1057 = vmand %vm1013, %vm1036
    %vm1058 = vmand %vm1014, %vm1037
    %vm1059 = vmand %vm1015, %vm1038
    %vm1060 = vmand %vm1016, %vm1039
    %vm1061 = vmand %vm1017, %vm1040
    %vm1062 = vmand %vm1018, %vm1041
    %vm1063 = vmand %vm1019, %vm1042
    %v1064 = vsel %vm1043, 1, 0
    %v1065 = vsel %vm1044, 1, 0
    %v1066 = vsel %vm1045, 1, 0
    %v1067 = vsel %vm1046, 1, 0
    %v1068 = vsel %vm1047, 1, 0
    %v1069 = vsel %vm1048, 1, 0
    %v1070 = vsel %vm1049, 1, 0
    %v1071 = vsel %vm1050, 1, 0
    %v1072 = vsel %vm1051, 1, 0
    %v1073 = vsel %vm1052, 1, 0
    %v1074 = vsel %vm1053, 1, 0
    %v1075 = vsel %vm1054, 1, 0
    %v1076 = vsel %vm1055, 1, 0
    %v1077 = vsel %vm1056, 1, 0
    %v1078 = vsel %vm1057, 1, 0
    %v1079 = vsel %vm1058, 1, 0
    %v1080 = vsel %vm1059, 1, 0
    %v1081 = vsel %vm1060, 1, 0
    %v1082 = vsel %vm1061, 1, 0
    %v1083 = vsel %vm1062, 1, 0
    %v1084 = vsel %vm1063, 1, 0
    %v1085 = vcvt.s32.f32 %v1064
    %v1086 = vcvt.s32.f32 %v1065
    %v1087 = vcvt.s32.f32 %v1066
    %v1088 = vcvt.s32.f32 %v1067
    %v1089 = vcvt.s32.f32 %v1068
    %v1090 = vcvt.s32.f32 %v1069
    %v1091 = vcvt.s32.f32 %v1070
    %v1092 = vcvt.s32.f32 %v1071
    %v1093 = vcvt.s32.f32 %v1072
    %v1094 = vcvt.s32.f32 %v1073
    %v1095 = vcvt.s32.f32 %v1074
    %v1096 = vcvt.s32.f32 %v1075
    %v1097 = vcvt.s32.f32 %v1076
    %v1098 = vcvt.s32.f32 %v1077
    %v1099 = vcvt.s32.f32 %v1078
    %v1100 = vcvt.s32.f32 %v1079
    %v1101 = vcvt.s32.f32 %v1080
    %v1102 = vcvt.s32.f32 %v1081
    %v1103 = vcvt.s32.f32 %v1082
    %v1104 = vcvt.s32.f32 %v1083
    %v1105 = vcvt.s32.f32 %v1084
    %v1106 = vadd.s32 %v997, 128
    %v1107 = vmul.u32 %v975, 28
    %vm1108 = vcmp.ge.s32.totalorder %v997, %v1107
    %vm1109 = vcmp.ge.s32.totalorder %v1106, %v1107
    %v1110 = vadd.s32 %v975, 1
    %v1111 = vmul.u32 %v1110, 28
    %vm1112 = vcmp.lt.s32.totalorder %v997, %v1111
    %vm1113 = vcmp.lt.s32.totalorder %v1106, %v1111
    %vm1114 = vmand %vm1108, %vm1112
    %vm1115 = vmand %vm1109, %vm1113
    %v1116 = vsel %vm1114, 1, 0
    %v1117 = vsel %vm1115, 1, 0
    %v1118 = vcvt.s32.f32 %v1116
    %v1119 = vcvt.s32.f32 %v1117
    %v1120 = vadd.f32 %v958, %v960
    %v1121 = vadd.f32 %v1120, %v962
    %v1122 = vadd.f32 %v1121, %v964
    %v1123 = vadd.f32 %v1122, %v966
    %v1124 = vadd.f32 %v1123, %v968
    %v1125 = vadd.f32 %v1124, %v970
    %v1126 = vrot.slane %v1125, 4
    %v1127 = vadd.f32 %v1125, %v1126
    %v1128 = vrot.slane %v1127, 2
    %v1129 = vadd.f32 %v1127, %v1128
    %v1130 = vrot.slane %v1129, 1
    %v1131 = vadd.f32 %v1129, %v1130
    %vm1132 = vcmask 326656
    %v1133 = vsel %vm1132, %v959, 0.0
    %v1134 = vsel %vm1132, %v961, 0.0
    %v1135 = vadd.f32 %v1133, %v1134
    %v1136 = vsel %vm1132, %v963, 0.0
    %v1137 = vadd.f32 %v1135, %v1136
    %v1138 = vsel %vm1132, %v965, 0.0
    %v1139 = vadd.f32 %v1137, %v1138
    %v1140 = vsel %vm1132, %v967, 0.0
    %v1141 = vadd.f32 %v1139, %v1140
    %v1142 = vsel %vm1132, %v969, 0.0
    %v1143 = vadd.f32 %v1141, %v1142
    %v1144 = vsel %vm1132, %v971, 0.0
    %v1145 = vadd.f32 %v1143, %v1144
    %v1146 = vrot.slane %v1145, 4
    %v1147 = vadd.f32 %v1145, %v1146
    %v1148 = vrot.slane %v1147, 2
    %v1149 = vadd.f32 %v1147, %v1148
    %v1150 = vrot.slane %v1149, 1
    %v1151 = vadd.f32 %v1149, %v1150
    %v1152 = vmul.f32 %v958, %v958
    %v1153 = vmul.f32 %v959, %v959
    %v1154 = vmul.f32 %v960, %v960
    %v1155 = vmul.f32 %v961, %v961
    %v1156 = vmul.f32 %v962, %v962
    %v1157 = vmul.f32 %v963, %v963
    %v1158 = vmul.f32 %v964, %v964
    %v1159 = vmul.f32 %v965, %v965
    %v1160 = vmul.f32 %v966, %v966
    %v1161 = vmul.f32 %v967, %v967
    %v1162 = vmul.f32 %v968, %v968
    %v1163 = vmul.f32 %v969, %v969
    %v1164 = vmul.f32 %v970, %v970
    %v1165 = vmul.f32 %v971, %v971
    %v1166 = vadd.f32 %v1152, %v1154
    %v1167 = vadd.f32 %v1166, %v1156
    %v1168 = vadd.f32 %v1167, %v1158
    %v1169 = vadd.f32 %v1168, %v1160
    %v1170 = vadd.f32 %v1169, %v1162
    %v1171 = vadd.f32 %v1170, %v1164
    %v1172 = vrot.slane %v1171, 4
    %v1173 = vadd.f32 %v1171, %v1172
    %v1174 = vrot.slane %v1173, 2
    %v1175 = vadd.f32 %v1173, %v1174
    %v1176 = vrot.slane %v1175, 1
    %v1177 = vadd.f32 %v1175, %v1176
    %v1178 = vsel %vm1132, %v1153, 0.0
    %v1179 = vsel %vm1132, %v1155, 0.0
    %v1180 = vadd.f32 %v1178, %v1179
    %v1181 = vsel %vm1132, %v1157, 0.0
    %v1182 = vadd.f32 %v1180, %v1181
    %v1183 = vsel %vm1132, %v1159, 0.0
    %v1184 = vadd.f32 %v1182, %v1183
    %v1185 = vsel %vm1132, %v1161, 0.0
    %v1186 = vadd.f32 %v1184, %v1185
    %v1187 = vsel %vm1132, %v1163, 0.0
    %v1188 = vadd.f32 %v1186, %v1187
    %v1189 = vsel %vm1132, %v1165, 0.0
    %v1190 = vadd.f32 %v1188, %v1189
    %v1191 = vrot.slane %v1190, 4
    %v1192 = vadd.f32 %v1190, %v1191
    %v1193 = vrot.slane %v1192, 2
    %v1194 = vadd.f32 %v1192, %v1193
    %v1195 = vrot.slane %v1194, 1
    %v1196 = vadd.f32 %v1194, %v1195
    %v1198 = vsel %vm1132, %v1151, 0
    %1200 = vmatprep.subr.mxu0 0.0
    %1201 = vmatpush1.msra.mxu0 %v1100
    %1202 = vmatprep.subr.mxu0 0.0
    %1203 = vmatpush1.msra.mxu0 %v1099
    %1204 = vmatprep.subr.mxu0 0.0
    %1205 = vmatpush1.msra.mxu0 %v1098
    %1206 = vmatprep.subr.mxu0 0.0
    %1207 = vmatpush1.msra.mxu0 %v1097
    %1208 = vmatprep.subr.mxu0 0.0
    %1209 = vmatpush1.msra.mxu0 %v1096
    %1210 = vmatprep.subr.mxu0 0.0
    %1211 = vmatpush1.msra.mxu0 %v1095
    %1212 = vmatprep.subr.mxu0 0.0
    %1213 = vmatpush1.msra.mxu0 %v1094
    %1214 = vmatprep.subr.mxu0 0.0
    %1215 = vmatpush1.msra.mxu0 %v1093
    %1216 = vmatprep.subr.mxu0 0.0
    %1217 = vmatpush1.msra.mxu0 %v1092
    %1218 = vmatprep.subr.mxu0 0.0
    %1219 = vmatpush1.msra.mxu0 %v1091
    %1220 = vmatprep.subr.mxu0 0.0
    %1221 = vmatpush1.msra.mxu0 %v1090
    %1222 = vmatprep.subr.mxu0 0.0
    %1223 = vmatpush1.msra.mxu0 %v1089
    %1224 = vmatprep.subr.mxu0 0.0
    %1225 = vmatpush1.msra.mxu0 %v1088
    %1226 = vmatprep.subr.mxu0 0.0
    %1227 = vmatpush1.msra.mxu0 %v1087
    %1228 = vmatprep.subr.mxu0 0.0
    %1229 = vmatpush1.msra.mxu0 %v1086
    %1230 = vmatprep.subr.mxu0 0.0
    %1231 = vmatpush1.msra.mxu0 %v1085
    %1232 = vmatprep.subr.mxu0 0.0
    %1233 = vmatpush2.msra.mxu0 0.0
    %1234 = vmatprep.subr.mxu0 0.0
    %1235 = vmatpush2.msra.mxu0 0.0
    %1236 = vmatprep.subr.mxu0 0.0
    %1237 = vmatpush2.msra.mxu0 0.0
    %1238 = vmatprep.subr.mxu0 0.0
    %1239 = vmatpush2.msra.mxu0 0.0
    %1240 = vmatprep.subr.mxu0 0.0
    %1241 = vmatpush2.msra.mxu0 0.0
    %1242 = vmatprep.subr.mxu0 0.0
    %1243 = vmatpush2.msra.mxu0 0.0
    %1244 = vmatprep.subr.mxu0 0.0
    %1245 = vmatpush2.msra.mxu0 0.0
    %1246 = vmatprep.subr.mxu0 0.0
    %1247 = vmatpush2.msra.mxu0 0.0
    %1248 = vmatprep.subr.mxu0 0.0
    %1249 = vmatpush2.msra.mxu0 0.0
    %1250 = vmatprep.subr.mxu0 0.0
    %1251 = vmatpush2.msra.mxu0 0.0
    %1252 = vmatprep.subr.mxu0 0.0
    %1253 = vmatpush2.msra.mxu0 0.0
    %1254 = vmatprep.subr.mxu0 0.0
    %1255 = vmatpush2.msra.mxu0 %v1105
    %1256 = vmatprep.subr.mxu0 0.0
    %1257 = vmatpush2.msra.mxu0 %v1104
    %1258 = vmatprep.subr.mxu0 0.0
    %1259 = vmatpush2.msra.mxu0 %v1103
    %1260 = vmatprep.subr.mxu0 0.0
    %1261 = vmatpush2.msra.mxu0 %v1102
    %1262 = vmatprep.subr.mxu0 0.0
    %1263 = vmatpush2.msra.mxu0 %v1101
    %1264 = vmatprep.mubr.f32.mxu0 %v1198
    %1265 = vmatmul.mubr.f32.gmra.mxu0 %v1131
    %v1266 = vpop.f32.mrf.mxu0
    %v1267 = vadd.f32 0.0, %v1266
    %v1268 = vpop.f32.mrf.mxu0
    %1269 = vdwg.mxu0
    %v1270 = vmul.f32 %v1267, 0.0006377551
    %v1272 = vsel %vm1132, %v1196, 0
    %1274 = vmatprep.subr.mxu0 0.0
    %1275 = vmatpush1.msra.mxu0 %v1100
    %1276 = vmatprep.subr.mxu0 0.0
    %1277 = vmatpush1.msra.mxu0 %v1099
    %1278 = vmatprep.subr.mxu0 0.0
    %1279 = vmatpush1.msra.mxu0 %v1098
    %1280 = vmatprep.subr.mxu0 0.0
    %1281 = vmatpush1.msra.mxu0 %v1097
    %1282 = vmatprep.subr.mxu0 0.0
    %1283 = vmatpush1.msra.mxu0 %v1096
    %1284 = vmatprep.subr.mxu0 0.0
    %1285 = vmatpush1.msra.mxu0 %v1095
    %1286 = vmatprep.subr.mxu0 0.0
    %1287 = vmatpush1.msra.mxu0 %v1094
    %1288 = vmatprep.subr.mxu0 0.0
    %1289 = vmatpush1.msra.mxu0 %v1093
    %1290 = vmatprep.subr.mxu0 0.0
    %1291 = vmatpush1.msra.mxu0 %v1092
    %1292 = vmatprep.subr.mxu0 0.0
    %1293 = vmatpush1.msra.mxu0 %v1091
    %1294 = vmatprep.subr.mxu0 0.0
    %1295 = vmatpush1.msra.mxu0 %v1090
    %1296 = vmatprep.subr.mxu0 0.0
    %1297 = vmatpush1.msra.mxu0 %v1089
    %1298 = vmatprep.subr.mxu0 0.0
    %1299 = vmatpush1.msra.mxu0 %v1088
    %1300 = vmatprep.subr.mxu0 0.0
    %1301 = vmatpush1.msra.mxu0 %v1087
    %1302 = vmatprep.subr.mxu0 0.0
    %1303 = vmatpush1.msra.mxu0 %v1086
    %1304 = vmatprep.subr.mxu0 0.0
    %1305 = vmatpush1.msra.mxu0 %v1085
    %1306 = vmatprep.subr.mxu0 0.0
    %1307 = vmatpush2.msra.mxu0 0.0
    %1308 = vmatprep.subr.mxu0 0.0
    %1309 = vmatpush2.msra.mxu0 0.0
    %1310 = vmatprep.subr.mxu0 0.0
    %1311 = vmatpush2.msra.mxu0 0.0
    %1312 = vmatprep.subr.mxu0 0.0
    %1313 = vmatpush2.msra.mxu0 0.0
    %1314 = vmatprep.subr.mxu0 0.0
    %1315 = vmatpush2.msra.mxu0 0.0
    %1316 = vmatprep.subr.mxu0 0.0
    %1317 = vmatpush2.msra.mxu0 0.0
    %1318 = vmatprep.subr.mxu0 0.0
    %1319 = vmatpush2.msra.mxu0 0.0
    %1320 = vmatprep.subr.mxu0 0.0
    %1321 = vmatpush2.msra.mxu0 0.0
    %1322 = vmatprep.subr.mxu0 0.0
    %1323 = vmatpush2.msra.mxu0 0.0
    %1324 = vmatprep.subr.mxu0 0.0
    %1325 = vmatpush2.msra.mxu0 0.0
    %1326 = vmatprep.subr.mxu0 0.0
    %1327 = vmatpush2.msra.mxu0 0.0
    %1328 = vmatprep.subr.mxu0 0.0
    %1329 = vmatpush2.msra.mxu0 %v1105
    %1330 = vmatprep.subr.mxu0 0.0
    %1331 = vmatpush2.msra.mxu0 %v1104
    %1332 = vmatprep.subr.mxu0 0.0
    %1333 = vmatpush2.msra.mxu0 %v1103
    %1334 = vmatprep.subr.mxu0 0.0
    %1335 = vmatpush2.msra.mxu0 %v1102
    %1336 = vmatprep.subr.mxu0 0.0
    %1337 = vmatpush2.msra.mxu0 %v1101
    %1338 = vmatprep.mubr.f32.mxu0 %v1272
    %1339 = vmatmul.mubr.f32.gmra.mxu0 %v1177
    %v1340 = vpop.f32.mrf.mxu0
    %v1341 = vadd.f32 0.0, %v1340
    %v1342 = vpop.f32.mrf.mxu0
    %1343 = vdwg.mxu0
    %v1344 = vmul.f32 %v1341, 0.0006377551
    %v1345 = vmul.f32 %v1270, %v1270
    %v1346 = vsub.f32 %v1344, %v1345
    %v1347 = vadd.f32 %v1346, 1e-05
    %v1348 = vrsqrt.pop %v1347
    %v1349 = vmul.f32 %v972, %v1348
    %v1350 = vmul.f32 %v1270, %v1349
    %v1351 = vsub.f32 %v973, %v1350
    %vm1352 = vcmask 48128
    %v1354 = vsel %vm1352, %v1349, 0
    %vm1356 = vcmask 1045504
    %v1358 = vsel %vm1356, %v1118, 0
    %v1361 = vsel %vm1356, %v1119, 0
    %1363 = vmatprep.subr.mxu0 0.0
    %1364 = vmatpush1.msra.mxu0 0.0
    %1365 = vmatprep.subr.mxu0 0.0
    %1366 = vmatpush1.msra.mxu0 0.0
    %1367 = vmatprep.subr.mxu0 0.0
    %1368 = vmatpush1.msra.mxu0 0.0
    %1369 = vmatprep.subr.mxu0 0.0
    %1370 = vmatpush1.msra.mxu0 0.0
    %1371 = vmatprep.subr.mxu0 0.0
    %1372 = vmatpush1.msra.mxu0 0.0
    %1373 = vmatprep.subr.mxu0 0.0
    %1374 = vmatpush1.msra.mxu0 0.0
    %1375 = vmatprep.subr.mxu0 0.0
    %1376 = vmatpush1.msra.mxu0 0.0
    %1377 = vmatprep.subr.mxu0 0.0
    %1378 = vmatpush1.msra.mxu0 0.0
    %1379 = vmatprep.subr.mxu0 0.0
    %1380 = vmatpush1.msra.mxu0 0.0
    %1381 = vmatprep.subr.mxu0 0.0
    %1382 = vmatpush1.msra.mxu0 0.0
    %1383 = vmatprep.subr.mxu0 0.0
    %1384 = vmatpush1.msra.mxu0 0.0
    %1385 = vmatprep.subr.mxu0 0.0
    %1386 = vmatpush1.msra.mxu0 0.0
    %1387 = vmatprep.subr.mxu0 0.0
    %1388 = vmatpush1.msra.mxu0 0.0
    %1389 = vmatprep.subr.mxu0 0.0
    %1390 = vmatpush1.msra.mxu0 0.0
    %1391 = vmatprep.subr.mxu0 0.0
    %1392 = vmatpush1.msra.mxu0 0.0
    %1393 = vmatprep.subr.mxu0 %v1361
    %1394 = vmatpush1.msra.mxu0 %v1358
    %1395 = vmatprep.subr.mxu0 0.0
    %1396 = vmatpush2.msra.mxu0 0.0
    %1397 = vmatprep.subr.mxu0 0.0
    %1398 = vmatpush2.msra.mxu0 0.0
    %1399 = vmatprep.subr.mxu0 0.0
    %1400 = vmatpush2.msra.mxu0 0.0
    %1401 = vmatprep.subr.mxu0 0.0
    %1402 = vmatpush2.msra.mxu0 0.0
    %1403 = vmatprep.subr.mxu0 0.0
    %1404 = vmatpush2.msra.mxu0 0.0
    %1405 = vmatprep.subr.mxu0 0.0
    %1406 = vmatpush2.msra.mxu0 0.0
    %1407 = vmatprep.subr.mxu0 0.0
    %1408 = vmatpush2.msra.mxu0 0.0
    %1409 = vmatprep.subr.mxu0 0.0
    %1410 = vmatpush2.msra.mxu0 0.0
    %1411 = vmatprep.subr.mxu0 0.0
    %1412 = vmatpush2.msra.mxu0 0.0
    %1413 = vmatprep.subr.mxu0 0.0
    %1414 = vmatpush2.msra.mxu0 0.0
    %1415 = vmatprep.subr.mxu0 0.0
    %1416 = vmatpush2.msra.mxu0 0.0
    %1417 = vmatprep.subr.mxu0 0.0
    %1418 = vmatpush2.msra.mxu0 0.0
    %1419 = vmatprep.subr.mxu0 0.0
    %1420 = vmatpush2.msra.mxu0 0.0
    %1421 = vmatprep.subr.mxu0 0.0
    %1422 = vmatpush2.msra.mxu0 0.0
    %1423 = vmatprep.subr.mxu0 0.0
    %1424 = vmatpush2.msra.mxu0 0.0
    %1425 = vmatprep.subr.mxu0 0.0
    %1426 = vmatpush2.msra.mxu0 0.0
    %1427 = vmatprep.mubr.f32.mxu0 0.0
    %1428 = vmatmul.mubr.f32.gmra.mxu0 %v1354
    %v1429 = vpop.f32.mrf.mxu0
    %v1430 = vadd.f32 0.0, %v1429
    %v1431 = vpop.f32.mrf.mxu0
    %v1432 = vadd.f32 0.0, %v1431
    %1433 = vdwg.mxu0
    %v1435 = vsel %vm1352, %v1351, 0
    %1437 = vmatprep.subr.mxu0 0.0
    %1438 = vmatpush1.msra.mxu0 0.0
    %1439 = vmatprep.subr.mxu0 0.0
    %1440 = vmatpush1.msra.mxu0 0.0
    %1441 = vmatprep.subr.mxu0 0.0
    %1442 = vmatpush1.msra.mxu0 0.0
    %1443 = vmatprep.subr.mxu0 0.0
    %1444 = vmatpush1.msra.mxu0 0.0
    %1445 = vmatprep.subr.mxu0 0.0
    %1446 = vmatpush1.msra.mxu0 0.0
    %1447 = vmatprep.subr.mxu0 0.0
    %1448 = vmatpush1.msra.mxu0 0.0
    %1449 = vmatprep.subr.mxu0 0.0
    %1450 = vmatpush1.msra.mxu0 0.0
    %1451 = vmatprep.subr.mxu0 0.0
    %1452 = vmatpush1.msra.mxu0 0.0
    %1453 = vmatprep.subr.mxu0 0.0
    %1454 = vmatpush1.msra.mxu0 0.0
    %1455 = vmatprep.subr.mxu0 0.0
    %1456 = vmatpush1.msra.mxu0 0.0
    %1457 = vmatprep.subr.mxu0 0.0
    %1458 = vmatpush1.msra.mxu0 0.0
    %1459 = vmatprep.subr.mxu0 0.0
    %1460 = vmatpush1.msra.mxu0 0.0
    %1461 = vmatprep.subr.mxu0 0.0
    %1462 = vmatpush1.msra.mxu0 0.0
    %1463 = vmatprep.subr.mxu0 0.0
    %1464 = vmatpush1.msra.mxu0 0.0
    %1465 = vmatprep.subr.mxu0 0.0
    %1466 = vmatpush1.msra.mxu0 0.0
    %1467 = vmatprep.subr.mxu0 %v1361
    %1468 = vmatpush1.msra.mxu0 %v1358
    %1469 = vmatprep.subr.mxu0 0.0
    %1470 = vmatpush2.msra.mxu0 0.0
    %1471 = vmatprep.subr.mxu0 0.0
    %1472 = vmatpush2.msra.mxu0 0.0
    %1473 = vmatprep.subr.mxu0 0.0
    %1474 = vmatpush2.msra.mxu0 0.0
    %1475 = vmatprep.subr.mxu0 0.0
    %1476 = vmatpush2.msra.mxu0 0.0
    %1477 = vmatprep.subr.mxu0 0.0
    %1478 = vmatpush2.msra.mxu0 0.0
    %1479 = vmatprep.subr.mxu0 0.0
    %1480 = vmatpush2.msra.mxu0 0.0
    %1481 = vmatprep.subr.mxu0 0.0
    %1482 = vmatpush2.msra.mxu0 0.0
    %1483 = vmatprep.subr.mxu0 0.0
    %1484 = vmatpush2.msra.mxu0 0.0
    %1485 = vmatprep.subr.mxu0 0.0
    %1486 = vmatpush2.msra.mxu0 0.0
    %1487 = vmatprep.subr.mxu0 0.0
    %1488 = vmatpush2.msra.mxu0 0.0
    %1489 = vmatprep.subr.mxu0 0.0
    %1490 = vmatpush2.msra.mxu0 0.0
    %1491 = vmatprep.subr.mxu0 0.0
    %1492 = vmatpush2.msra.mxu0 0.0
    %1493 = vmatprep.subr.mxu0 0.0
    %1494 = vmatpush2.msra.mxu0 0.0
    %1495 = vmatprep.subr.mxu0 0.0
    %1496 = vmatpush2.msra.mxu0 0.0
    %1497 = vmatprep.subr.mxu0 0.0
    %1498 = vmatpush2.msra.mxu0 0.0
    %1499 = vmatprep.subr.mxu0 0.0
    %1500 = vmatpush2.msra.mxu0 0.0
    %1501 = vmatprep.mubr.f32.mxu0 0.0
    %1502 = vmatmul.mubr.f32.gmra.mxu0 %v1435
    %v1503 = vpop.f32.mrf.mxu0
    %v1504 = vadd.f32 0.0, %v1503
    %v1505 = vpop.f32.mrf.mxu0
    %v1506 = vadd.f32 0.0, %v1505
    %1507 = vdwg.mxu0
    %v1508 = vlaneseq
    %v1509 = vshrl.u32 %v1508, 7
    %v1510 = vsub.s32 0, %v1509
    %v1511 = vrot.slane %v1430, %v1510
    %v1512 = vlaneseq
    %v1513 = vshrl.u32 %v1512, 7
    %v1514 = vsub.s32 0, %v1513
    %v1515 = vrot.slane %v1432, %v1514
    %v1516 = vmul.f32 %v958, %v1511
    %v1517 = vmul.f32 %v959, %v1515
    %v1518 = vmul.f32 %v960, %v1511
    %v1519 = vmul.f32 %v961, %v1515
    %v1520 = vmul.f32 %v962, %v1511
    %v1521 = vmul.f32 %v963, %v1515
    %v1522 = vmul.f32 %v964, %v1511
    %v1523 = vmul.f32 %v965, %v1515
    %v1524 = vmul.f32 %v966, %v1511
    %v1525 = vmul.f32 %v967, %v1515
    %v1526 = vmul.f32 %v968, %v1511
    %v1527 = vmul.f32 %v969, %v1515
    %v1528 = vmul.f32 %v970, %v1511
    %v1529 = vmul.f32 %v971, %v1515
    %v1530 = vlaneseq
    %v1531 = vshrl.u32 %v1530, 7
    %v1532 = vsub.s32 0, %v1531
    %v1533 = vrot.slane %v1504, %v1532
    %v1534 = vlaneseq
    %v1535 = vshrl.u32 %v1534, 7
    %v1536 = vsub.s32 0, %v1535
    %v1537 = vrot.slane %v1506, %v1536
    %v1538 = vadd.f32 %v1516, %v1533
    %v1539 = vadd.f32 %v1517, %v1537
    %v1540 = vadd.f32 %v1518, %v1533
    %v1541 = vadd.f32 %v1519, %v1537
    %v1542 = vadd.f32 %v1520, %v1533
    %v1543 = vadd.f32 %v1521, %v1537
    %v1544 = vadd.f32 %v1522, %v1533
    %v1545 = vadd.f32 %v1523, %v1537
    %v1546 = vadd.f32 %v1524, %v1533
    %v1547 = vadd.f32 %v1525, %v1537
    %v1548 = vadd.f32 %v1526, %v1533
    %v1549 = vadd.f32 %v1527, %v1537
    %v1550 = vadd.f32 %v1528, %v1533
    %v1551 = vadd.f32 %v1529, %v1537
    %v1552 = vmax.f32 %v1538, 0.0
    %v1553 = vmax.f32 %v1539, 0.0
    %v1554 = vmax.f32 %v1540, 0.0
    %v1555 = vmax.f32 %v1541, 0.0
    %v1556 = vmax.f32 %v1542, 0.0
    %v1557 = vmax.f32 %v1543, 0.0
    %v1558 = vmax.f32 %v1544, 0.0
    %v1559 = vmax.f32 %v1545, 0.0
    %v1560 = vmax.f32 %v1546, 0.0
    %v1561 = vmax.f32 %v1547, 0.0
    %v1562 = vmax.f32 %v1548, 0.0
    %v1563 = vmax.f32 %v1549, 0.0
    %v1564 = vmax.f32 %v1550, 0.0
    %v1565 = vmax.f32 %v1551, 0.0
    %v1580 = vcombine.low %v1552, %v1553
    %v1581 = vcombine.high %v1552, %v1553
    %v1583 = vunpack.c.l.s4 1983009808
    %v1584 = vunpack.c.0.s8 %v1583
    %v1585 = vlaneseq
    %v1586 = vshrl.u32 %v1585, 7
    %v1587 = vsub.s32 %v1584, %v1586
    %v1588 = vrot.slane %v1580, %v1587
    %v1590 = vunpack.c.l.s4 1983009808
    %v1591 = vunpack.c.0.s8 %v1590
    %v1592 = vlaneseq
    %v1593 = vshrl.u32 %v1592, 7
    %v1594 = vsub.s32 %v1591, %v1593
    %v1595 = vrot.slane %v1581, %v1594
    %v1596 = vcombine.high %v1588, %v1588
    %v1597 = vcombine.high %v1595, %v1595
    %v1598 = vcombine.low %v1554, %v1555
    %v1599 = vcombine.high %v1554, %v1555
    %v1601 = vunpack.c.l.s4 1983009808
    %v1602 = vunpack.c.0.s8 %v1601
    %v1603 = vlaneseq
    %v1604 = vshrl.u32 %v1603, 7
    %v1605 = vsub.s32 %v1602, %v1604
    %v1606 = vrot.slane %v1598, %v1605
    %v1608 = vunpack.c.l.s4 1983009808
    %v1609 = vunpack.c.0.s8 %v1608
    %v1610 = vlaneseq
    %v1611 = vshrl.u32 %v1610, 7
    %v1612 = vsub.s32 %v1609, %v1611
    %v1613 = vrot.slane %v1599, %v1612
    %v1614 = vcombine.high %v1606, %v1606
    %v1615 = vcombine.high %v1613, %v1613
    %v1616 = vcombine.low %v1556, %v1557
    %v1617 = vcombine.high %v1556, %v1557
    %v1619 = vunpack.c.l.s4 1983009808
    %v1620 = vunpack.c.0.s8 %v1619
    %v1621 = vlaneseq
    %v1622 = vshrl.u32 %v1621, 7
    %v1623 = vsub.s32 %v1620, %v1622
    %v1624 = vrot.slane %v1616, %v1623
    %v1626 = vunpack.c.l.s4 1983009808
    %v1627 = vunpack.c.0.s8 %v1626
    %v1628 = vlaneseq
    %v1629 = vshrl.u32 %v1628, 7
    %v1630 = vsub.s32 %v1627, %v1629
    %v1631 = vrot.slane %v1617, %v1630
    %v1632 = vcombine.high %v1624, %v1624
    %v1633 = vcombine.high %v1631, %v1631
    %v1634 = vcombine.low %v1558, %v1559
    %v1635 = vcombine.high %v1558, %v1559
    %v1637 = vunpack.c.l.s4 1983009808
    %v1638 = vunpack.c.0.s8 %v1637
    %v1639 = vlaneseq
    %v1640 = vshrl.u32 %v1639, 7
    %v1641 = vsub.s32 %v1638, %v1640
    %v1642 = vrot.slane %v1634, %v1641
    %v1644 = vunpack.c.l.s4 1983009808
    %v1645 = vunpack.c.0.s8 %v1644
    %v1646 = vlaneseq
    %v1647 = vshrl.u32 %v1646, 7
    %v1648 = vsub.s32 %v1645, %v1647
    %v1649 = vrot.slane %v1635, %v1648
    %v1650 = vcombine.high %v1642, %v1642
    %v1651 = vcombine.high %v1649, %v1649
    %v1652 = vcombine.low %v1560, %v1561
    %v1653 = vcombine.high %v1560, %v1561
    %v1655 = vunpack.c.l.s4 1983009808
    %v1656 = vunpack.c.0.s8 %v1655
    %v1657 = vlaneseq
    %v1658 = vshrl.u32 %v1657, 7
    %v1659 = vsub.s32 %v1656, %v1658
    %v1660 = vrot.slane %v1652, %v1659
    %v1662 = vunpack.c.l.s4 1983009808
    %v1663 = vunpack.c.0.s8 %v1662
    %v1664 = vlaneseq
    %v1665 = vshrl.u32 %v1664, 7
    %v1666 = vsub.s32 %v1663, %v1665
    %v1667 = vrot.slane %v1653, %v1666
    %v1668 = vcombine.high %v1660, %v1660
    %v1669 = vcombine.high %v1667, %v1667
    %v1670 = vcombine.low %v1562, %v1563
    %v1671 = vcombine.high %v1562, %v1563
    %v1673 = vunpack.c.l.s4 1983009808
    %v1674 = vunpack.c.0.s8 %v1673
    %v1675 = vlaneseq
    %v1676 = vshrl.u32 %v1675, 7
    %v1677 = vsub.s32 %v1674, %v1676
    %v1678 = vrot.slane %v1670, %v1677
    %v1680 = vunpack.c.l.s4 1983009808
    %v1681 = vunpack.c.0.s8 %v1680
    %v1682 = vlaneseq
    %v1683 = vshrl.u32 %v1682, 7
    %v1684 = vsub.s32 %v1681, %v1683
    %v1685 = vrot.slane %v1671, %v1684
    %v1686 = vcombine.high %v1678, %v1678
    %v1687 = vcombine.high %v1685, %v1685
    %v1688 = vcombine.low %v1564, %v1565
    %v1689 = vcombine.high %v1564, %v1565
    %v1691 = vunpack.c.l.s4 1983009808
    %v1692 = vunpack.c.0.s8 %v1691
    %v1693 = vlaneseq
    %v1694 = vshrl.u32 %v1693, 7
    %v1695 = vsub.s32 %v1692, %v1694
    %v1696 = vrot.slane %v1688, %v1695
    %v1698 = vunpack.c.l.s4 1983009808
    %v1699 = vunpack.c.0.s8 %v1698
    %v1700 = vlaneseq
    %v1701 = vshrl.u32 %v1700, 7
    %v1702 = vsub.s32 %v1699, %v1701
    %v1703 = vrot.slane %v1689, %v1702
    %v1704 = vcombine.high %v1696, %v1696
    %v1705 = vcombine.high %v1703, %v1703
    %v1707 = vunpack.c.l.s4 1983009808
    %v1708 = vunpack.c.0.s8 %v1707
    %v1709 = vlaneseq
    %v1710 = vshrl.u32 %v1709, 7
    %v1711 = vsub.s32 %v1708, %v1710
    %v1712 = vrot.slane %v1588, %v1711
    %v1713 = vcombine.high %v1712, %v1712
    %v1715 = vunpack.c.l.s4 1983009808
    %v1716 = vunpack.c.0.s8 %v1715
    %v1717 = vlaneseq
    %v1718 = vshrl.u32 %v1717, 7
    %v1719 = vsub.s32 %v1716, %v1718
    %v1720 = vrot.slane %v1596, %v1719
    %v1721 = vcombine.high %v1720, %v1720
    %v1723 = vunpack.c.l.s4 1983009808
    %v1724 = vunpack.c.0.s8 %v1723
    %v1725 = vlaneseq
    %v1726 = vshrl.u32 %v1725, 7
    %v1727 = vsub.s32 %v1724, %v1726
    %v1728 = vrot.slane %v1595, %v1727
    %v1729 = vcombine.high %v1728, %v1728
    %v1731 = vunpack.c.l.s4 1983009808
    %v1732 = vunpack.c.0.s8 %v1731
    %v1733 = vlaneseq
    %v1734 = vshrl.u32 %v1733, 7
    %v1735 = vsub.s32 %v1732, %v1734
    %v1736 = vrot.slane %v1597, %v1735
    %v1737 = vcombine.high %v1736, %v1736
    %v1739 = vunpack.c.l.s4 1983009808
    %v1740 = vunpack.c.0.s8 %v1739
    %v1741 = vlaneseq
    %v1742 = vshrl.u32 %v1741, 7
    %v1743 = vsub.s32 %v1740, %v1742
    %v1744 = vrot.slane %v1606, %v1743
    %v1745 = vcombine.high %v1744, %v1744
    %v1747 = vunpack.c.l.s4 1983009808
    %v1748 = vunpack.c.0.s8 %v1747
    %v1749 = vlaneseq
    %v1750 = vshrl.u32 %v1749, 7
    %v1751 = vsub.s32 %v1748, %v1750
    %v1752 = vrot.slane %v1614, %v1751
    %v1753 = vcombine.high %v1752, %v1752
    %v1755 = vunpack.c.l.s4 1983009808
    %v1756 = vunpack.c.0.s8 %v1755
    %v1757 = vlaneseq
    %v1758 = vshrl.u32 %v1757, 7
    %v1759 = vsub.s32 %v1756, %v1758
    %v1760 = vrot.slane %v1613, %v1759
    %v1761 = vcombine.high %v1760, %v1760
    %v1763 = vunpack.c.l.s4 1983009808
    %v1764 = vunpack.c.0.s8 %v1763
    %v1765 = vlaneseq
    %v1766 = vshrl.u32 %v1765, 7
    %v1767 = vsub.s32 %v1764, %v1766
    %v1768 = vrot.slane %v1615, %v1767
    %v1769 = vcombine.high %v1768, %v1768
    %v1771 = vunpack.c.l.s4 1983009808
    %v1772 = vunpack.c.0.s8 %v1771
    %v1773 = vlaneseq
    %v1774 = vshrl.u32 %v1773, 7
    %v1775 = vsub.s32 %v1772, %v1774
    %v1776 = vrot.slane %v1624, %v1775
    %v1777 = vcombine.high %v1776, %v1776
    %v1779 = vunpack.c.l.s4 1983009808
    %v1780 = vunpack.c.0.s8 %v1779
    %v1781 = vlaneseq
    %v1782 = vshrl.u32 %v1781, 7
    %v1783 = vsub.s32 %v1780, %v1782
    %v1784 = vrot.slane %v1632, %v1783
    %v1785 = vcombine.high %v1784, %v1784
    %v1787 = vunpack.c.l.s4 1983009808
    %v1788 = vunpack.c.0.s8 %v1787
    %v1789 = vlaneseq
    %v1790 = vshrl.u32 %v1789, 7
    %v1791 = vsub.s32 %v1788, %v1790
    %v1792 = vrot.slane %v1631, %v1791
    %v1793 = vcombine.high %v1792, %v1792
    %v1795 = vunpack.c.l.s4 1983009808
    %v1796 = vunpack.c.0.s8 %v1795
    %v1797 = vlaneseq
    %v1798 = vshrl.u32 %v1797, 7
    %v1799 = vsub.s32 %v1796, %v1798
    %v1800 = vrot.slane %v1633, %v1799
    %v1801 = vcombine.high %v1800, %v1800
    %v1803 = vunpack.c.l.s4 1983009808
    %v1804 = vunpack.c.0.s8 %v1803
    %v1805 = vlaneseq
    %v1806 = vshrl.u32 %v1805, 7
    %v1807 = vsub.s32 %v1804, %v1806
    %v1808 = vrot.slane %v1642, %v1807
    %v1809 = vcombine.high %v1808, %v1808
    %v1811 = vunpack.c.l.s4 1983009808
    %v1812 = vunpack.c.0.s8 %v1811
    %v1813 = vlaneseq
    %v1814 = vshrl.u32 %v1813, 7
    %v1815 = vsub.s32 %v1812, %v1814
    %v1816 = vrot.slane %v1650, %v1815
    %v1817 = vcombine.high %v1816, %v1816
    %v1819 = vunpack.c.l.s4 1983009808
    %v1820 = vunpack.c.0.s8 %v1819
    %v1821 = vlaneseq
    %v1822 = vshrl.u32 %v1821, 7
    %v1823 = vsub.s32 %v1820, %v1822
    %v1824 = vrot.slane %v1649, %v1823
    %v1825 = vcombine.high %v1824, %v1824
    %v1827 = vunpack.c.l.s4 1983009808
    %v1828 = vunpack.c.0.s8 %v1827
    %v1829 = vlaneseq
    %v1830 = vshrl.u32 %v1829, 7
    %v1831 = vsub.s32 %v1828, %v1830
    %v1832 = vrot.slane %v1651, %v1831
    %v1833 = vcombine.high %v1832, %v1832
    %v1835 = vunpack.c.l.s4 1983009808
    %v1836 = vunpack.c.0.s8 %v1835
    %v1837 = vlaneseq
    %v1838 = vshrl.u32 %v1837, 7
    %v1839 = vsub.s32 %v1836, %v1838
    %v1840 = vrot.slane %v1660, %v1839
    %v1841 = vcombine.high %v1840, %v1840
    %v1843 = vunpack.c.l.s4 1983009808
    %v1844 = vunpack.c.0.s8 %v1843
    %v1845 = vlaneseq
    %v1846 = vshrl.u32 %v1845, 7
    %v1847 = vsub.s32 %v1844, %v1846
    %v1848 = vrot.slane %v1668, %v1847
    %v1849 = vcombine.high %v1848, %v1848
    %v1851 = vunpack.c.l.s4 1983009808
    %v1852 = vunpack.c.0.s8 %v1851
    %v1853 = vlaneseq
    %v1854 = vshrl.u32 %v1853, 7
    %v1855 = vsub.s32 %v1852, %v1854
    %v1856 = vrot.slane %v1667, %v1855
    %v1857 = vcombine.high %v1856, %v1856
    %v1859 = vunpack.c.l.s4 1983009808
    %v1860 = vunpack.c.0.s8 %v1859
    %v1861 = vlaneseq
    %v1862 = vshrl.u32 %v1861, 7
    %v1863 = vsub.s32 %v1860, %v1862
    %v1864 = vrot.slane %v1669, %v1863
    %v1865 = vcombine.high %v1864, %v1864
    %v1867 = vunpack.c.l.s4 1983009808
    %v1868 = vunpack.c.0.s8 %v1867
    %v1869 = vlaneseq
    %v1870 = vshrl.u32 %v1869, 7
    %v1871 = vsub.s32 %v1868, %v1870
    %v1872 = vrot.slane %v1678, %v1871
    %v1873 = vcombine.high %v1872, %v1872
    %v1875 = vunpack.c.l.s4 1983009808
    %v1876 = vunpack.c.0.s8 %v1875
    %v1877 = vlaneseq
    %v1878 = vshrl.u32 %v1877, 7
    %v1879 = vsub.s32 %v1876, %v1878
    %v1880 = vrot.slane %v1686, %v1879
    %v1881 = vcombine.high %v1880, %v1880
    %v1883 = vunpack.c.l.s4 1983009808
    %v1884 = vunpack.c.0.s8 %v1883
    %v1885 = vlaneseq
    %v1886 = vshrl.u32 %v1885, 7
    %v1887 = vsub.s32 %v1884, %v1886
    %v1888 = vrot.slane %v1685, %v1887
    %v1889 = vcombine.high %v1888, %v1888
    %v1891 = vunpack.c.l.s4 1983009808
    %v1892 = vunpack.c.0.s8 %v1891
    %v1893 = vlaneseq
    %v1894 = vshrl.u32 %v1893, 7
    %v1895 = vsub.s32 %v1892, %v1894
    %v1896 = vrot.slane %v1687, %v1895
    %v1897 = vcombine.high %v1896, %v1896
    %v1899 = vunpack.c.l.s4 1983009808
    %v1900 = vunpack.c.0.s8 %v1899
    %v1901 = vlaneseq
    %v1902 = vshrl.u32 %v1901, 7
    %v1903 = vsub.s32 %v1900, %v1902
    %v1904 = vrot.slane %v1696, %v1903
    %v1905 = vcombine.high %v1904, %v1904
    %v1907 = vunpack.c.l.s4 1983009808
    %v1908 = vunpack.c.0.s8 %v1907
    %v1909 = vlaneseq
    %v1910 = vshrl.u32 %v1909, 7
    %v1911 = vsub.s32 %v1908, %v1910
    %v1912 = vrot.slane %v1704, %v1911
    %v1913 = vcombine.high %v1912, %v1912
    %v1915 = vunpack.c.l.s4 1983009808
    %v1916 = vunpack.c.0.s8 %v1915
    %v1917 = vlaneseq
    %v1918 = vshrl.u32 %v1917, 7
    %v1919 = vsub.s32 %v1916, %v1918
    %v1920 = vrot.slane %v1703, %v1919
    %v1921 = vcombine.high %v1920, %v1920
    %v1923 = vunpack.c.l.s4 1983009808
    %v1924 = vunpack.c.0.s8 %v1923
    %v1925 = vlaneseq
    %v1926 = vshrl.u32 %v1925, 7
    %v1927 = vsub.s32 %v1924, %v1926
    %v1928 = vrot.slane %v1705, %v1927
    %v1929 = vcombine.high %v1928, %v1928
    %v1986 = vsel %vm399, %v1712, -inf
    %v1987 = vrot.slane %v1986, 4
    %v1988 = vmax.f32 %v1986, %v1987
    %v1989 = vrot.slane %v1988, 2
    %v1990 = vmax.f32 %v1988, %v1989
    %v1991 = vrot.slane %v1990, 1
    %v1992 = vmax.f32 %v1990, %v1991
    %vm1993 = vcmask 320512
    %v1994 = vsel %vm1993, %v1713, -inf
    %v1995 = vrot.slane %v1994, 4
    %v1996 = vmax.f32 %v1994, %v1995
    %v1997 = vrot.slane %v1996, 2
    %v1998 = vmax.f32 %v1996, %v1997
    %v1999 = vrot.slane %v1998, 1
    %v2000 = vmax.f32 %v1998, %v1999
    %v2001 = vsel %vm399, %v1720, -inf
    %v2002 = vrot.slane %v2001, 4
    %v2003 = vmax.f32 %v2001, %v2002
    %v2004 = vrot.slane %v2003, 2
    %v2005 = vmax.f32 %v2003, %v2004
    %v2006 = vrot.slane %v2005, 1
    %v2007 = vmax.f32 %v2005, %v2006
    %v2008 = vsel %vm1993, %v1721, -inf
    %v2009 = vrot.slane %v2008, 4
    %v2010 = vmax.f32 %v2008, %v2009
    %v2011 = vrot.slane %v2010, 2
    %v2012 = vmax.f32 %v2010, %v2011
    %v2013 = vrot.slane %v2012, 1
    %v2014 = vmax.f32 %v2012, %v2013
    %v2015 = vsel %vm399, %v1728, -inf
    %v2016 = vrot.slane %v2015, 4
    %v2017 = vmax.f32 %v2015, %v2016
    %v2018 = vrot.slane %v2017, 2
    %v2019 = vmax.f32 %v2017, %v2018
    %v2020 = vrot.slane %v2019, 1
    %v2021 = vmax.f32 %v2019, %v2020
    %v2022 = vsel %vm1993, %v1729, -inf
    %v2023 = vrot.slane %v2022, 4
    %v2024 = vmax.f32 %v2022, %v2023
    %v2025 = vrot.slane %v2024, 2
    %v2026 = vmax.f32 %v2024, %v2025
    %v2027 = vrot.slane %v2026, 1
    %v2028 = vmax.f32 %v2026, %v2027
    %v2029 = vsel %vm399, %v1736, -inf
    %v2030 = vrot.slane %v2029, 4
    %v2031 = vmax.f32 %v2029, %v2030
    %v2032 = vrot.slane %v2031, 2
    %v2033 = vmax.f32 %v2031, %v2032
    %v2034 = vrot.slane %v2033, 1
    %v2035 = vmax.f32 %v2033, %v2034
    %v2036 = vsel %vm1993, %v1737, -inf
    %v2037 = vrot.slane %v2036, 4
    %v2038 = vmax.f32 %v2036, %v2037
    %v2039 = vrot.slane %v2038, 2
    %v2040 = vmax.f32 %v2038, %v2039
    %v2041 = vrot.slane %v2040, 1
    %v2042 = vmax.f32 %v2040, %v2041
    %v2043 = vsel %vm399, %v1744, -inf
    %v2044 = vrot.slane %v2043, 4
    %v2045 = vmax.f32 %v2043, %v2044
    %v2046 = vrot.slane %v2045, 2
    %v2047 = vmax.f32 %v2045, %v2046
    %v2048 = vrot.slane %v2047, 1
    %v2049 = vmax.f32 %v2047, %v2048
    %v2050 = vsel %vm1993, %v1745, -inf
    %v2051 = vrot.slane %v2050, 4
    %v2052 = vmax.f32 %v2050, %v2051
    %v2053 = vrot.slane %v2052, 2
    %v2054 = vmax.f32 %v2052, %v2053
    %v2055 = vrot.slane %v2054, 1
    %v2056 = vmax.f32 %v2054, %v2055
    %v2057 = vsel %vm399, %v1752, -inf
    %v2058 = vrot.slane %v2057, 4
    %v2059 = vmax.f32 %v2057, %v2058
    %v2060 = vrot.slane %v2059, 2
    %v2061 = vmax.f32 %v2059, %v2060
    %v2062 = vrot.slane %v2061, 1
    %v2063 = vmax.f32 %v2061, %v2062
    %v2064 = vsel %vm1993, %v1753, -inf
    %v2065 = vrot.slane %v2064, 4
    %v2066 = vmax.f32 %v2064, %v2065
    %v2067 = vrot.slane %v2066, 2
    %v2068 = vmax.f32 %v2066, %v2067
    %v2069 = vrot.slane %v2068, 1
    %v2070 = vmax.f32 %v2068, %v2069
    %v2071 = vsel %vm399, %v1760, -inf
    %v2072 = vrot.slane %v2071, 4
    %v2073 = vmax.f32 %v2071, %v2072
    %v2074 = vrot.slane %v2073, 2
    %v2075 = vmax.f32 %v2073, %v2074
    %v2076 = vrot.slane %v2075, 1
    %v2077 = vmax.f32 %v2075, %v2076
    %v2078 = vsel %vm1993, %v1761, -inf
    %v2079 = vrot.slane %v2078, 4
    %v2080 = vmax.f32 %v2078, %v2079
    %v2081 = vrot.slane %v2080, 2
    %v2082 = vmax.f32 %v2080, %v2081
    %v2083 = vrot.slane %v2082, 1
    %v2084 = vmax.f32 %v2082, %v2083
    %v2085 = vsel %vm399, %v1768, -inf
    %v2086 = vrot.slane %v2085, 4
    %v2087 = vmax.f32 %v2085, %v2086
    %v2088 = vrot.slane %v2087, 2
    %v2089 = vmax.f32 %v2087, %v2088
    %v2090 = vrot.slane %v2089, 1
    %v2091 = vmax.f32 %v2089, %v2090
    %v2092 = vsel %vm1993, %v1769, -inf
    %v2093 = vrot.slane %v2092, 4
    %v2094 = vmax.f32 %v2092, %v2093
    %v2095 = vrot.slane %v2094, 2
    %v2096 = vmax.f32 %v2094, %v2095
    %v2097 = vrot.slane %v2096, 1
    %v2098 = vmax.f32 %v2096, %v2097
    %v2099 = vsel %vm399, %v1776, -inf
    %v2100 = vrot.slane %v2099, 4
    %v2101 = vmax.f32 %v2099, %v2100
    %v2102 = vrot.slane %v2101, 2
    %v2103 = vmax.f32 %v2101, %v2102
    %v2104 = vrot.slane %v2103, 1
    %v2105 = vmax.f32 %v2103, %v2104
    %v2106 = vsel %vm1993, %v1777, -inf
    %v2107 = vrot.slane %v2106, 4
    %v2108 = vmax.f32 %v2106, %v2107
    %v2109 = vrot.slane %v2108, 2
    %v2110 = vmax.f32 %v2108, %v2109
    %v2111 = vrot.slane %v2110, 1
    %v2112 = vmax.f32 %v2110, %v2111
    %v2113 = vsel %vm399, %v1784, -inf
    %v2114 = vrot.slane %v2113, 4
    %v2115 = vmax.f32 %v2113, %v2114
    %v2116 = vrot.slane %v2115, 2
    %v2117 = vmax.f32 %v2115, %v2116
    %v2118 = vrot.slane %v2117, 1
    %v2119 = vmax.f32 %v2117, %v2118
    %v2120 = vsel %vm1993, %v1785, -inf
    %v2121 = vrot.slane %v2120, 4
    %v2122 = vmax.f32 %v2120, %v2121
    %v2123 = vrot.slane %v2122, 2
    %v2124 = vmax.f32 %v2122, %v2123
    %v2125 = vrot.slane %v2124, 1
    %v2126 = vmax.f32 %v2124, %v2125
    %v2127 = vsel %vm399, %v1792, -inf
    %v2128 = vrot.slane %v2127, 4
    %v2129 = vmax.f32 %v2127, %v2128
    %v2130 = vrot.slane %v2129, 2
    %v2131 = vmax.f32 %v2129, %v2130
    %v2132 = vrot.slane %v2131, 1
    %v2133 = vmax.f32 %v2131, %v2132
    %v2134 = vsel %vm1993, %v1793, -inf
    %v2135 = vrot.slane %v2134, 4
    %v2136 = vmax.f32 %v2134, %v2135
    %v2137 = vrot.slane %v2136, 2
    %v2138 = vmax.f32 %v2136, %v2137
    %v2139 = vrot.slane %v2138, 1
    %v2140 = vmax.f32 %v2138, %v2139
    %v2141 = vsel %vm399, %v1800, -inf
    %v2142 = vrot.slane %v2141, 4
    %v2143 = vmax.f32 %v2141, %v2142
    %v2144 = vrot.slane %v2143, 2
    %v2145 = vmax.f32 %v2143, %v2144
    %v2146 = vrot.slane %v2145, 1
    %v2147 = vmax.f32 %v2145, %v2146
    %v2148 = vsel %vm1993, %v1801, -inf
    %v2149 = vrot.slane %v2148, 4
    %v2150 = vmax.f32 %v2148, %v2149
    %v2151 = vrot.slane %v2150, 2
    %v2152 = vmax.f32 %v2150, %v2151
    %v2153 = vrot.slane %v2152, 1
    %v2154 = vmax.f32 %v2152, %v2153
    %v2155 = vsel %vm399, %v1808, -inf
    %v2156 = vrot.slane %v2155, 4
    %v2157 = vmax.f32 %v2155, %v2156
    %v2158 = vrot.slane %v2157, 2
    %v2159 = vmax.f32 %v2157, %v2158
    %v2160 = vrot.slane %v2159, 1
    %v2161 = vmax.f32 %v2159, %v2160
    %v2162 = vsel %vm1993, %v1809, -inf
    %v2163 = vrot.slane %v2162, 4
    %v2164 = vmax.f32 %v2162, %v2163
    %v2165 = vrot.slane %v2164, 2
    %v2166 = vmax.f32 %v2164, %v2165
    %v2167 = vrot.slane %v2166, 1
    %v2168 = vmax.f32 %v2166, %v2167
    %v2169 = vsel %vm399, %v1816, -inf
    %v2170 = vrot.slane %v2169, 4
    %v2171 = vmax.f32 %v2169, %v2170
    %v2172 = vrot.slane %v2171, 2
    %v2173 = vmax.f32 %v2171, %v2172
    %v2174 = vrot.slane %v2173, 1
    %v2175 = vmax.f32 %v2173, %v2174
    %v2176 = vsel %vm1993, %v1817, -inf
    %v2177 = vrot.slane %v2176, 4
    %v2178 = vmax.f32 %v2176, %v2177
    %v2179 = vrot.slane %v2178, 2
    %v2180 = vmax.f32 %v2178, %v2179
    %v2181 = vrot.slane %v2180, 1
    %v2182 = vmax.f32 %v2180, %v2181
    %v2183 = vsel %vm399, %v1824, -inf
    %v2184 = vrot.slane %v2183, 4
    %v2185 = vmax.f32 %v2183, %v2184
    %v2186 = vrot.slane %v2185, 2
    %v2187 = vmax.f32 %v2185, %v2186
    %v2188 = vrot.slane %v2187, 1
    %v2189 = vmax.f32 %v2187, %v2188
    %v2190 = vsel %vm1993, %v1825, -inf
    %v2191 = vrot.slane %v2190, 4
    %v2192 = vmax.f32 %v2190, %v2191
    %v2193 = vrot.slane %v2192, 2
    %v2194 = vmax.f32 %v2192, %v2193
    %v2195 = vrot.slane %v2194, 1
    %v2196 = vmax.f32 %v2194, %v2195
    %v2197 = vsel %vm399, %v1832, -inf
    %v2198 = vrot.slane %v2197, 4
    %v2199 = vmax.f32 %v2197, %v2198
    %v2200 = vrot.slane %v2199, 2
    %v2201 = vmax.f32 %v2199, %v2200
    %v2202 = vrot.slane %v2201, 1
    %v2203 = vmax.f32 %v2201, %v2202
    %v2204 = vsel %vm1993, %v1833, -inf
    %v2205 = vrot.slane %v2204, 4
    %v2206 = vmax.f32 %v2204, %v2205
    %v2207 = vrot.slane %v2206, 2
    %v2208 = vmax.f32 %v2206, %v2207
    %v2209 = vrot.slane %v2208, 1
    %v2210 = vmax.f32 %v2208, %v2209
    %v2211 = vsel %vm399, %v1840, -inf
    %v2212 = vrot.slane %v2211, 4
    %v2213 = vmax.f32 %v2211, %v2212
    %v2214 = vrot.slane %v2213, 2
    %v2215 = vmax.f32 %v2213, %v2214
    %v2216 = vrot.slane %v2215, 1
    %v2217 = vmax.f32 %v2215, %v2216
    %v2218 = vsel %vm1993, %v1841, -inf
    %v2219 = vrot.slane %v2218, 4
    %v2220 = vmax.f32 %v2218, %v2219
    %v2221 = vrot.slane %v2220, 2
    %v2222 = vmax.f32 %v2220, %v2221
    %v2223 = vrot.slane %v2222, 1
    %v2224 = vmax.f32 %v2222, %v2223
    %v2225 = vsel %vm399, %v1848, -inf
    %v2226 = vrot.slane %v2225, 4
    %v2227 = vmax.f32 %v2225, %v2226
    %v2228 = vrot.slane %v2227, 2
    %v2229 = vmax.f32 %v2227, %v2228
    %v2230 = vrot.slane %v2229, 1
    %v2231 = vmax.f32 %v2229, %v2230
    %v2232 = vsel %vm1993, %v1849, -inf
    %v2233 = vrot.slane %v2232, 4
    %v2234 = vmax.f32 %v2232, %v2233
    %v2235 = vrot.slane %v2234, 2
    %v2236 = vmax.f32 %v2234, %v2235
    %v2237 = vrot.slane %v2236, 1
    %v2238 = vmax.f32 %v2236, %v2237
    %v2239 = vsel %vm399, %v1856, -inf
    %v2240 = vrot.slane %v2239, 4
    %v2241 = vmax.f32 %v2239, %v2240
    %v2242 = vrot.slane %v2241, 2
    %v2243 = vmax.f32 %v2241, %v2242
    %v2244 = vrot.slane %v2243, 1
    %v2245 = vmax.f32 %v2243, %v2244
    %v2246 = vsel %vm1993, %v1857, -inf
    %v2247 = vrot.slane %v2246, 4
    %v2248 = vmax.f32 %v2246, %v2247
    %v2249 = vrot.slane %v2248, 2
    %v2250 = vmax.f32 %v2248, %v2249
    %v2251 = vrot.slane %v2250, 1
    %v2252 = vmax.f32 %v2250, %v2251
    %v2253 = vsel %vm399, %v1864, -inf
    %v2254 = vrot.slane %v2253, 4
    %v2255 = vmax.f32 %v2253, %v2254
    %v2256 = vrot.slane %v2255, 2
    %v2257 = vmax.f32 %v2255, %v2256
    %v2258 = vrot.slane %v2257, 1
    %v2259 = vmax.f32 %v2257, %v2258
    %v2260 = vsel %vm1993, %v1865, -inf
    %v2261 = vrot.slane %v2260, 4
    %v2262 = vmax.f32 %v2260, %v2261
    %v2263 = vrot.slane %v2262, 2
    %v2264 = vmax.f32 %v2262, %v2263
    %v2265 = vrot.slane %v2264, 1
    %v2266 = vmax.f32 %v2264, %v2265
    %v2267 = vsel %vm399, %v1872, -inf
    %v2268 = vrot.slane %v2267, 4
    %v2269 = vmax.f32 %v2267, %v2268
    %v2270 = vrot.slane %v2269, 2
    %v2271 = vmax.f32 %v2269, %v2270
    %v2272 = vrot.slane %v2271, 1
    %v2273 = vmax.f32 %v2271, %v2272
    %v2274 = vsel %vm1993, %v1873, -inf
    %v2275 = vrot.slane %v2274, 4
    %v2276 = vmax.f32 %v2274, %v2275
    %v2277 = vrot.slane %v2276, 2
    %v2278 = vmax.f32 %v2276, %v2277
    %v2279 = vrot.slane %v2278, 1
    %v2280 = vmax.f32 %v2278, %v2279
    %v2281 = vsel %vm399, %v1880, -inf
    %v2282 = vrot.slane %v2281, 4
    %v2283 = vmax.f32 %v2281, %v2282
    %v2284 = vrot.slane %v2283, 2
    %v2285 = vmax.f32 %v2283, %v2284
    %v2286 = vrot.slane %v2285, 1
    %v2287 = vmax.f32 %v2285, %v2286
    %v2288 = vsel %vm1993, %v1881, -inf
    %v2289 = vrot.slane %v2288, 4
    %v2290 = vmax.f32 %v2288, %v2289
    %v2291 = vrot.slane %v2290, 2
    %v2292 = vmax.f32 %v2290, %v2291
    %v2293 = vrot.slane %v2292, 1
    %v2294 = vmax.f32 %v2292, %v2293
    %v2295 = vsel %vm399, %v1888, -inf
    %v2296 = vrot.slane %v2295, 4
    %v2297 = vmax.f32 %v2295, %v2296
    %v2298 = vrot.slane %v2297, 2
    %v2299 = vmax.f32 %v2297, %v2298
    %v2300 = vrot.slane %v2299, 1
    %v2301 = vmax.f32 %v2299, %v2300
    %v2302 = vsel %vm1993, %v1889, -inf
    %v2303 = vrot.slane %v2302, 4
    %v2304 = vmax.f32 %v2302, %v2303
    %v2305 = vrot.slane %v2304, 2
    %v2306 = vmax.f32 %v2304, %v2305
    %v2307 = vrot.slane %v2306, 1
    %v2308 = vmax.f32 %v2306, %v2307
    %v2309 = vsel %vm399, %v1896, -inf
    %v2310 = vrot.slane %v2309, 4
    %v2311 = vmax.f32 %v2309, %v2310
    %v2312 = vrot.slane %v2311, 2
    %v2313 = vmax.f32 %v2311, %v2312
    %v2314 = vrot.slane %v2313, 1
    %v2315 = vmax.f32 %v2313, %v2314
    %v2316 = vsel %vm1993, %v1897, -inf
    %v2317 = vrot.slane %v2316, 4
    %v2318 = vmax.f32 %v2316, %v2317
    %v2319 = vrot.slane %v2318, 2
    %v2320 = vmax.f32 %v2318, %v2319
    %v2321 = vrot.slane %v2320, 1
    %v2322 = vmax.f32 %v2320, %v2321
    %v2323 = vsel %vm399, %v1904, -inf
    %v2324 = vrot.slane %v2323, 4
    %v2325 = vmax.f32 %v2323, %v2324
    %v2326 = vrot.slane %v2325, 2
    %v2327 = vmax.f32 %v2325, %v2326
    %v2328 = vrot.slane %v2327, 1
    %v2329 = vmax.f32 %v2327, %v2328
    %v2330 = vsel %vm1993, %v1905, -inf
    %v2331 = vrot.slane %v2330, 4
    %v2332 = vmax.f32 %v2330, %v2331
    %v2333 = vrot.slane %v2332, 2
    %v2334 = vmax.f32 %v2332, %v2333
    %v2335 = vrot.slane %v2334, 1
    %v2336 = vmax.f32 %v2334, %v2335
    %v2337 = vsel %vm399, %v1912, -inf
    %v2338 = vrot.slane %v2337, 4
    %v2339 = vmax.f32 %v2337, %v2338
    %v2340 = vrot.slane %v2339, 2
    %v2341 = vmax.f32 %v2339, %v2340
    %v2342 = vrot.slane %v2341, 1
    %v2343 = vmax.f32 %v2341, %v2342
    %v2344 = vsel %vm1993, %v1913, -inf
    %v2345 = vrot.slane %v2344, 4
    %v2346 = vmax.f32 %v2344, %v2345
    %v2347 = vrot.slane %v2346, 2
    %v2348 = vmax.f32 %v2346, %v2347
    %v2349 = vrot.slane %v2348, 1
    %v2350 = vmax.f32 %v2348, %v2349
    %v2351 = vsel %vm399, %v1920, -inf
    %v2352 = vrot.slane %v2351, 4
    %v2353 = vmax.f32 %v2351, %v2352
    %v2354 = vrot.slane %v2353, 2
    %v2355 = vmax.f32 %v2353, %v2354
    %v2356 = vrot.slane %v2355, 1
    %v2357 = vmax.f32 %v2355, %v2356
    %v2358 = vsel %vm1993, %v1921, -inf
    %v2359 = vrot.slane %v2358, 4
    %v2360 = vmax.f32 %v2358, %v2359
    %v2361 = vrot.slane %v2360, 2
    %v2362 = vmax.f32 %v2360, %v2361
    %v2363 = vrot.slane %v2362, 1
    %v2364 = vmax.f32 %v2362, %v2363
    %v2365 = vsel %vm399, %v1928, -inf
    %v2366 = vrot.slane %v2365, 4
    %v2367 = vmax.f32 %v2365, %v2366
    %v2368 = vrot.slane %v2367, 2
    %v2369 = vmax.f32 %v2367, %v2368
    %v2370 = vrot.slane %v2369, 1
    %v2371 = vmax.f32 %v2369, %v2370
    %v2372 = vsel %vm1993, %v1929, -inf
    %v2373 = vrot.slane %v2372, 4
    %v2374 = vmax.f32 %v2372, %v2373
    %v2375 = vrot.slane %v2374, 2
    %v2376 = vmax.f32 %v2374, %v2375
    %v2377 = vrot.slane %v2376, 1
    %v2378 = vmax.f32 %v2376, %v2377
    %v2379 = vmul.u32 %v997, 2
    %vm2380 = vcmp.eq.s32.totalorder %v975, %v2379
    %vm2381 = vcmp.eq.s32.totalorder %v976, %v2379
    %vm2382 = vcmp.eq.s32.totalorder %v977, %v2379
    %vm2383 = vcmp.eq.s32.totalorder %v978, %v2379
    %vm2384 = vcmp.eq.s32.totalorder %v979, %v2379
    %vm2385 = vcmp.eq.s32.totalorder %v980, %v2379
    %vm2386 = vcmp.eq.s32.totalorder %v981, %v2379
    %vm2387 = vcmp.eq.s32.totalorder %v982, %v2379
    %vm2388 = vcmp.eq.s32.totalorder %v983, %v2379
    %vm2389 = vcmp.eq.s32.totalorder %v984, %v2379
    %vm2390 = vcmp.eq.s32.totalorder %v985, %v2379
    %vm2391 = vcmp.eq.s32.totalorder %v986, %v2379
    %vm2392 = vcmp.eq.s32.totalorder %v987, %v2379
    %vm2393 = vcmp.eq.s32.totalorder %v988, %v2379
    %vm2394 = vcmp.eq.s32.totalorder %v989, %v2379
    %vm2395 = vcmp.eq.s32.totalorder %v990, %v2379
    %vm2396 = vcmp.eq.s32.totalorder %v991, %v2379
    %vm2397 = vcmp.eq.s32.totalorder %v992, %v2379
    %vm2398 = vcmp.eq.s32.totalorder %v993, %v2379
    %vm2399 = vcmp.eq.s32.totalorder %v994, %v2379
    %vm2400 = vcmp.eq.s32.totalorder %v995, %v2379
    %v2401 = vsel %vm2380, 1, 0
    %v2402 = vsel %vm2381, 1, 0
    %v2403 = vsel %vm2382, 1, 0
    %v2404 = vsel %vm2383, 1, 0
    %v2405 = vsel %vm2384, 1, 0
    %v2406 = vsel %vm2385, 1, 0
    %v2407 = vsel %vm2386, 1, 0
    %v2408 = vsel %vm2387, 1, 0
    %v2409 = vsel %vm2388, 1, 0
    %v2410 = vsel %vm2389, 1, 0
    %v2411 = vsel %vm2390, 1, 0
    %v2412 = vsel %vm2391, 1, 0
    %v2413 = vsel %vm2392, 1, 0
    %v2414 = vsel %vm2393, 1, 0
    %v2415 = vsel %vm2394, 1, 0
    %v2416 = vsel %vm2395, 1, 0
    %v2417 = vsel %vm2396, 1, 0
    %v2418 = vsel %vm2397, 1, 0
    %v2419 = vsel %vm2398, 1, 0
    %v2420 = vsel %vm2399, 1, 0
    %v2421 = vsel %vm2400, 1, 0
    %v2422 = vcvt.s32.f32 %v2401
    %v2423 = vcvt.s32.f32 %v2402
    %v2424 = vcvt.s32.f32 %v2403
    %v2425 = vcvt.s32.f32 %v2404
    %v2426 = vcvt.s32.f32 %v2405
    %v2427 = vcvt.s32.f32 %v2406
    %v2428 = vcvt.s32.f32 %v2407
    %v2429 = vcvt.s32.f32 %v2408
    %v2430 = vcvt.s32.f32 %v2409
    %v2431 = vcvt.s32.f32 %v2410
    %v2432 = vcvt.s32.f32 %v2411
    %v2433 = vcvt.s32.f32 %v2412
    %v2434 = vcvt.s32.f32 %v2413
    %v2435 = vcvt.s32.f32 %v2414
    %v2436 = vcvt.s32.f32 %v2415
    %v2437 = vcvt.s32.f32 %v2416
    %v2438 = vcvt.s32.f32 %v2417
    %v2439 = vcvt.s32.f32 %v2418
    %v2440 = vcvt.s32.f32 %v2419
    %v2441 = vcvt.s32.f32 %v2420
    %v2442 = vcvt.s32.f32 %v2421
    %v2443 = vadd.s32 %v2379, 1
    %vm2444 = vcmp.eq.s32.totalorder %v975, %v2443
    %vm2445 = vcmp.eq.s32.totalorder %v976, %v2443
    %vm2446 = vcmp.eq.s32.totalorder %v977, %v2443
    %vm2447 = vcmp.eq.s32.totalorder %v978, %v2443
    %vm2448 = vcmp.eq.s32.totalorder %v979, %v2443
    %vm2449 = vcmp.eq.s32.totalorder %v980, %v2443
    %vm2450 = vcmp.eq.s32.totalorder %v981, %v2443
    %vm2451 = vcmp.eq.s32.totalorder %v982, %v2443
    %vm2452 = vcmp.eq.s32.totalorder %v983, %v2443
    %vm2453 = vcmp.eq.s32.totalorder %v984, %v2443
    %vm2454 = vcmp.eq.s32.totalorder %v985, %v2443
    %vm2455 = vcmp.eq.s32.totalorder %v986, %v2443
    %vm2456 = vcmp.eq.s32.totalorder %v987, %v2443
    %vm2457 = vcmp.eq.s32.totalorder %v988, %v2443
    %vm2458 = vcmp.eq.s32.totalorder %v989, %v2443
    %vm2459 = vcmp.eq.s32.totalorder %v990, %v2443
    %vm2460 = vcmp.eq.s32.totalorder %v991, %v2443
    %vm2461 = vcmp.eq.s32.totalorder %v992, %v2443
    %vm2462 = vcmp.eq.s32.totalorder %v993, %v2443
    %vm2463 = vcmp.eq.s32.totalorder %v994, %v2443
    %vm2464 = vcmp.eq.s32.totalorder %v995, %v2443
    %v2465 = vsel %vm2444, 1, 0
    %v2466 = vsel %vm2445, 1, 0
    %v2467 = vsel %vm2446, 1, 0
    %v2468 = vsel %vm2447, 1, 0
    %v2469 = vsel %vm2448, 1, 0
    %v2470 = vsel %vm2449, 1, 0
    %v2471 = vsel %vm2450, 1, 0
    %v2472 = vsel %vm2451, 1, 0
    %v2473 = vsel %vm2452, 1, 0
    %v2474 = vsel %vm2453, 1, 0
    %v2475 = vsel %vm2454, 1, 0
    %v2476 = vsel %vm2455, 1, 0
    %v2477 = vsel %vm2456, 1, 0
    %v2478 = vsel %vm2457, 1, 0
    %v2479 = vsel %vm2458, 1, 0
    %v2480 = vsel %vm2459, 1, 0
    %v2481 = vsel %vm2460, 1, 0
    %v2482 = vsel %vm2461, 1, 0
    %v2483 = vsel %vm2462, 1, 0
    %v2484 = vsel %vm2463, 1, 0
    %v2485 = vsel %vm2464, 1, 0
    %v2486 = vcvt.s32.f32 %v2465
    %v2487 = vcvt.s32.f32 %v2466
    %v2488 = vcvt.s32.f32 %v2467
    %v2489 = vcvt.s32.f32 %v2468
    %v2490 = vcvt.s32.f32 %v2469
    %v2491 = vcvt.s32.f32 %v2470
    %v2492 = vcvt.s32.f32 %v2471
    %v2493 = vcvt.s32.f32 %v2472
    %v2494 = vcvt.s32.f32 %v2473
    %v2495 = vcvt.s32.f32 %v2474
    %v2496 = vcvt.s32.f32 %v2475
    %v2497 = vcvt.s32.f32 %v2476
    %v2498 = vcvt.s32.f32 %v2477
    %v2499 = vcvt.s32.f32 %v2478
    %v2500 = vcvt.s32.f32 %v2479
    %v2501 = vcvt.s32.f32 %v2480
    %v2502 = vcvt.s32.f32 %v2481
    %v2503 = vcvt.s32.f32 %v2482
    %v2504 = vcvt.s32.f32 %v2483
    %v2505 = vcvt.s32.f32 %v2484
    %v2506 = vcvt.s32.f32 %v2485
    %vm2563 = vcmask 1041409
    %v2564 = vsel %vm2563, %v2007, %v1992
    %vm2565 = vcmask 1042434
    %v2566 = vsel %vm2565, %v2021, %v2564
    %vm2567 = vcmask 1043459
    %v2568 = vsel %vm2567, %v2035, %v2566
    %v2569 = vsel %vm598, %v2049, %v2568
    %vm2570 = vcmask 1045509
    %v2571 = vsel %vm2570, %v2063, %v2569
    %vm2572 = vcmask 1046534
    %v2573 = vsel %vm2572, %v2077, %v2571
    %vm2574 = vcmask 1047559
    %v2575 = vsel %vm2574, %v2091, %v2573
    %v2576 = vsel %vm2563, %v2014, %v2000
    %v2577 = vsel %vm2565, %v2028, %v2576
    %v2578 = vsel %vm2567, %v2042, %v2577
    %v2579 = vsel %vm598, %v2056, %v2578
    %v2580 = vsel %vm2570, %v2070, %v2579
    %v2581 = vsel %vm2572, %v2084, %v2580
    %v2582 = vsel %vm2574, %v2098, %v2581
    %v2583 = vsel %vm2563, %v2119, %v2105
    %v2584 = vsel %vm2565, %v2133, %v2583
    %v2585 = vsel %vm2567, %v2147, %v2584
    %v2586 = vsel %vm598, %v2161, %v2585
    %v2587 = vsel %vm2570, %v2175, %v2586
    %v2588 = vsel %vm2572, %v2189, %v2587
    %v2589 = vsel %vm2574, %v2203, %v2588
    %v2590 = vsel %vm2563, %v2126, %v2112
    %v2591 = vsel %vm2565, %v2140, %v2590
    %v2592 = vsel %vm2567, %v2154, %v2591
    %v2593 = vsel %vm598, %v2168, %v2592
    %v2594 = vsel %vm2570, %v2182, %v2593
    %v2595 = vsel %vm2572, %v2196, %v2594
    %v2596 = vsel %vm2574, %v2210, %v2595
    %v2597 = vsel %vm2563, %v2231, %v2217
    %v2598 = vsel %vm2565, %v2245, %v2597
    %v2599 = vsel %vm2567, %v2259, %v2598
    %v2600 = vsel %vm598, %v2273, %v2599
    %v2601 = vsel %vm2570, %v2287, %v2600
    %v2602 = vsel %vm2572, %v2301, %v2601
    %v2603 = vsel %vm2574, %v2315, %v2602
    %v2604 = vsel %vm2563, %v2238, %v2224
    %v2605 = vsel %vm2565, %v2252, %v2604
    %v2606 = vsel %vm2567, %v2266, %v2605
    %v2607 = vsel %vm598, %v2280, %v2606
    %v2608 = vsel %vm2570, %v2294, %v2607
    %v2609 = vsel %vm2572, %v2308, %v2608
    %v2610 = vsel %vm2574, %v2322, %v2609
    %v2611 = vsel %vm2563, %v2343, %v2329
    %v2612 = vsel %vm2565, %v2357, %v2611
    %v2613 = vsel %vm2567, %v2371, %v2612
    %v2614 = vsel %vm2563, %v2350, %v2336
    %v2615 = vsel %vm2565, %v2364, %v2614
    %v2616 = vsel %vm2567, %v2378, %v2615
    %v2621 = vsel %vm1132, %v2582, 0
    %v2623 = vsel %vm1132, %v2596, 0
    %v2625 = vsel %vm1132, %v2610, 0
    %v2627 = vsel %vm1132, %v2616, 0
    %2629 = vmatprep.subr.mxu0 0.0
    %2630 = vmatpush1.msra.mxu0 %v2437
    %2631 = vmatprep.subr.mxu0 0.0
    %2632 = vmatpush1.msra.mxu0 %v2436
    %2633 = vmatprep.subr.mxu0 0.0
    %2634 = vmatpush1.msra.mxu0 %v2435
    %2635 = vmatprep.subr.mxu0 0.0
    %2636 = vmatpush1.msra.mxu0 %v2434
    %2637 = vmatprep.subr.mxu0 0.0
    %2638 = vmatpush1.msra.mxu0 %v2433
    %2639 = vmatprep.subr.mxu0 0.0
    %2640 = vmatpush1.msra.mxu0 %v2432
    %2641 = vmatprep.subr.mxu0 0.0
    %2642 = vmatpush1.msra.mxu0 %v2431
    %2643 = vmatprep.subr.mxu0 0.0
    %2644 = vmatpush1.msra.mxu0 %v2430
    %2645 = vmatprep.subr.mxu0 0.0
    %2646 = vmatpush1.msra.mxu0 %v2429
    %2647 = vmatprep.subr.mxu0 0.0
    %2648 = vmatpush1.msra.mxu0 %v2428
    %2649 = vmatprep.subr.mxu0 0.0
    %2650 = vmatpush1.msra.mxu0 %v2427
    %2651 = vmatprep.subr.mxu0 0.0
    %2652 = vmatpush1.msra.mxu0 %v2426
    %2653 = vmatprep.subr.mxu0 0.0
    %2654 = vmatpush1.msra.mxu0 %v2425
    %2655 = vmatprep.subr.mxu0 0.0
    %2656 = vmatpush1.msra.mxu0 %v2424
    %2657 = vmatprep.subr.mxu0 0.0
    %2658 = vmatpush1.msra.mxu0 %v2423
    %2659 = vmatprep.subr.mxu0 0.0
    %2660 = vmatpush1.msra.mxu0 %v2422
    %2661 = vmatprep.subr.mxu0 0.0
    %2662 = vmatpush2.msra.mxu0 0.0
    %2663 = vmatprep.subr.mxu0 0.0
    %2664 = vmatpush2.msra.mxu0 0.0
    %2665 = vmatprep.subr.mxu0 0.0
    %2666 = vmatpush2.msra.mxu0 0.0
    %2667 = vmatprep.subr.mxu0 0.0
    %2668 = vmatpush2.msra.mxu0 0.0
    %2669 = vmatprep.subr.mxu0 0.0
    %2670 = vmatpush2.msra.mxu0 0.0
    %2671 = vmatprep.subr.mxu0 0.0
    %2672 = vmatpush2.msra.mxu0 0.0
    %2673 = vmatprep.subr.mxu0 0.0
    %2674 = vmatpush2.msra.mxu0 0.0
    %2675 = vmatprep.subr.mxu0 0.0
    %2676 = vmatpush2.msra.mxu0 0.0
    %2677 = vmatprep.subr.mxu0 0.0
    %2678 = vmatpush2.msra.mxu0 0.0
    %2679 = vmatprep.subr.mxu0 0.0
    %2680 = vmatpush2.msra.mxu0 0.0
    %2681 = vmatprep.subr.mxu0 0.0
    %2682 = vmatpush2.msra.mxu0 0.0
    %2683 = vmatprep.subr.mxu0 0.0
    %2684 = vmatpush2.msra.mxu0 %v2442
    %2685 = vmatprep.subr.mxu0 0.0
    %2686 = vmatpush2.msra.mxu0 %v2441
    %2687 = vmatprep.subr.mxu0 0.0
    %2688 = vmatpush2.msra.mxu0 %v2440
    %2689 = vmatprep.subr.mxu0 0.0
    %2690 = vmatpush2.msra.mxu0 %v2439
    %2691 = vmatprep.subr.mxu0 0.0
    %2692 = vmatpush2.msra.mxu0 %v2438
    %2693 = vmatprep.mubr.f32.mxu0 %v2621
    %2694 = vmatmul.mubr.f32.gmra.mxu0 %v2575
    %v2695 = vpop.f32.mrf.mxu0
    %v2696 = vadd.f32 0.0, %v2695
    %v2697 = vpop.f32.mrf.mxu0
    %2698 = vmatprep.mubr.f32.mxu0 %v2623
    %2699 = vmatmul.mubr.f32.gmra.mxu0 %v2589
    %v2700 = vpop.f32.mrf.mxu0
    %v2701 = vadd.f32 0.0, %v2700
    %v2702 = vpop.f32.mrf.mxu0
    %2703 = vmatprep.mubr.f32.mxu0 %v2625
    %2704 = vmatmul.mubr.f32.gmra.mxu0 %v2603
    %v2705 = vpop.f32.mrf.mxu0
    %v2706 = vadd.f32 0.0, %v2705
    %v2707 = vpop.f32.mrf.mxu0
    %2708 = vmatprep.mubr.f32.mxu0 %v2627
    %2709 = vmatmul.mubr.f32.gmra.mxu0 %v2613
    %v2710 = vpop.f32.mrf.mxu0
    %v2711 = vadd.f32 0.0, %v2710
    %v2712 = vpop.f32.mrf.mxu0
    %2713 = vdwg.mxu0
    %2714 = vmatprep.subr.mxu0 0.0
    %2715 = vmatpush1.msra.mxu0 %v2501
    %2716 = vmatprep.subr.mxu0 0.0
    %2717 = vmatpush1.msra.mxu0 %v2500
    %2718 = vmatprep.subr.mxu0 0.0
    %2719 = vmatpush1.msra.mxu0 %v2499
    %2720 = vmatprep.subr.mxu0 0.0
    %2721 = vmatpush1.msra.mxu0 %v2498
    %2722 = vmatprep.subr.mxu0 0.0
    %2723 = vmatpush1.msra.mxu0 %v2497
    %2724 = vmatprep.subr.mxu0 0.0
    %2725 = vmatpush1.msra.mxu0 %v2496
    %2726 = vmatprep.subr.mxu0 0.0
    %2727 = vmatpush1.msra.mxu0 %v2495
    %2728 = vmatprep.subr.mxu0 0.0
    %2729 = vmatpush1.msra.mxu0 %v2494
    %2730 = vmatprep.subr.mxu0 0.0
    %2731 = vmatpush1.msra.mxu0 %v2493
    %2732 = vmatprep.subr.mxu0 0.0
    %2733 = vmatpush1.msra.mxu0 %v2492
    %2734 = vmatprep.subr.mxu0 0.0
    %2735 = vmatpush1.msra.mxu0 %v2491
    %2736 = vmatprep.subr.mxu0 0.0
    %2737 = vmatpush1.msra.mxu0 %v2490
    %2738 = vmatprep.subr.mxu0 0.0
    %2739 = vmatpush1.msra.mxu0 %v2489
    %2740 = vmatprep.subr.mxu0 0.0
    %2741 = vmatpush1.msra.mxu0 %v2488
    %2742 = vmatprep.subr.mxu0 0.0
    %2743 = vmatpush1.msra.mxu0 %v2487
    %2744 = vmatprep.subr.mxu0 0.0
    %2745 = vmatpush1.msra.mxu0 %v2486
    %2746 = vmatprep.subr.mxu0 0.0
    %2747 = vmatpush2.msra.mxu0 0.0
    %2748 = vmatprep.subr.mxu0 0.0
    %2749 = vmatpush2.msra.mxu0 0.0
    %2750 = vmatprep.subr.mxu0 0.0
    %2751 = vmatpush2.msra.mxu0 0.0
    %2752 = vmatprep.subr.mxu0 0.0
    %2753 = vmatpush2.msra.mxu0 0.0
    %2754 = vmatprep.subr.mxu0 0.0
    %2755 = vmatpush2.msra.mxu0 0.0
    %2756 = vmatprep.subr.mxu0 0.0
    %2757 = vmatpush2.msra.mxu0 0.0
    %2758 = vmatprep.subr.mxu0 0.0
    %2759 = vmatpush2.msra.mxu0 0.0
    %2760 = vmatprep.subr.mxu0 0.0
    %2761 = vmatpush2.msra.mxu0 0.0
    %2762 = vmatprep.subr.mxu0 0.0
    %2763 = vmatpush2.msra.mxu0 0.0
    %2764 = vmatprep.subr.mxu0 0.0
    %2765 = vmatpush2.msra.mxu0 0.0
    %2766 = vmatprep.subr.mxu0 0.0
    %2767 = vmatpush2.msra.mxu0 0.0
    %2768 = vmatprep.subr.mxu0 0.0
    %2769 = vmatpush2.msra.mxu0 %v2506
    %2770 = vmatprep.subr.mxu0 0.0
    %2771 = vmatpush2.msra.mxu0 %v2505
    %2772 = vmatprep.subr.mxu0 0.0
    %2773 = vmatpush2.msra.mxu0 %v2504
    %2774 = vmatprep.subr.mxu0 0.0
    %2775 = vmatpush2.msra.mxu0 %v2503
    %2776 = vmatprep.subr.mxu0 0.0
    %2777 = vmatpush2.msra.mxu0 %v2502
    %2778 = vmatprep.mubr.f32.mxu0 %v2621
    %2779 = vmatmul.mubr.f32.gmra.mxu0 %v2575
    %v2780 = vpop.f32.mrf.mxu0
    %v2781 = vadd.f32 0.0, %v2780
    %v2782 = vpop.f32.mrf.mxu0
    %2783 = vmatprep.mubr.f32.mxu0 %v2623
    %2784 = vmatmul.mubr.f32.gmra.mxu0 %v2589
    %v2785 = vpop.f32.mrf.mxu0
    %v2786 = vadd.f32 0.0, %v2785
    %v2787 = vpop.f32.mrf.mxu0
    %2788 = vmatprep.mubr.f32.mxu0 %v2625
    %2789 = vmatmul.mubr.f32.gmra.mxu0 %v2603
    %v2790 = vpop.f32.mrf.mxu0
    %v2791 = vadd.f32 0.0, %v2790
    %v2792 = vpop.f32.mrf.mxu0
    %2793 = vmatprep.mubr.f32.mxu0 %v2627
    %2794 = vmatmul.mubr.f32.gmra.mxu0 %v2613
    %v2795 = vpop.f32.mrf.mxu0
    %v2796 = vadd.f32 0.0, %v2795
    %v2797 = vpop.f32.mrf.mxu0
    %2798 = vdwg.mxu0
    %v2799 = vmax.f32 %v2696, %v2781
    %v2800 = vmax.f32 %v2701, %v2786
    %v2801 = vmax.f32 %v2706, %v2791
    %v2802 = vmax.f32 %v2711, %v2796
    %v2807 = vcombine.high %v2799, %v2799
    %v2809 = vunpack.c.l.s4 1983009808
    %v2810 = vunpack.c.0.s8 %v2809
    %v2811 = vlaneseq
    %v2812 = vshrl.u32 %v2811, 7
    %v2813 = vsub.s32 %v2810, %v2812
    %v2814 = vrot.slane %v2799, %v2813
    %v2816 = vunpack.c.l.s4 1983009808
    %v2817 = vunpack.c.0.s8 %v2816
    %v2818 = vlaneseq
    %v2819 = vshrl.u32 %v2818, 7
    %v2820 = vsub.s32 %v2817, %v2819
    %v2821 = vrot.slane %v2807, %v2820
    %v2822 = vcombine.high %v2814, %v2814
    %v2823 = vcombine.high %v2821, %v2821
    %v2824 = vcombine.high %v2800, %v2800
    %v2826 = vunpack.c.l.s4 1983009808
    %v2827 = vunpack.c.0.s8 %v2826
    %v2828 = vlaneseq
    %v2829 = vshrl.u32 %v2828, 7
    %v2830 = vsub.s32 %v2827, %v2829
    %v2831 = vrot.slane %v2800, %v2830
    %v2833 = vunpack.c.l.s4 1983009808
    %v2834 = vunpack.c.0.s8 %v2833
    %v2835 = vlaneseq
    %v2836 = vshrl.u32 %v2835, 7
    %v2837 = vsub.s32 %v2834, %v2836
    %v2838 = vrot.slane %v2824, %v2837
    %v2839 = vcombine.high %v2831, %v2831
    %v2840 = vcombine.high %v2838, %v2838
    %v2841 = vcombine.high %v2801, %v2801
    %v2843 = vunpack.c.l.s4 1983009808
    %v2844 = vunpack.c.0.s8 %v2843
    %v2845 = vlaneseq
    %v2846 = vshrl.u32 %v2845, 7
    %v2847 = vsub.s32 %v2844, %v2846
    %v2848 = vrot.slane %v2801, %v2847
    %v2850 = vunpack.c.l.s4 1983009808
    %v2851 = vunpack.c.0.s8 %v2850
    %v2852 = vlaneseq
    %v2853 = vshrl.u32 %v2852, 7
    %v2854 = vsub.s32 %v2851, %v2853
    %v2855 = vrot.slane %v2841, %v2854
    %v2856 = vcombine.high %v2848, %v2848
    %v2857 = vcombine.high %v2855, %v2855
    %v2859 = vunpack.c.l.s4 1983009808
    %v2860 = vunpack.c.0.s8 %v2859
    %v2861 = vlaneseq
    %v2862 = vshrl.u32 %v2861, 7
    %v2863 = vsub.s32 %v2860, %v2862
    %v2864 = vrot.slane %v2802, %v2863
    %v2865 = vcombine.high %v2864, %v2864
    %v2866 = vcombine.low %v2814, %v2822
    %v2867 = vcombine.low %v2821, %v2823
    %v2869 = vunpack.c.l.s4 1983009808
    %v2870 = vunpack.c.0.s8 %v2869
    %v2871 = vlaneseq
    %v2872 = vshrl.u32 %v2871, 7
    %v2873 = vsub.s32 %v2870, %v2872
    %v2874 = vrot.slane %v2866, %v2873
    %v2876 = vunpack.c.l.s4 1983009808
    %v2877 = vunpack.c.0.s8 %v2876
    %v2878 = vlaneseq
    %v2879 = vshrl.u32 %v2878, 7
    %v2880 = vsub.s32 %v2877, %v2879
    %v2881 = vrot.slane %v2867, %v2880
    %v2882 = vcombine.low %v2874, %v2881
    %v2883 = vcombine.low %v2831, %v2839
    %v2885 = vunpack.c.l.s4 1983009808
    %v2886 = vunpack.c.0.s8 %v2885
    %v2887 = vlaneseq
    %v2888 = vshrl.u32 %v2887, 7
    %v2889 = vsub.s32 %v2886, %v2888
    %v2890 = vrot.slane %v2883, %v2889
    %v2892 = vunpack.c.l.s4 1983009808
    %v2893 = vunpack.c.0.s8 %v2892
    %v2894 = vlaneseq
    %v2895 = vshrl.u32 %v2894, 7
    %v2896 = vsub.s32 %v2893, %v2895
    %v2897 = vrot.slane %v2838, %v2896
    %v2898 = vcombine.low %v2890, %v2897
    %v2899 = vcombine.low %v2840, %v2848
    %v2900 = vcombine.low %v2856, %v2855
    %v2902 = vunpack.c.l.s4 1983009808
    %v2903 = vunpack.c.0.s8 %v2902
    %v2904 = vlaneseq
    %v2905 = vshrl.u32 %v2904, 7
    %v2906 = vsub.s32 %v2903, %v2905
    %v2907 = vrot.slane %v2899, %v2906
    %v2909 = vunpack.c.l.s4 1983009808
    %v2910 = vunpack.c.0.s8 %v2909
    %v2911 = vlaneseq
    %v2912 = vshrl.u32 %v2911, 7
    %v2913 = vsub.s32 %v2910, %v2912
    %v2914 = vrot.slane %v2900, %v2913
    %v2915 = vcombine.low %v2907, %v2914
    %v2916 = vcombine.low %v2857, %v2864
    %v2918 = vunpack.c.l.s4 1983009808
    %v2919 = vunpack.c.0.s8 %v2918
    %v2920 = vlaneseq
    %v2921 = vshrl.u32 %v2920, 7
    %v2922 = vsub.s32 %v2919, %v2921
    %v2923 = vrot.slane %v2916, %v2922
    %v2925 = vunpack.c.l.s4 1983009808
    %v2926 = vunpack.c.0.s8 %v2925
    %v2927 = vlaneseq
    %v2928 = vshrl.u32 %v2927, 7
    %v2929 = vsub.s32 %v2926, %v2928
    %v2930 = vrot.slane %v2865, %v2929
    %v2931 = vcombine.low %v2923, %v2930
    %vm2936 = vcmask 687104
    %2937 = vst.msk [vmem:[%s15] sm:$0xff] %vm2936, %v2882
    %vm2938 = vcmask 685056
    %2939 = vst.msk [vmem:[%s15 + $0x8] sm:$0x3f] %vm2938, %v2898
    %2940 = vst.msk [vmem:[%s15 + $0x10] sm:$0xff] %vm2936, %v2915
    %2941 = vst.msk [vmem:[%s15 + $0x18] sm:$0x3f] %vm2938, %v2931
    %v2942 = vld [vmem:[%s5] sm:$0xff]
    %v2943 = vld [vmem:[%s5 + $0x8] sm:$0xff]
    %v2944 = vld [vmem:[%s5 + $0x10] sm:$0xff]
    %v2945 = vld [vmem:[%s5 + $0x18] sm:$0xff]
    %v2946 = vld [vmem:[%s5 + $0x20] sm:$0xff]
    %v2947 = vld [vmem:[%s5 + $0x28] sm:$0xff]
    %v2948 = vld [vmem:[%s5 + $0x30] sm:$0xff]
    %v2949 = vld [vmem:[%s5 + $0x38] sm:$0xff]
    %v2950 = vld [vmem:[%s5 + $0x40] sm:$0xff]
    %v2951 = vld [vmem:[%s5 + $0x48] sm:$0xff]
    %v2952 = vld [vmem:[%s5 + $0x50] sm:$0xff]
    %v2953 = vld [vmem:[%s5 + $0x58] sm:$0xff]
    %v2954 = vld [vmem:[%s5 + $0x60] sm:$0xff]
    %v2955 = vld [vmem:[%s5 + $0x68] sm:$0xff]
    %v2956 = vld [vmem:[%s5 + $0x70] sm:$0xff]
    %v2957 = vld [vmem:[%s5 + $0x78] sm:$0xff]
    %v2958 = vld [vmem:[%s5 + $0x80] sm:$0xff]
    %v2959 = vld [vmem:[%s5 + $0x88] sm:$0xff]
    %v2960 = vld [vmem:[%s5 + $0x90] sm:$0xff]
    %v2961 = vld [vmem:[%s5 + $0x98] sm:$0xff]
    %v2962 = vld [vmem:[%s5 + $0xa0] sm:$0xf]
    %v2963 = vld [vmem:[%s5 + $0xa8] sm:$0xf]
    %vm2964 = vmor %vm597, %vm2565
    %vm2965 = vmor %vm2964, %vm598
    %vm2966 = vmor %vm2965, %vm2572
    %v2967 = vrot.slane %v2814, 7
    %v2968 = vrot.slane %v2967, 2
    %v2969 = vrot.slane %v2822, 7
    %v2970 = vsel %vm2966, %v2968, %v2969
    %v2971 = vrot.slane %v2969, 2
    %v2972 = vrot.slane %v2821, 7
    %v2973 = vsel %vm2966, %v2971, %v2972
    %v2974 = vrot.slane %v2972, 2
    %v2975 = vrot.slane %v2823, 7
    %v2976 = vsel %vm2966, %v2974, %v2975
    %v2977 = vrot.slane %v2975, 2
    %v2978 = vrot.slane %v2831, 7
    %v2979 = vsel %vm2966, %v2977, %v2978
    %v2980 = vrot.slane %v2978, 2
    %v2981 = vrot.slane %v2839, 7
    %v2982 = vsel %vm2966, %v2980, %v2981
    %v2983 = vrot.slane %v2840, 7
    %v2984 = vrot.slane %v2983, 2
    %v2985 = vrot.slane %v2848, 7
    %v2986 = vsel %vm2966, %v2984, %v2985
    %v2987 = vrot.slane %v2985, 2
    %v2988 = vrot.slane %v2856, 7
    %v2989 = vsel %vm2966, %v2987, %v2988
    %v2990 = vrot.slane %v2988, 2
    %v2991 = vrot.slane %v2855, 7
    %v2992 = vsel %vm2966, %v2990, %v2991
    %v2993 = vrot.slane %v2991, 2
    %v2994 = vrot.slane %v2857, 7
    %v2995 = vsel %vm2966, %v2993, %v2994
    %v2996 = vrot.slane %v2994, 2
    %v2997 = vrot.slane %v2864, 7
    %v2998 = vsel %vm2966, %v2996, %v2997
    %s2999 = scalar_lea.vmem %s5, 176
    %v3000 = vld [vmem:[%s2999] sm:$0xff]
    %v3001 = vld [vmem:[%s2999 + $0x8] sm:$0xff]
    %v3002 = vld [vmem:[%s2999 + $0x10] sm:$0xff]
    %v3003 = vld [vmem:[%s2999 + $0x18] sm:$0xff]
    %v3004 = vld [vmem:[%s2999 + $0x20] sm:$0xff]
    %v3005 = vld [vmem:[%s2999 + $0x28] sm:$0xff]
    %v3006 = vld [vmem:[%s2999 + $0x30] sm:$0xff]
    %v3007 = vld [vmem:[%s2999 + $0x38] sm:$0xff]
    %v3008 = vld [vmem:[%s2999 + $0x40] sm:$0xff]
    %v3009 = vld [vmem:[%s2999 + $0x48] sm:$0xff]
    %v3010 = vld [vmem:[%s2999 + $0x50] sm:$0xff]
    %v3011 = vld [vmem:[%s2999 + $0x58] sm:$0xff]
    %v3012 = vld [vmem:[%s2999 + $0x60] sm:$0xff]
    %v3013 = vld [vmem:[%s2999 + $0x68] sm:$0xff]
    %v3014 = vld [vmem:[%s2999 + $0x70] sm:$0xff]
    %v3015 = vld [vmem:[%s2999 + $0x78] sm:$0xff]
    %v3016 = vld [vmem:[%s2999 + $0x80] sm:$0xff]
    %v3017 = vld [vmem:[%s2999 + $0x88] sm:$0xff]
    %v3018 = vld [vmem:[%s2999 + $0x90] sm:$0xff]
    %v3019 = vld [vmem:[%s2999 + $0x98] sm:$0xff]
    %v3020 = vld [vmem:[%s2999 + $0xa0] sm:$0xf]
    %v3021 = vld [vmem:[%s2999 + $0xa8] sm:$0xf]
    %v3022 = vcombine.low %v2970, %v2973
    %v3023 = vcombine.low %v2976, %v2979
    %v3025 = vunpack.c.l.s4 1983009808
    %v3026 = vunpack.c.0.s8 %v3025
    %v3027 = vlaneseq
    %v3028 = vshrl.u32 %v3027, 7
    %v3029 = vsub.s32 %v3026, %v3028
    %v3030 = vrot.slane %v3022, %v3029
    %v3032 = vunpack.c.l.s4 1983009808
    %v3033 = vunpack.c.0.s8 %v3032
    %v3034 = vlaneseq
    %v3035 = vshrl.u32 %v3034, 7
    %v3036 = vsub.s32 %v3033, %v3035
    %v3037 = vrot.slane %v3023, %v3036
    %v3038 = vcombine.low %v3030, %v3037
    %v3039 = vcombine.low %v2982, %v2986
    %v3040 = vcombine.low %v2989, %v2992
    %v3042 = vunpack.c.l.s4 1983009808
    %v3043 = vunpack.c.0.s8 %v3042
    %v3044 = vlaneseq
    %v3045 = vshrl.u32 %v3044, 7
    %v3046 = vsub.s32 %v3043, %v3045
    %v3047 = vrot.slane %v3039, %v3046
    %v3049 = vunpack.c.l.s4 1983009808
    %v3050 = vunpack.c.0.s8 %v3049
    %v3051 = vlaneseq
    %v3052 = vshrl.u32 %v3051, 7
    %v3053 = vsub.s32 %v3050, %v3052
    %v3054 = vrot.slane %v3040, %v3053
    %v3055 = vcombine.low %v3047, %v3054
    %v3056 = vcombine.low %v2995, %v2998
    %v3058 = vunpack.c.l.s4 1983009808
    %v3059 = vunpack.c.0.s8 %v3058
    %v3060 = vlaneseq
    %v3061 = vshrl.u32 %v3060, 7
    %v3062 = vsub.s32 %v3059, %v3061
    %v3063 = vrot.slane %v3056, %v3062
    %v3064 = vsel %vm2936, %v3038, 0
    %v3066 = vsel %vm2936, %v3055, 0
    %v3068 = vsel %vm2936, %v3063, 0
    %vm3070 = vcmask 1043456
    %v3072 = vsel %vm3070, %v3020, 0
    %v3075 = vsel %vm3070, %v3021, 0
    %3077 = vmatprep.subr.mxu0 0.0
    %3078 = vmatpush1.msra.mxu0 0.0
    %3079 = vmatprep.subr.mxu0 0.0
    %3080 = vmatpush1.msra.mxu0 0.0
    %3081 = vmatprep.subr.mxu0 0.0
    %3082 = vmatpush1.msra.mxu0 0.0
    %3083 = vmatprep.subr.mxu0 0.0
    %3084 = vmatpush1.msra.mxu0 0.0
    %3085 = vmatprep.subr.mxu0 0.0
    %3086 = vmatpush1.msra.mxu0 0.0
    %3087 = vmatprep.subr.mxu0 %v3075
    %3088 = vmatpush1.msra.mxu0 %v3072
    %3089 = vmatprep.subr.mxu0 %v3019
    %3090 = vmatpush1.msra.mxu0 %v3018
    %3091 = vmatprep.subr.mxu0 %v3017
    %3092 = vmatpush1.msra.mxu0 %v3016
    %3093 = vmatprep.subr.mxu0 %v3015
    %3094 = vmatpush1.msra.mxu0 %v3014
    %3095 = vmatprep.subr.mxu0 %v3013
    %3096 = vmatpush1.msra.mxu0 %v3012
    %3097 = vmatprep.subr.mxu0 %v3011
    %3098 = vmatpush1.msra.mxu0 %v3010
    %3099 = vmatprep.subr.mxu0 %v3009
    %3100 = vmatpush1.msra.mxu0 %v3008
    %3101 = vmatprep.subr.mxu0 %v3007
    %3102 = vmatpush1.msra.mxu0 %v3006
    %3103 = vmatprep.subr.mxu0 %v3005
    %3104 = vmatpush1.msra.mxu0 %v3004
    %3105 = vmatprep.subr.mxu0 %v3003
    %3106 = vmatpush1.msra.mxu0 %v3002
    %3107 = vmatprep.subr.mxu0 %v3001
    %3108 = vmatpush1.msra.mxu0 %v3000
    %3109 = vmatprep.subr.mxu0 0.0
    %3110 = vmatpush2.msra.mxu0 0.0
    %3111 = vmatprep.subr.mxu0 0.0
    %3112 = vmatpush2.msra.mxu0 0.0
    %3113 = vmatprep.subr.mxu0 0.0
    %3114 = vmatpush2.msra.mxu0 0.0
    %3115 = vmatprep.subr.mxu0 0.0
    %3116 = vmatpush2.msra.mxu0 0.0
    %3117 = vmatprep.subr.mxu0 0.0
    %3118 = vmatpush2.msra.mxu0 0.0
    %3119 = vmatprep.subr.mxu0 0.0
    %3120 = vmatpush2.msra.mxu0 0.0
    %3121 = vmatprep.subr.mxu0 0.0
    %3122 = vmatpush2.msra.mxu0 0.0
    %3123 = vmatprep.subr.mxu0 0.0
    %3124 = vmatpush2.msra.mxu0 0.0
    %3125 = vmatprep.subr.mxu0 0.0
    %3126 = vmatpush2.msra.mxu0 0.0
    %3127 = vmatprep.subr.mxu0 0.0
    %3128 = vmatpush2.msra.mxu0 0.0
    %3129 = vmatprep.subr.mxu0 0.0
    %3130 = vmatpush2.msra.mxu0 0.0
    %3131 = vmatprep.subr.mxu0 0.0
    %3132 = vmatpush2.msra.mxu0 0.0
    %3133 = vmatprep.subr.mxu0 0.0
    %3134 = vmatpush2.msra.mxu0 0.0
    %3135 = vmatprep.subr.mxu0 0.0
    %3136 = vmatpush2.msra.mxu0 0.0
    %3137 = vmatprep.subr.mxu0 0.0
    %3138 = vmatpush2.msra.mxu0 0.0
    %3139 = vmatprep.subr.mxu0 0.0
    %3140 = vmatpush2.msra.mxu0 0.0
    %3141 = vmatprep.mubr.f32.mxu0 0.0
    %3142 = vmatmul.mubr.f32.gmra.mxu0 %v3064
    %v3143 = vpop.f32.mrf.mxu0
    %v3144 = vadd.f32 0.0, %v3143
    %v3145 = vpop.f32.mrf.mxu0
    %v3146 = vadd.f32 0.0, %v3145
    %3147 = vmatprep.mubr.f32.mxu0 0.0
    %3148 = vmatmul.mubr.f32.gmra.mxu0 %v3066
    %v3149 = vpop.f32.mrf.mxu0
    %v3150 = vadd.f32 0.0, %v3149
    %v3151 = vpop.f32.mrf.mxu0
    %v3152 = vadd.f32 0.0, %v3151
    %3153 = vmatprep.mubr.f32.mxu0 0.0
    %3154 = vmatmul.mubr.f32.gmra.mxu0 %v3068
    %v3155 = vpop.f32.mrf.mxu0
    %v3156 = vadd.f32 0.0, %v3155
    %v3157 = vpop.f32.mrf.mxu0
    %v3158 = vadd.f32 0.0, %v3157
    %3159 = vdwg.mxu0
    %v3160 = vcombine.low %v2831, %v2840
    %v3161 = vcombine.low %v2848, %v2856
    %v3163 = vunpack.c.l.s4 1983009808
    %v3164 = vunpack.c.0.s8 %v3163
    %v3165 = vlaneseq
    %v3166 = vshrl.u32 %v3165, 7
    %v3167 = vsub.s32 %v3164, %v3166
    %v3168 = vrot.slane %v3160, %v3167
    %v3170 = vunpack.c.l.s4 1983009808
    %v3171 = vunpack.c.0.s8 %v3170
    %v3172 = vlaneseq
    %v3173 = vshrl.u32 %v3172, 7
    %v3174 = vsub.s32 %v3171, %v3173
    %v3175 = vrot.slane %v3161, %v3174
    %v3176 = vcombine.low %v3168, %v3175
    %v3177 = vcombine.low %v2855, %v2857
    %v3179 = vunpack.c.l.s4 1983009808
    %v3180 = vunpack.c.0.s8 %v3179
    %v3181 = vlaneseq
    %v3182 = vshrl.u32 %v3181, 7
    %v3183 = vsub.s32 %v3180, %v3182
    %v3184 = vrot.slane %v3177, %v3183
    %v3185 = vsel %vm2936, %v2882, 0
    %v3187 = vsel %vm2936, %v3176, 0
    %v3189 = vsel %vm2936, %v3184, 0
    %v3192 = vsel %vm3070, %v2962, 0
    %v3195 = vsel %vm3070, %v2963, 0
    %3197 = vmatprep.subr.mxu0 0.0
    %3198 = vmatpush1.msra.mxu0 0.0
    %3199 = vmatprep.subr.mxu0 0.0
    %3200 = vmatpush1.msra.mxu0 0.0
    %3201 = vmatprep.subr.mxu0 0.0
    %3202 = vmatpush1.msra.mxu0 0.0
    %3203 = vmatprep.subr.mxu0 0.0
    %3204 = vmatpush1.msra.mxu0 0.0
    %3205 = vmatprep.subr.mxu0 0.0
    %3206 = vmatpush1.msra.mxu0 0.0
    %3207 = vmatprep.subr.mxu0 %v3195
    %3208 = vmatpush1.msra.mxu0 %v3192
    %3209 = vmatprep.subr.mxu0 %v2961
    %3210 = vmatpush1.msra.mxu0 %v2960
    %3211 = vmatprep.subr.mxu0 %v2959
    %3212 = vmatpush1.msra.mxu0 %v2958
    %3213 = vmatprep.subr.mxu0 %v2957
    %3214 = vmatpush1.msra.mxu0 %v2956
    %3215 = vmatprep.subr.mxu0 %v2955
    %3216 = vmatpush1.msra.mxu0 %v2954
    %3217 = vmatprep.subr.mxu0 %v2953
    %3218 = vmatpush1.msra.mxu0 %v2952
    %3219 = vmatprep.subr.mxu0 %v2951
    %3220 = vmatpush1.msra.mxu0 %v2950
    %3221 = vmatprep.subr.mxu0 %v2949
    %3222 = vmatpush1.msra.mxu0 %v2948
    %3223 = vmatprep.subr.mxu0 %v2947
    %3224 = vmatpush1.msra.mxu0 %v2946
    %3225 = vmatprep.subr.mxu0 %v2945
    %3226 = vmatpush1.msra.mxu0 %v2944
    %3227 = vmatprep.subr.mxu0 %v2943
    %3228 = vmatpush1.msra.mxu0 %v2942
    %3229 = vmatprep.subr.mxu0 0.0
    %3230 = vmatpush2.msra.mxu0 0.0
    %3231 = vmatprep.subr.mxu0 0.0
    %3232 = vmatpush2.msra.mxu0 0.0
    %3233 = vmatprep.subr.mxu0 0.0
    %3234 = vmatpush2.msra.mxu0 0.0
    %3235 = vmatprep.subr.mxu0 0.0
    %3236 = vmatpush2.msra.mxu0 0.0
    %3237 = vmatprep.subr.mxu0 0.0
    %3238 = vmatpush2.msra.mxu0 0.0
    %3239 = vmatprep.subr.mxu0 0.0
    %3240 = vmatpush2.msra.mxu0 0.0
    %3241 = vmatprep.subr.mxu0 0.0
    %3242 = vmatpush2.msra.mxu0 0.0
    %3243 = vmatprep.subr.mxu0 0.0
    %3244 = vmatpush2.msra.mxu0 0.0
    %3245 = vmatprep.subr.mxu0 0.0
    %3246 = vmatpush2.msra.mxu0 0.0
    %3247 = vmatprep.subr.mxu0 0.0
    %3248 = vmatpush2.msra.mxu0 0.0
    %3249 = vmatprep.subr.mxu0 0.0
    %3250 = vmatpush2.msra.mxu0 0.0
    %3251 = vmatprep.subr.mxu0 0.0
    %3252 = vmatpush2.msra.mxu0 0.0
    %3253 = vmatprep.subr.mxu0 0.0
    %3254 = vmatpush2.msra.mxu0 0.0
    %3255 = vmatprep.subr.mxu0 0.0
    %3256 = vmatpush2.msra.mxu0 0.0
    %3257 = vmatprep.subr.mxu0 0.0
    %3258 = vmatpush2.msra.mxu0 0.0
    %3259 = vmatprep.subr.mxu0 0.0
    %3260 = vmatpush2.msra.mxu0 0.0
    %3261 = vmatprep.mubr.f32.mxu0 0.0
    %3262 = vmatmul.mubr.f32.gmra.mxu0 %v3185
    %v3263 = vpop.f32.mrf.mxu0
    %v3264 = vadd.f32 %v3144, %v3263
    %v3265 = vpop.f32.mrf.mxu0
    %v3266 = vadd.f32 %v3146, %v3265
    %3267 = vmatprep.mubr.f32.mxu0 0.0
    %3268 = vmatmul.mubr.f32.gmra.mxu0 %v3187
    %v3269 = vpop.f32.mrf.mxu0
    %v3270 = vadd.f32 %v3150, %v3269
    %v3271 = vpop.f32.mrf.mxu0
    %v3272 = vadd.f32 %v3152, %v3271
    %3273 = vmatprep.mubr.f32.mxu0 0.0
    %3274 = vmatmul.mubr.f32.gmra.mxu0 %v3189
    %v3275 = vpop.f32.mrf.mxu0
    %v3276 = vadd.f32 %v3156, %v3275
    %v3277 = vpop.f32.mrf.mxu0
    %v3278 = vadd.f32 %v3158, %v3277
    %3279 = vdwg.mxu0
    %s3280 = scalar_lea.vmem %s5, 352
    %v3281 = vld [vmem:[%s3280] sm:$0xff]
    %v3282 = vld [vmem:[%s3280 + $0x8] sm:$0xff]
    %v3283 = vld [vmem:[%s3280 + $0x10] sm:$0xff]
    %v3284 = vld [vmem:[%s3280 + $0x18] sm:$0xff]
    %v3285 = vld [vmem:[%s3280 + $0x20] sm:$0xff]
    %v3286 = vld [vmem:[%s3280 + $0x28] sm:$0xff]
    %v3287 = vld [vmem:[%s3280 + $0x30] sm:$0xff]
    %v3288 = vld [vmem:[%s3280 + $0x38] sm:$0xff]
    %v3289 = vld [vmem:[%s3280 + $0x40] sm:$0xff]
    %v3290 = vld [vmem:[%s3280 + $0x48] sm:$0xff]
    %v3291 = vld [vmem:[%s3280 + $0x50] sm:$0xff]
    %v3292 = vld [vmem:[%s3280 + $0x58] sm:$0xff]
    %v3293 = vld [vmem:[%s3280 + $0x60] sm:$0xff]
    %v3294 = vld [vmem:[%s3280 + $0x68] sm:$0xff]
    %v3295 = vld [vmem:[%s3280 + $0x70] sm:$0xff]
    %v3296 = vld [vmem:[%s3280 + $0x78] sm:$0xff]
    %v3297 = vld [vmem:[%s3280 + $0x80] sm:$0xff]
    %v3298 = vld [vmem:[%s3280 + $0x88] sm:$0xff]
    %v3299 = vld [vmem:[%s3280 + $0x90] sm:$0xff]
    %v3300 = vld [vmem:[%s3280 + $0x98] sm:$0xff]
    %v3301 = vld [vmem:[%s3280 + $0xa0] sm:$0xf]
    %v3302 = vld [vmem:[%s3280 + $0xa8] sm:$0xf]
    %v3303 = vcombine.low %v2822, %v2821
    %v3304 = vcombine.low %v2823, %v2831
    %v3306 = vunpack.c.l.s4 1983009808
    %v3307 = vunpack.c.0.s8 %v3306
    %v3308 = vlaneseq
    %v3309 = vshrl.u32 %v3308, 7
    %v3310 = vsub.s32 %v3307, %v3309
    %v3311 = vrot.slane %v3303, %v3310
    %v3313 = vunpack.c.l.s4 1983009808
    %v3314 = vunpack.c.0.s8 %v3313
    %v3315 = vlaneseq
    %v3316 = vshrl.u32 %v3315, 7
    %v3317 = vsub.s32 %v3314, %v3316
    %v3318 = vrot.slane %v3304, %v3317
    %v3319 = vcombine.low %v3311, %v3318
    %v3320 = vcombine.low %v2839, %v2848
    %v3322 = vunpack.c.l.s4 1983009808
    %v3323 = vunpack.c.0.s8 %v3322
    %v3324 = vlaneseq
    %v3325 = vshrl.u32 %v3324, 7
    %v3326 = vsub.s32 %v3323, %v3325
    %v3327 = vrot.slane %v3320, %v3326
    %v3328 = vcombine.low %v3327, %v2914
    %v3329 = vsel %vm2936, %v3319, 0
    %v3331 = vsel %vm2936, %v3328, 0
    %v3333 = vsel %vm2936, %v2923, 0
    %v3336 = vsel %vm3070, %v3301, 0
    %v3339 = vsel %vm3070, %v3302, 0
    %3341 = vmatprep.subr.mxu0 0.0
    %3342 = vmatpush1.msra.mxu0 0.0
    %3343 = vmatprep.subr.mxu0 0.0
    %3344 = vmatpush1.msra.mxu0 0.0
    %3345 = vmatprep.subr.mxu0 0.0
    %3346 = vmatpush1.msra.mxu0 0.0
    %3347 = vmatprep.subr.mxu0 0.0
    %3348 = vmatpush1.msra.mxu0 0.0
    %3349 = vmatprep.subr.mxu0 0.0
    %3350 = vmatpush1.msra.mxu0 0.0
    %3351 = vmatprep.subr.mxu0 %v3339
    %3352 = vmatpush1.msra.mxu0 %v3336
    %3353 = vmatprep.subr.mxu0 %v3300
    %3354 = vmatpush1.msra.mxu0 %v3299
    %3355 = vmatprep.subr.mxu0 %v3298
    %3356 = vmatpush1.msra.mxu0 %v3297
    %3357 = vmatprep.subr.mxu0 %v3296
    %3358 = vmatpush1.msra.mxu0 %v3295
    %3359 = vmatprep.subr.mxu0 %v3294
    %3360 = vmatpush1.msra.mxu0 %v3293
    %3361 = vmatprep.subr.mxu0 %v3292
    %3362 = vmatpush1.msra.mxu0 %v3291
    %3363 = vmatprep.subr.mxu0 %v3290
    %3364 = vmatpush1.msra.mxu0 %v3289
    %3365 = vmatprep.subr.mxu0 %v3288
    %3366 = vmatpush1.msra.mxu0 %v3287
    %3367 = vmatprep.subr.mxu0 %v3286
    %3368 = vmatpush1.msra.mxu0 %v3285
    %3369 = vmatprep.subr.mxu0 %v3284
    %3370 = vmatpush1.msra.mxu0 %v3283
    %3371 = vmatprep.subr.mxu0 %v3282
    %3372 = vmatpush1.msra.mxu0 %v3281
    %3373 = vmatprep.subr.mxu0 0.0
    %3374 = vmatpush2.msra.mxu0 0.0
    %3375 = vmatprep.subr.mxu0 0.0
    %3376 = vmatpush2.msra.mxu0 0.0
    %3377 = vmatprep.subr.mxu0 0.0
    %3378 = vmatpush2.msra.mxu0 0.0
    %3379 = vmatprep.subr.mxu0 0.0
    %3380 = vmatpush2.msra.mxu0 0.0
    %3381 = vmatprep.subr.mxu0 0.0
    %3382 = vmatpush2.msra.mxu0 0.0
    %3383 = vmatprep.subr.mxu0 0.0
    %3384 = vmatpush2.msra.mxu0 0.0
    %3385 = vmatprep.subr.mxu0 0.0
    %3386 = vmatpush2.msra.mxu0 0.0
    %3387 = vmatprep.subr.mxu0 0.0
    %3388 = vmatpush2.msra.mxu0 0.0
    %3389 = vmatprep.subr.mxu0 0.0
    %3390 = vmatpush2.msra.mxu0 0.0
    %3391 = vmatprep.subr.mxu0 0.0
    %3392 = vmatpush2.msra.mxu0 0.0
    %3393 = vmatprep.subr.mxu0 0.0
    %3394 = vmatpush2.msra.mxu0 0.0
    %3395 = vmatprep.subr.mxu0 0.0
    %3396 = vmatpush2.msra.mxu0 0.0
    %3397 = vmatprep.subr.mxu0 0.0
    %3398 = vmatpush2.msra.mxu0 0.0
    %3399 = vmatprep.subr.mxu0 0.0
    %3400 = vmatpush2.msra.mxu0 0.0
    %3401 = vmatprep.subr.mxu0 0.0
    %3402 = vmatpush2.msra.mxu0 0.0
    %3403 = vmatprep.subr.mxu0 0.0
    %3404 = vmatpush2.msra.mxu0 0.0
    %3405 = vmatprep.mubr.f32.mxu0 0.0
    %3406 = vmatmul.mubr.f32.gmra.mxu0 %v3329
    %v3407 = vpop.f32.mrf.mxu0
    %v3408 = vadd.f32 0.0, %v3407
    %v3409 = vpop.f32.mrf.mxu0
    %v3410 = vadd.f32 0.0, %v3409
    %3411 = vmatprep.mubr.f32.mxu0 0.0
    %3412 = vmatmul.mubr.f32.gmra.mxu0 %v3331
    %v3413 = vpop.f32.mrf.mxu0
    %v3414 = vadd.f32 0.0, %v3413
    %v3415 = vpop.f32.mrf.mxu0
    %v3416 = vadd.f32 0.0, %v3415
    %3417 = vmatprep.mubr.f32.mxu0 0.0
    %3418 = vmatmul.mubr.f32.gmra.mxu0 %v3333
    %v3419 = vpop.f32.mrf.mxu0
    %v3420 = vadd.f32 0.0, %v3419
    %v3421 = vpop.f32.mrf.mxu0
    %v3422 = vadd.f32 0.0, %v3421
    %3423 = vdwg.mxu0
    %v3424 = vadd.f32 %v3264, %v3408
    %v3425 = vadd.f32 %v3266, %v3410
    %v3426 = vadd.f32 %v3270, %v3414
    %v3427 = vadd.f32 %v3272, %v3416
    %v3428 = vadd.f32 %v3276, %v3420
    %v3429 = vadd.f32 %v3278, %v3422
    %v3430 = vrot.slane %v2981, 2
    %v3431 = vrot.slane %v2838, 7
    %v3432 = vsel %vm2966, %v3430, %v3431
    %v3433 = vrot.slane %v2997, 2
    %v3434 = vrot.slane %v2865, 7
    %v3435 = vsel %vm2966, %v3433, %v3434
    %s3436 = scalar_lea.vmem %s5, 528
    %v3437 = vld [vmem:[%s3436] sm:$0xff]
    %v3438 = vld [vmem:[%s3436 + $0x8] sm:$0xff]
    %v3439 = vld [vmem:[%s3436 + $0x10] sm:$0xff]
    %v3440 = vld [vmem:[%s3436 + $0x18] sm:$0xff]
    %v3441 = vld [vmem:[%s3436 + $0x20] sm:$0xff]
    %v3442 = vld [vmem:[%s3436 + $0x28] sm:$0xff]
    %v3443 = vld [vmem:[%s3436 + $0x30] sm:$0xff]
    %v3444 = vld [vmem:[%s3436 + $0x38] sm:$0xff]
    %v3445 = vld [vmem:[%s3436 + $0x40] sm:$0xff]
    %v3446 = vld [vmem:[%s3436 + $0x48] sm:$0xff]
    %v3447 = vld [vmem:[%s3436 + $0x50] sm:$0xff]
    %v3448 = vld [vmem:[%s3436 + $0x58] sm:$0xff]
    %v3449 = vld [vmem:[%s3436 + $0x60] sm:$0xff]
    %v3450 = vld [vmem:[%s3436 + $0x68] sm:$0xff]
    %v3451 = vld [vmem:[%s3436 + $0x70] sm:$0xff]
    %v3452 = vld [vmem:[%s3436 + $0x78] sm:$0xff]
    %v3453 = vld [vmem:[%s3436 + $0x80] sm:$0xff]
    %v3454 = vld [vmem:[%s3436 + $0x88] sm:$0xff]
    %v3455 = vld [vmem:[%s3436 + $0x90] sm:$0xff]
    %v3456 = vld [vmem:[%s3436 + $0x98] sm:$0xff]
    %v3457 = vld [vmem:[%s3436 + $0xa0] sm:$0xf]
    %v3458 = vld [vmem:[%s3436 + $0xa8] sm:$0xf]
    %v3459 = vcombine.low %v2973, %v2976
    %v3460 = vcombine.low %v2979, %v2982
    %v3462 = vunpack.c.l.s4 1983009808
    %v3463 = vunpack.c.0.s8 %v3462
    %v3464 = vlaneseq
    %v3465 = vshrl.u32 %v3464, 7
    %v3466 = vsub.s32 %v3463, %v3465
    %v3467 = vrot.slane %v3459, %v3466
    %v3469 = vunpack.c.l.s4 1983009808
    %v3470 = vunpack.c.0.s8 %v3469
    %v3471 = vlaneseq
    %v3472 = vshrl.u32 %v3471, 7
    %v3473 = vsub.s32 %v3470, %v3472
    %v3474 = vrot.slane %v3460, %v3473
    %v3475 = vcombine.low %v3467, %v3474
    %v3476 = vcombine.low %v3432, %v2989
    %v3477 = vcombine.low %v2992, %v2995
    %v3479 = vunpack.c.l.s4 1983009808
    %v3480 = vunpack.c.0.s8 %v3479
    %v3481 = vlaneseq
    %v3482 = vshrl.u32 %v3481, 7
    %v3483 = vsub.s32 %v3480, %v3482
    %v3484 = vrot.slane %v3476, %v3483
    %v3486 = vunpack.c.l.s4 1983009808
    %v3487 = vunpack.c.0.s8 %v3486
    %v3488 = vlaneseq
    %v3489 = vshrl.u32 %v3488, 7
    %v3490 = vsub.s32 %v3487, %v3489
    %v3491 = vrot.slane %v3477, %v3490
    %v3492 = vcombine.low %v3484, %v3491
    %v3493 = vcombine.low %v2998, %v3435
    %v3495 = vunpack.c.l.s4 1983009808
    %v3496 = vunpack.c.0.s8 %v3495
    %v3497 = vlaneseq
    %v3498 = vshrl.u32 %v3497, 7
    %v3499 = vsub.s32 %v3496, %v3498
    %v3500 = vrot.slane %v3493, %v3499
    %v3501 = vsel %vm2936, %v3475, 0
    %v3503 = vsel %vm2936, %v3492, 0
    %v3505 = vsel %vm2936, %v3500, 0
    %v3508 = vsel %vm3070, %v3457, 0
    %v3511 = vsel %vm3070, %v3458, 0
    %3513 = vmatprep.subr.mxu0 0.0
    %3514 = vmatpush1.msra.mxu0 0.0
    %3515 = vmatprep.subr.mxu0 0.0
    %3516 = vmatpush1.msra.mxu0 0.0
    %3517 = vmatprep.subr.mxu0 0.0
    %3518 = vmatpush1.msra.mxu0 0.0
    %3519 = vmatprep.subr.mxu0 0.0
    %3520 = vmatpush1.msra.mxu0 0.0
    %3521 = vmatprep.subr.mxu0 0.0
    %3522 = vmatpush1.msra.mxu0 0.0
    %3523 = vmatprep.subr.mxu0 %v3511
    %3524 = vmatpush1.msra.mxu0 %v3508
    %3525 = vmatprep.subr.mxu0 %v3456
    %3526 = vmatpush1.msra.mxu0 %v3455
    %3527 = vmatprep.subr.mxu0 %v3454
    %3528 = vmatpush1.msra.mxu0 %v3453
    %3529 = vmatprep.subr.mxu0 %v3452
    %3530 = vmatpush1.msra.mxu0 %v3451
    %3531 = vmatprep.subr.mxu0 %v3450
    %3532 = vmatpush1.msra.mxu0 %v3449
    %3533 = vmatprep.subr.mxu0 %v3448
    %3534 = vmatpush1.msra.mxu0 %v3447
    %3535 = vmatprep.subr.mxu0 %v3446
    %3536 = vmatpush1.msra.mxu0 %v3445
    %3537 = vmatprep.subr.mxu0 %v3444
    %3538 = vmatpush1.msra.mxu0 %v3443
    %3539 = vmatprep.subr.mxu0 %v3442
    %3540 = vmatpush1.msra.mxu0 %v3441
    %3541 = vmatprep.subr.mxu0 %v3440
    %3542 = vmatpush1.msra.mxu0 %v3439
    %3543 = vmatprep.subr.mxu0 %v3438
    %3544 = vmatpush1.msra.mxu0 %v3437
    %3545 = vmatprep.subr.mxu0 0.0
    %3546 = vmatpush2.msra.mxu0 0.0
    %3547 = vmatprep.subr.mxu0 0.0
    %3548 = vmatpush2.msra.mxu0 0.0
    %3549 = vmatprep.subr.mxu0 0.0
    %3550 = vmatpush2.msra.mxu0 0.0
    %3551 = vmatprep.subr.mxu0 0.0
    %3552 = vmatpush2.msra.mxu0 0.0
    %3553 = vmatprep.subr.mxu0 0.0
    %3554 = vmatpush2.msra.mxu0 0.0
    %3555 = vmatprep.subr.mxu0 0.0
    %3556 = vmatpush2.msra.mxu0 0.0
    %3557 = vmatprep.subr.mxu0 0.0
    %3558 = vmatpush2.msra.mxu0 0.0
    %3559 = vmatprep.subr.mxu0 0.0
    %3560 = vmatpush2.msra.mxu0 0.0
    %3561 = vmatprep.subr.mxu0 0.0
    %3562 = vmatpush2.msra.mxu0 0.0
    %3563 = vmatprep.subr.mxu0 0.0
    %3564 = vmatpush2.msra.mxu0 0.0
    %3565 = vmatprep.subr.mxu0 0.0
    %3566 = vmatpush2.msra.mxu0 0.0
    %3567 = vmatprep.subr.mxu0 0.0
    %3568 = vmatpush2.msra.mxu0 0.0
    %3569 = vmatprep.subr.mxu0 0.0
    %3570 = vmatpush2.msra.mxu0 0.0
    %3571 = vmatprep.subr.mxu0 0.0
    %3572 = vmatpush2.msra.mxu0 0.0
    %3573 = vmatprep.subr.mxu0 0.0
    %3574 = vmatpush2.msra.mxu0 0.0
    %3575 = vmatprep.subr.mxu0 0.0
    %3576 = vmatpush2.msra.mxu0 0.0
    %3577 = vmatprep.mubr.f32.mxu0 0.0
    %3578 = vmatmul.mubr.f32.gmra.mxu0 %v3501
    %v3579 = vpop.f32.mrf.mxu0
    %v3580 = vadd.f32 0.0, %v3579
    %v3581 = vpop.f32.mrf.mxu0
    %v3582 = vadd.f32 0.0, %v3581
    %3583 = vmatprep.mubr.f32.mxu0 0.0
    %3584 = vmatmul.mubr.f32.gmra.mxu0 %v3503
    %v3585 = vpop.f32.mrf.mxu0
    %v3586 = vadd.f32 0.0, %v3585
    %v3587 = vpop.f32.mrf.mxu0
    %v3588 = vadd.f32 0.0, %v3587
    %3589 = vmatprep.mubr.f32.mxu0 0.0
    %3590 = vmatmul.mubr.f32.gmra.mxu0 %v3505
    %v3591 = vpop.f32.mrf.mxu0
    %v3592 = vadd.f32 0.0, %v3591
    %v3593 = vpop.f32.mrf.mxu0
    %v3594 = vadd.f32 0.0, %v3593
    %3595 = vdwg.mxu0
    %v3596 = vadd.f32 %v3424, %v3580
    %v3597 = vadd.f32 %v3425, %v3582
    %v3598 = vadd.f32 %v3426, %v3586
    %v3599 = vadd.f32 %v3427, %v3588
    %v3600 = vadd.f32 %v3428, %v3592
    %v3601 = vadd.f32 %v3429, %v3594
    %s3602 = scalar_lea.vmem %s5, 704
    %v3603 = vld [vmem:[%s3602] sm:$0xff]
    %v3604 = vld [vmem:[%s3602 + $0x8] sm:$0xff]
    %v3605 = vld [vmem:[%s3602 + $0x10] sm:$0xff]
    %v3606 = vld [vmem:[%s3602 + $0x18] sm:$0xff]
    %v3607 = vld [vmem:[%s3602 + $0x20] sm:$0xff]
    %v3608 = vld [vmem:[%s3602 + $0x28] sm:$0xff]
    %v3609 = vld [vmem:[%s3602 + $0x30] sm:$0xff]
    %v3610 = vld [vmem:[%s3602 + $0x38] sm:$0xff]
    %v3611 = vld [vmem:[%s3602 + $0x40] sm:$0xff]
    %v3612 = vld [vmem:[%s3602 + $0x48] sm:$0xff]
    %v3613 = vld [vmem:[%s3602 + $0x50] sm:$0xff]
    %v3614 = vld [vmem:[%s3602 + $0x58] sm:$0xff]
    %v3615 = vld [vmem:[%s3602 + $0x60] sm:$0xff]
    %v3616 = vld [vmem:[%s3602 + $0x68] sm:$0xff]
    %v3617 = vld [vmem:[%s3602 + $0x70] sm:$0xff]
    %v3618 = vld [vmem:[%s3602 + $0x78] sm:$0xff]
    %v3619 = vld [vmem:[%s3602 + $0x80] sm:$0xff]
    %v3620 = vld [vmem:[%s3602 + $0x88] sm:$0xff]
    %v3621 = vld [vmem:[%s3602 + $0x90] sm:$0xff]
    %v3622 = vld [vmem:[%s3602 + $0x98] sm:$0xff]
    %v3623 = vld [vmem:[%s3602 + $0xa0] sm:$0xf]
    %v3624 = vld [vmem:[%s3602 + $0xa8] sm:$0xf]
    %v3625 = vcombine.low %v2881, %v2890
    %v3626 = vcombine.low %v2838, %v2856
    %v3628 = vunpack.c.l.s4 1983009808
    %v3629 = vunpack.c.0.s8 %v3628
    %v3630 = vlaneseq
    %v3631 = vshrl.u32 %v3630, 7
    %v3632 = vsub.s32 %v3629, %v3631
    %v3633 = vrot.slane %v3626, %v3632
    %v3634 = vcombine.low %v3633, %v3184
    %v3635 = vcombine.low %v2864, %v2865
    %v3637 = vunpack.c.l.s4 1983009808
    %v3638 = vunpack.c.0.s8 %v3637
    %v3639 = vlaneseq
    %v3640 = vshrl.u32 %v3639, 7
    %v3641 = vsub.s32 %v3638, %v3640
    %v3642 = vrot.slane %v3635, %v3641
    %v3643 = vsel %vm2936, %v3625, 0
    %v3645 = vsel %vm2936, %v3634, 0
    %v3647 = vsel %vm2936, %v3642, 0
    %v3650 = vsel %vm3070, %v3623, 0
    %v3653 = vsel %vm3070, %v3624, 0
    %3655 = vmatprep.subr.mxu0 0.0
    %3656 = vmatpush1.msra.mxu0 0.0
    %3657 = vmatprep.subr.mxu0 0.0
    %3658 = vmatpush1.msra.mxu0 0.0
    %3659 = vmatprep.subr.mxu0 0.0
    %3660 = vmatpush1.msra.mxu0 0.0
    %3661 = vmatprep.subr.mxu0 0.0
    %3662 = vmatpush1.msra.mxu0 0.0
    %3663 = vmatprep.subr.mxu0 0.0
    %3664 = vmatpush1.msra.mxu0 0.0
    %3665 = vmatprep.subr.mxu0 %v3653
    %3666 = vmatpush1.msra.mxu0 %v3650
    %3667 = vmatprep.subr.mxu0 %v3622
    %3668 = vmatpush1.msra.mxu0 %v3621
    %3669 = vmatprep.subr.mxu0 %v3620
    %3670 = vmatpush1.msra.mxu0 %v3619
    %3671 = vmatprep.subr.mxu0 %v3618
    %3672 = vmatpush1.msra.mxu0 %v3617
    %3673 = vmatprep.subr.mxu0 %v3616
    %3674 = vmatpush1.msra.mxu0 %v3615
    %3675 = vmatprep.subr.mxu0 %v3614
    %3676 = vmatpush1.msra.mxu0 %v3613
    %3677 = vmatprep.subr.mxu0 %v3612
    %3678 = vmatpush1.msra.mxu0 %v3611
    %3679 = vmatprep.subr.mxu0 %v3610
    %3680 = vmatpush1.msra.mxu0 %v3609
    %3681 = vmatprep.subr.mxu0 %v3608
    %3682 = vmatpush1.msra.mxu0 %v3607
    %3683 = vmatprep.subr.mxu0 %v3606
    %3684 = vmatpush1.msra.mxu0 %v3605
    %3685 = vmatprep.subr.mxu0 %v3604
    %3686 = vmatpush1.msra.mxu0 %v3603
    %3687 = vmatprep.subr.mxu0 0.0
    %3688 = vmatpush2.msra.mxu0 0.0
    %3689 = vmatprep.subr.mxu0 0.0
    %3690 = vmatpush2.msra.mxu0 0.0
    %3691 = vmatprep.subr.mxu0 0.0
    %3692 = vmatpush2.msra.mxu0 0.0
    %3693 = vmatprep.subr.mxu0 0.0
    %3694 = vmatpush2.msra.mxu0 0.0
    %3695 = vmatprep.subr.mxu0 0.0
    %3696 = vmatpush2.msra.mxu0 0.0
    %3697 = vmatprep.subr.mxu0 0.0
    %3698 = vmatpush2.msra.mxu0 0.0
    %3699 = vmatprep.subr.mxu0 0.0
    %3700 = vmatpush2.msra.mxu0 0.0
    %3701 = vmatprep.subr.mxu0 0.0
    %3702 = vmatpush2.msra.mxu0 0.0
    %3703 = vmatprep.subr.mxu0 0.0
    %3704 = vmatpush2.msra.mxu0 0.0
    %3705 = vmatprep.subr.mxu0 0.0
    %3706 = vmatpush2.msra.mxu0 0.0
    %3707 = vmatprep.subr.mxu0 0.0
    %3708 = vmatpush2.msra.mxu0 0.0
    %3709 = vmatprep.subr.mxu0 0.0
    %3710 = vmatpush2.msra.mxu0 0.0
    %3711 = vmatprep.subr.mxu0 0.0
    %3712 = vmatpush2.msra.mxu0 0.0
    %3713 = vmatprep.subr.mxu0 0.0
    %3714 = vmatpush2.msra.mxu0 0.0
    %3715 = vmatprep.subr.mxu0 0.0
    %3716 = vmatpush2.msra.mxu0 0.0
    %3717 = vmatprep.subr.mxu0 0.0
    %3718 = vmatpush2.msra.mxu0 0.0
    %3719 = vmatprep.mubr.f32.mxu0 0.0
    %3720 = vmatmul.mubr.f32.gmra.mxu0 %v3643
    %v3721 = vpop.f32.mrf.mxu0
    %v3722 = vadd.f32 0.0, %v3721
    %v3723 = vpop.f32.mrf.mxu0
    %v3724 = vadd.f32 0.0, %v3723
    %3725 = vmatprep.mubr.f32.mxu0 0.0
    %3726 = vmatmul.mubr.f32.gmra.mxu0 %v3645
    %v3727 = vpop.f32.mrf.mxu0
    %v3728 = vadd.f32 0.0, %v3727
    %v3729 = vpop.f32.mrf.mxu0
    %v3730 = vadd.f32 0.0, %v3729
    %3731 = vmatprep.mubr.f32.mxu0 0.0
    %3732 = vmatmul.mubr.f32.gmra.mxu0 %v3647
    %v3733 = vpop.f32.mrf.mxu0
    %v3734 = vadd.f32 0.0, %v3733
    %v3735 = vpop.f32.mrf.mxu0
    %v3736 = vadd.f32 0.0, %v3735
    %3737 = vdwg.mxu0
    %v3738 = vadd.f32 %v3596, %v3722
    %v3739 = vadd.f32 %v3597, %v3724
    %v3740 = vadd.f32 %v3598, %v3728
    %v3741 = vadd.f32 %v3599, %v3730
    %v3742 = vadd.f32 %v3600, %v3734
    %v3743 = vadd.f32 %v3601, %v3736
    %v3744 = vld [vmem:[%s6] sm:$0x3]
    %v3746 = vlaneseq
    %v3747 = vshrl.u32 %v3746, 7
    %v3748 = vsub.s32 0, %v3747
    %v3749 = vrot.slane %v3744, %v3748
    %v3750 = vlaneseq
    %v3751 = vshrl.u32 %v3750, 7
    %v3752 = vsub.s32 1, %v3751
    %v3753 = vrot.slane %v3744, %v3752
    %v3756 = vadd.f32 %v3738, %v3749
    %v3757 = vadd.f32 %v3739, %v3753
    %v3758 = vadd.f32 %v3740, %v3749
    %v3759 = vadd.f32 %v3741, %v3753
    %v3760 = vadd.f32 %v3742, %v3749
    %v3761 = vadd.f32 %v3743, %v3753
    %v3762 = vld [vmem:[%s7] sm:$0x1]
    %v3763 = vld [vmem:[%s8] sm:$0x1]
    %v3764 = vmul.u32 %v997, 10
    %vm3765 = vcmp.ge.s32.totalorder %v975, %v3764
    %vm3766 = vcmp.ge.s32.totalorder %v976, %v3764
    %vm3767 = vcmp.ge.s32.totalorder %v977, %v3764
    %vm3768 = vcmp.ge.s32.totalorder %v978, %v3764
    %vm3769 = vcmp.ge.s32.totalorder %v979, %v3764
    %vm3770 = vcmp.ge.s32.totalorder %v980, %v3764
    %vm3771 = vcmp.ge.s32.totalorder %v981, %v3764
    %vm3772 = vcmp.ge.s32.totalorder %v982, %v3764
    %vm3773 = vcmp.ge.s32.totalorder %v983, %v3764
    %vm3774 = vcmp.ge.s32.totalorder %v984, %v3764
    %vm3775 = vcmp.ge.s32.totalorder %v985, %v3764
    %vm3776 = vcmp.ge.s32.totalorder %v986, %v3764
    %vm3777 = vcmp.ge.s32.totalorder %v987, %v3764
    %vm3778 = vcmp.ge.s32.totalorder %v988, %v3764
    %vm3779 = vcmp.ge.s32.totalorder %v989, %v3764
    %vm3780 = vcmp.ge.s32.totalorder %v990, %v3764
    %vm3781 = vcmp.ge.s32.totalorder %v991, %v3764
    %vm3782 = vcmp.ge.s32.totalorder %v992, %v3764
    %vm3783 = vcmp.ge.s32.totalorder %v993, %v3764
    %vm3784 = vcmp.ge.s32.totalorder %v994, %v3764
    %v3785 = vmul.u32 %v1020, 10
    %vm3786 = vcmp.lt.s32.totalorder %v975, %v3785
    %vm3787 = vcmp.lt.s32.totalorder %v976, %v3785
    %vm3788 = vcmp.lt.s32.totalorder %v977, %v3785
    %vm3789 = vcmp.lt.s32.totalorder %v978, %v3785
    %vm3790 = vcmp.lt.s32.totalorder %v979, %v3785
    %vm3791 = vcmp.lt.s32.totalorder %v980, %v3785
    %vm3792 = vcmp.lt.s32.totalorder %v981, %v3785
    %vm3793 = vcmp.lt.s32.totalorder %v982, %v3785
    %vm3794 = vcmp.lt.s32.totalorder %v983, %v3785
    %vm3795 = vcmp.lt.s32.totalorder %v984, %v3785
    %vm3796 = vcmp.lt.s32.totalorder %v985, %v3785
    %vm3797 = vcmp.lt.s32.totalorder %v986, %v3785
    %vm3798 = vcmp.lt.s32.totalorder %v987, %v3785
    %vm3799 = vcmp.lt.s32.totalorder %v988, %v3785
    %vm3800 = vcmp.lt.s32.totalorder %v989, %v3785
    %vm3801 = vcmp.lt.s32.totalorder %v990, %v3785
    %vm3802 = vcmp.lt.s32.totalorder %v991, %v3785
    %vm3803 = vcmp.lt.s32.totalorder %v992, %v3785
    %vm3804 = vcmp.lt.s32.totalorder %v993, %v3785
    %vm3805 = vcmp.lt.s32.totalorder %v994, %v3785
    %vm3806 = vmand %vm3765, %vm3786
    %vm3807 = vmand %vm3766, %vm3787
    %vm3808 = vmand %vm3767, %vm3788
    %vm3809 = vmand %vm3768, %vm3789
    %vm3810 = vmand %vm3769, %vm3790
    %vm3811 = vmand %vm3770, %vm3791
    %vm3812 = vmand %vm3771, %vm3792
    %vm3813 = vmand %vm3772, %vm3793
    %vm3814 = vmand %vm3773, %vm3794
    %vm3815 = vmand %vm3774, %vm3795
    %vm3816 = vmand %vm3775, %vm3796
    %vm3817 = vmand %vm3776, %vm3797
    %vm3818 = vmand %vm3777, %vm3798
    %vm3819 = vmand %vm3778, %vm3799
    %vm3820 = vmand %vm3779, %vm3800
    %vm3821 = vmand %vm3780, %vm3801
    %vm3822 = vmand %vm3781, %vm3802
    %vm3823 = vmand %vm3782, %vm3803
    %vm3824 = vmand %vm3783, %vm3804
    %vm3825 = vmand %vm3784, %vm3805
    %v3826 = vsel %vm3806, 1, 0
    %v3827 = vsel %vm3807, 1, 0
    %v3828 = vsel %vm3808, 1, 0
    %v3829 = vsel %vm3809, 1, 0
    %v3830 = vsel %vm3810, 1, 0
    %v3831 = vsel %vm3811, 1, 0
    %v3832 = vsel %vm3812, 1, 0
    %v3833 = vsel %vm3813, 1, 0
    %v3834 = vsel %vm3814, 1, 0
    %v3835 = vsel %vm3815, 1, 0
    %v3836 = vsel %vm3816, 1, 0
    %v3837 = vsel %vm3817, 1, 0
    %v3838 = vsel %vm3818, 1, 0
    %v3839 = vsel %vm3819, 1, 0
    %v3840 = vsel %vm3820, 1, 0
    %v3841 = vsel %vm3821, 1, 0
    %v3842 = vsel %vm3822, 1, 0
    %v3843 = vsel %vm3823, 1, 0
    %v3844 = vsel %vm3824, 1, 0
    %v3845 = vsel %vm3825, 1, 0
    %v3846 = vcvt.s32.f32 %v3826
    %v3847 = vcvt.s32.f32 %v3827
    %v3848 = vcvt.s32.f32 %v3828
    %v3849 = vcvt.s32.f32 %v3829
    %v3850 = vcvt.s32.f32 %v3830
    %v3851 = vcvt.s32.f32 %v3831
    %v3852 = vcvt.s32.f32 %v3832
    %v3853 = vcvt.s32.f32 %v3833
    %v3854 = vcvt.s32.f32 %v3834
    %v3855 = vcvt.s32.f32 %v3835
    %v3856 = vcvt.s32.f32 %v3836
    %v3857 = vcvt.s32.f32 %v3837
    %v3858 = vcvt.s32.f32 %v3838
    %v3859 = vcvt.s32.f32 %v3839
    %v3860 = vcvt.s32.f32 %v3840
    %v3861 = vcvt.s32.f32 %v3841
    %v3862 = vcvt.s32.f32 %v3842
    %v3863 = vcvt.s32.f32 %v3843
    %v3864 = vcvt.s32.f32 %v3844
    %v3865 = vcvt.s32.f32 %v3845
    %v3866 = vmul.u32 %v975, 10
    %v3867 = vmul.u32 %v976, 10
    %vm3868 = vcmp.ge.s32.totalorder %v997, %v3866
    %vm3869 = vcmp.ge.s32.totalorder %v1106, %v3866
    %vm3870 = vcmp.ge.s32.totalorder %v997, %v3867
    %vm3871 = vcmp.ge.s32.totalorder %v1106, %v3867
    %v3872 = vadd.s32 %v976, 1
    %v3873 = vmul.u32 %v1110, 10
    %v3874 = vmul.u32 %v3872, 10
    %vm3875 = vcmp.lt.s32.totalorder %v997, %v3873
    %vm3876 = vcmp.lt.s32.totalorder %v1106, %v3873
    %vm3877 = vcmp.lt.s32.totalorder %v997, %v3874
    %vm3878 = vcmp.lt.s32.totalorder %v1106, %v3874
    %vm3879 = vmand %vm3868, %vm3875
    %vm3880 = vmand %vm3869, %vm3876
    %vm3881 = vmand %vm3870, %vm3877
    %vm3882 = vmand %vm3871, %vm3878
    %v3883 = vsel %vm3879, 1, 0
    %v3884 = vsel %vm3880, 1, 0
    %v3885 = vsel %vm3881, 1, 0
    %v3886 = vsel %vm3882, 1, 0
    %v3887 = vcvt.s32.f32 %v3883
    %v3888 = vcvt.s32.f32 %v3884
    %v3889 = vcvt.s32.f32 %v3885
    %v3890 = vcvt.s32.f32 %v3886
    %v3891 = vadd.f32 %v3756, %v3758
    %v3892 = vsel %vm3070, %v3760, 0.0
    %v3893 = vadd.f32 %v3891, %v3892
    %v3894 = vrot.slane %v3893, 4
    %v3895 = vadd.f32 %v3893, %v3894
    %v3896 = vrot.slane %v3895, 2
    %v3897 = vadd.f32 %v3895, %v3896
    %v3898 = vrot.slane %v3897, 1
    %v3899 = vadd.f32 %v3897, %v3898
    %v3900 = vsel %vm149, %v3757, 0.0
    %v3901 = vsel %vm149, %v3759, 0.0
    %v3902 = vadd.f32 %v3900, %v3901
    %vm3903 = vcmask 257024
    %v3904 = vsel %vm3903, %v3761, 0.0
    %v3905 = vadd.f32 %v3902, %v3904
    %v3906 = vrot.slane %v3905, 4
    %v3907 = vadd.f32 %v3905, %v3906
    %v3908 = vrot.slane %v3907, 2
    %v3909 = vadd.f32 %v3907, %v3908
    %v3910 = vrot.slane %v3909, 1
    %v3911 = vadd.f32 %v3909, %v3910
    %v3912 = vmul.f32 %v3756, %v3756
    %v3913 = vmul.f32 %v3757, %v3757
    %v3914 = vmul.f32 %v3758, %v3758
    %v3915 = vmul.f32 %v3759, %v3759
    %v3916 = vmul.f32 %v3760, %v3760
    %v3917 = vmul.f32 %v3761, %v3761
    %v3918 = vadd.f32 %v3912, %v3914
    %v3919 = vsel %vm3070, %v3916, 0.0
    %v3920 = vadd.f32 %v3918, %v3919
    %v3921 = vrot.slane %v3920, 4
    %v3922 = vadd.f32 %v3920, %v3921
    %v3923 = vrot.slane %v3922, 2
    %v3924 = vadd.f32 %v3922, %v3923
    %v3925 = vrot.slane %v3924, 1
    %v3926 = vadd.f32 %v3924, %v3925
    %v3927 = vsel %vm149, %v3913, 0.0
    %v3928 = vsel %vm149, %v3915, 0.0
    %v3929 = vadd.f32 %v3927, %v3928
    %v3930 = vsel %vm3903, %v3917, 0.0
    %v3931 = vadd.f32 %v3929, %v3930
    %v3932 = vrot.slane %v3931, 4
    %v3933 = vadd.f32 %v3931, %v3932
    %v3934 = vrot.slane %v3933, 2
    %v3935 = vadd.f32 %v3933, %v3934
    %v3936 = vrot.slane %v3935, 1
    %v3937 = vadd.f32 %v3935, %v3936
    %v3939 = vsel %vm149, %v3911, 0
    %3941 = vmatprep.subr.mxu0 0.0
    %3942 = vmatpush1.msra.mxu0 %v3861
    %3943 = vmatprep.subr.mxu0 0.0
    %3944 = vmatpush1.msra.mxu0 %v3860
    %3945 = vmatprep.subr.mxu0 0.0
    %3946 = vmatpush1.msra.mxu0 %v3859
    %3947 = vmatprep.subr.mxu0 0.0
    %3948 = vmatpush1.msra.mxu0 %v3858
    %3949 = vmatprep.subr.mxu0 0.0
    %3950 = vmatpush1.msra.mxu0 %v3857
    %3951 = vmatprep.subr.mxu0 0.0
    %3952 = vmatpush1.msra.mxu0 %v3856
    %3953 = vmatprep.subr.mxu0 0.0
    %3954 = vmatpush1.msra.mxu0 %v3855
    %3955 = vmatprep.subr.mxu0 0.0
    %3956 = vmatpush1.msra.mxu0 %v3854
    %3957 = vmatprep.subr.mxu0 0.0
    %3958 = vmatpush1.msra.mxu0 %v3853
    %3959 = vmatprep.subr.mxu0 0.0
    %3960 = vmatpush1.msra.mxu0 %v3852
    %3961 = vmatprep.subr.mxu0 0.0
    %3962 = vmatpush1.msra.mxu0 %v3851
    %3963 = vmatprep.subr.mxu0 0.0
    %3964 = vmatpush1.msra.mxu0 %v3850
    %3965 = vmatprep.subr.mxu0 0.0
    %3966 = vmatpush1.msra.mxu0 %v3849
    %3967 = vmatprep.subr.mxu0 0.0
    %3968 = vmatpush1.msra.mxu0 %v3848
    %3969 = vmatprep.subr.mxu0 0.0
    %3970 = vmatpush1.msra.mxu0 %v3847
    %3971 = vmatprep.subr.mxu0 0.0
    %3972 = vmatpush1.msra.mxu0 %v3846
    %3973 = vmatprep.subr.mxu0 0.0
    %3974 = vmatpush2.msra.mxu0 0.0
    %3975 = vmatprep.subr.mxu0 0.0
    %3976 = vmatpush2.msra.mxu0 0.0
    %3977 = vmatprep.subr.mxu0 0.0
    %3978 = vmatpush2.msra.mxu0 0.0
    %3979 = vmatprep.subr.mxu0 0.0
    %3980 = vmatpush2.msra.mxu0 0.0
    %3981 = vmatprep.subr.mxu0 0.0
    %3982 = vmatpush2.msra.mxu0 0.0
    %3983 = vmatprep.subr.mxu0 0.0
    %3984 = vmatpush2.msra.mxu0 0.0
    %3985 = vmatprep.subr.mxu0 0.0
    %3986 = vmatpush2.msra.mxu0 0.0
    %3987 = vmatprep.subr.mxu0 0.0
    %3988 = vmatpush2.msra.mxu0 0.0
    %3989 = vmatprep.subr.mxu0 0.0
    %3990 = vmatpush2.msra.mxu0 0.0
    %3991 = vmatprep.subr.mxu0 0.0
    %3992 = vmatpush2.msra.mxu0 0.0
    %3993 = vmatprep.subr.mxu0 0.0
    %3994 = vmatpush2.msra.mxu0 0.0
    %3995 = vmatprep.subr.mxu0 0.0
    %3996 = vmatpush2.msra.mxu0 0.0
    %3997 = vmatprep.subr.mxu0 0.0
    %3998 = vmatpush2.msra.mxu0 %v3865
    %3999 = vmatprep.subr.mxu0 0.0
    %4000 = vmatpush2.msra.mxu0 %v3864
    %4001 = vmatprep.subr.mxu0 0.0
    %4002 = vmatpush2.msra.mxu0 %v3863
    %4003 = vmatprep.subr.mxu0 0.0
    %4004 = vmatpush2.msra.mxu0 %v3862
    %4005 = vmatprep.mubr.f32.mxu0 %v3939
    %4006 = vmatmul.mubr.f32.gmra.mxu0 %v3899
    %v4007 = vpop.f32.mrf.mxu0
    %v4008 = vadd.f32 0.0, %v4007
    %v4009 = vpop.f32.mrf.mxu0
    %4010 = vdwg.mxu0
    %v4011 = vmul.f32 %v4008, 0.005
    %v4013 = vsel %vm149, %v3937, 0
    %4015 = vmatprep.subr.mxu0 0.0
    %4016 = vmatpush1.msra.mxu0 %v3861
    %4017 = vmatprep.subr.mxu0 0.0
    %4018 = vmatpush1.msra.mxu0 %v3860
    %4019 = vmatprep.subr.mxu0 0.0
    %4020 = vmatpush1.msra.mxu0 %v3859
    %4021 = vmatprep.subr.mxu0 0.0
    %4022 = vmatpush1.msra.mxu0 %v3858
    %4023 = vmatprep.subr.mxu0 0.0
    %4024 = vmatpush1.msra.mxu0 %v3857
    %4025 = vmatprep.subr.mxu0 0.0
    %4026 = vmatpush1.msra.mxu0 %v3856
    %4027 = vmatprep.subr.mxu0 0.0
    %4028 = vmatpush1.msra.mxu0 %v3855
    %4029 = vmatprep.subr.mxu0 0.0
    %4030 = vmatpush1.msra.mxu0 %v3854
    %4031 = vmatprep.subr.mxu0 0.0
    %4032 = vmatpush1.msra.mxu0 %v3853
    %4033 = vmatprep.subr.mxu0 0.0
    %4034 = vmatpush1.msra.mxu0 %v3852
    %4035 = vmatprep.subr.mxu0 0.0
    %4036 = vmatpush1.msra.mxu0 %v3851
    %4037 = vmatprep.subr.mxu0 0.0
    %4038 = vmatpush1.msra.mxu0 %v3850
    %4039 = vmatprep.subr.mxu0 0.0
    %4040 = vmatpush1.msra.mxu0 %v3849
    %4041 = vmatprep.subr.mxu0 0.0
    %4042 = vmatpush1.msra.mxu0 %v3848
    %4043 = vmatprep.subr.mxu0 0.0
    %4044 = vmatpush1.msra.mxu0 %v3847
    %4045 = vmatprep.subr.mxu0 0.0
    %4046 = vmatpush1.msra.mxu0 %v3846
    %4047 = vmatprep.subr.mxu0 0.0
    %4048 = vmatpush2.msra.mxu0 0.0
    %4049 = vmatprep.subr.mxu0 0.0
    %4050 = vmatpush2.msra.mxu0 0.0
    %4051 = vmatprep.subr.mxu0 0.0
    %4052 = vmatpush2.msra.mxu0 0.0
    %4053 = vmatprep.subr.mxu0 0.0
    %4054 = vmatpush2.msra.mxu0 0.0
    %4055 = vmatprep.subr.mxu0 0.0
    %4056 = vmatpush2.msra.mxu0 0.0
    %4057 = vmatprep.subr.mxu0 0.0
    %4058 = vmatpush2.msra.mxu0 0.0
    %4059 = vmatprep.subr.mxu0 0.0
    %4060 = vmatpush2.msra.mxu0 0.0
    %4061 = vmatprep.subr.mxu0 0.0
    %4062 = vmatpush2.msra.mxu0 0.0
    %4063 = vmatprep.subr.mxu0 0.0
    %4064 = vmatpush2.msra.mxu0 0.0
    %4065 = vmatprep.subr.mxu0 0.0
    %4066 = vmatpush2.msra.mxu0 0.0
    %4067 = vmatprep.subr.mxu0 0.0
    %4068 = vmatpush2.msra.mxu0 0.0
    %4069 = vmatprep.subr.mxu0 0.0
    %4070 = vmatpush2.msra.mxu0 0.0
    %4071 = vmatprep.subr.mxu0 0.0
    %4072 = vmatpush2.msra.mxu0 %v3865
    %4073 = vmatprep.subr.mxu0 0.0
    %4074 = vmatpush2.msra.mxu0 %v3864
    %4075 = vmatprep.subr.mxu0 0.0
    %4076 = vmatpush2.msra.mxu0 %v3863
    %4077 = vmatprep.subr.mxu0 0.0
    %4078 = vmatpush2.msra.mxu0 %v3862
    %4079 = vmatprep.mubr.f32.mxu0 %v4013
    %4080 = vmatmul.mubr.f32.gmra.mxu0 %v3926
    %v4081 = vpop.f32.mrf.mxu0
    %v4082 = vadd.f32 0.0, %v4081
    %v4083 = vpop.f32.mrf.mxu0
    %4084 = vdwg.mxu0
    %v4085 = vmul.f32 %v4082, 0.005
    %v4086 = vmul.f32 %v4011, %v4011
    %v4087 = vsub.f32 %v4085, %v4086
    %v4088 = vadd.f32 %v4087, 1e-05
    %v4089 = vrsqrt.pop %v4088
    %v4090 = vmul.f32 %v3762, %v4089
    %v4091 = vmul.f32 %v4011, %v4090
    %v4092 = vsub.f32 %v3763, %v4091
    %vm4093 = vcmask 130048
    %v4095 = vsel %vm4093, %v4090, 0
    %4097 = vmatprep.subr.mxu0 0.0
    %4098 = vmatpush1.msra.mxu0 0.0
    %4099 = vmatprep.subr.mxu0 0.0
    %4100 = vmatpush1.msra.mxu0 0.0
    %4101 = vmatprep.subr.mxu0 0.0
    %4102 = vmatpush1.msra.mxu0 0.0
    %4103 = vmatprep.subr.mxu0 0.0
    %4104 = vmatpush1.msra.mxu0 0.0
    %4105 = vmatprep.subr.mxu0 0.0
    %4106 = vmatpush1.msra.mxu0 0.0
    %4107 = vmatprep.subr.mxu0 0.0
    %4108 = vmatpush1.msra.mxu0 0.0
    %4109 = vmatprep.subr.mxu0 0.0
    %4110 = vmatpush1.msra.mxu0 0.0
    %4111 = vmatprep.subr.mxu0 0.0
    %4112 = vmatpush1.msra.mxu0 0.0
    %4113 = vmatprep.subr.mxu0 0.0
    %4114 = vmatpush1.msra.mxu0 0.0
    %4115 = vmatprep.subr.mxu0 0.0
    %4116 = vmatpush1.msra.mxu0 0.0
    %4117 = vmatprep.subr.mxu0 0.0
    %4118 = vmatpush1.msra.mxu0 0.0
    %4119 = vmatprep.subr.mxu0 0.0
    %4120 = vmatpush1.msra.mxu0 0.0
    %4121 = vmatprep.subr.mxu0 0.0
    %4122 = vmatpush1.msra.mxu0 0.0
    %4123 = vmatprep.subr.mxu0 0.0
    %4124 = vmatpush1.msra.mxu0 0.0
    %4125 = vmatprep.subr.mxu0 %v3890
    %4126 = vmatpush1.msra.mxu0 %v3889
    %4127 = vmatprep.subr.mxu0 %v3888
    %4128 = vmatpush1.msra.mxu0 %v3887
    %4129 = vmatprep.subr.mxu0 0.0
    %4130 = vmatpush2.msra.mxu0 0.0
    %4131 = vmatprep.subr.mxu0 0.0
    %4132 = vmatpush2.msra.mxu0 0.0
    %4133 = vmatprep.subr.mxu0 0.0
    %4134 = vmatpush2.msra.mxu0 0.0
    %4135 = vmatprep.subr.mxu0 0.0
    %4136 = vmatpush2.msra.mxu0 0.0
    %4137 = vmatprep.subr.mxu0 0.0
    %4138 = vmatpush2.msra.mxu0 0.0
    %4139 = vmatprep.subr.mxu0 0.0
    %4140 = vmatpush2.msra.mxu0 0.0
    %4141 = vmatprep.subr.mxu0 0.0
    %4142 = vmatpush2.msra.mxu0 0.0
    %4143 = vmatprep.subr.mxu0 0.0
    %4144 = vmatpush2.msra.mxu0 0.0
    %4145 = vmatprep.subr.mxu0 0.0
    %4146 = vmatpush2.msra.mxu0 0.0
    %4147 = vmatprep.subr.mxu0 0.0
    %4148 = vmatpush2.msra.mxu0 0.0
    %4149 = vmatprep.subr.mxu0 0.0
    %4150 = vmatpush2.msra.mxu0 0.0
    %4151 = vmatprep.subr.mxu0 0.0
    %4152 = vmatpush2.msra.mxu0 0.0
    %4153 = vmatprep.subr.mxu0 0.0
    %4154 = vmatpush2.msra.mxu0 0.0
    %4155 = vmatprep.subr.mxu0 0.0
    %4156 = vmatpush2.msra.mxu0 0.0
    %4157 = vmatprep.subr.mxu0 0.0
    %4158 = vmatpush2.msra.mxu0 0.0
    %4159 = vmatprep.subr.mxu0 0.0
    %4160 = vmatpush2.msra.mxu0 0.0
    %4161 = vmatprep.mubr.f32.mxu0 0.0
    %4162 = vmatmul.mubr.f32.gmra.mxu0 %v4095
    %v4163 = vpop.f32.mrf.mxu0
    %v4164 = vadd.f32 0.0, %v4163
    %v4165 = vpop.f32.mrf.mxu0
    %v4166 = vadd.f32 0.0, %v4165
    %4167 = vdwg.mxu0
    %v4169 = vsel %vm4093, %v4092, 0
    %4171 = vmatprep.subr.mxu0 0.0
    %4172 = vmatpush1.msra.mxu0 0.0
    %4173 = vmatprep.subr.mxu0 0.0
    %4174 = vmatpush1.msra.mxu0 0.0
    %4175 = vmatprep.subr.mxu0 0.0
    %4176 = vmatpush1.msra.mxu0 0.0
    %4177 = vmatprep.subr.mxu0 0.0
    %4178 = vmatpush1.msra.mxu0 0.0
    %4179 = vmatprep.subr.mxu0 0.0
    %4180 = vmatpush1.msra.mxu0 0.0
    %4181 = vmatprep.subr.mxu0 0.0
    %4182 = vmatpush1.msra.mxu0 0.0
    %4183 = vmatprep.subr.mxu0 0.0
    %4184 = vmatpush1.msra.mxu0 0.0
    %4185 = vmatprep.subr.mxu0 0.0
    %4186 = vmatpush1.msra.mxu0 0.0
    %4187 = vmatprep.subr.mxu0 0.0
    %4188 = vmatpush1.msra.mxu0 0.0
    %4189 = vmatprep.subr.mxu0 0.0
    %4190 = vmatpush1.msra.mxu0 0.0
    %4191 = vmatprep.subr.mxu0 0.0
    %4192 = vmatpush1.msra.mxu0 0.0
    %4193 = vmatprep.subr.mxu0 0.0
    %4194 = vmatpush1.msra.mxu0 0.0
    %4195 = vmatprep.subr.mxu0 0.0
    %4196 = vmatpush1.msra.mxu0 0.0
    %4197 = vmatprep.subr.mxu0 0.0
    %4198 = vmatpush1.msra.mxu0 0.0
    %4199 = vmatprep.subr.mxu0 %v3890
    %4200 = vmatpush1.msra.mxu0 %v3889
    %4201 = vmatprep.subr.mxu0 %v3888
    %4202 = vmatpush1.msra.mxu0 %v3887
    %4203 = vmatprep.subr.mxu0 0.0
    %4204 = vmatpush2.msra.mxu0 0.0
    %4205 = vmatprep.subr.mxu0 0.0
    %4206 = vmatpush2.msra.mxu0 0.0
    %4207 = vmatprep.subr.mxu0 0.0
    %4208 = vmatpush2.msra.mxu0 0.0
    %4209 = vmatprep.subr.mxu0 0.0
    %4210 = vmatpush2.msra.mxu0 0.0
    %4211 = vmatprep.subr.mxu0 0.0
    %4212 = vmatpush2.msra.mxu0 0.0
    %4213 = vmatprep.subr.mxu0 0.0
    %4214 = vmatpush2.msra.mxu0 0.0
    %4215 = vmatprep.subr.mxu0 0.0
    %4216 = vmatpush2.msra.mxu0 0.0
    %4217 = vmatprep.subr.mxu0 0.0
    %4218 = vmatpush2.msra.mxu0 0.0
    %4219 = vmatprep.subr.mxu0 0.0
    %4220 = vmatpush2.msra.mxu0 0.0
    %4221 = vmatprep.subr.mxu0 0.0
    %4222 = vmatpush2.msra.mxu0 0.0
    %4223 = vmatprep.subr.mxu0 0.0
    %4224 = vmatpush2.msra.mxu0 0.0
    %4225 = vmatprep.subr.mxu0 0.0
    %4226 = vmatpush2.msra.mxu0 0.0
    %4227 = vmatprep.subr.mxu0 0.0
    %4228 = vmatpush2.msra.mxu0 0.0
    %4229 = vmatprep.subr.mxu0 0.0
    %4230 = vmatpush2.msra.mxu0 0.0
    %4231 = vmatprep.subr.mxu0 0.0
    %4232 = vmatpush2.msra.mxu0 0.0
    %4233 = vmatprep.subr.mxu0 0.0
    %4234 = vmatpush2.msra.mxu0 0.0
    %4235 = vmatprep.mubr.f32.mxu0 0.0
    %4236 = vmatmul.mubr.f32.gmra.mxu0 %v4169
    %v4237 = vpop.f32.mrf.mxu0
    %v4238 = vadd.f32 0.0, %v4237
    %v4239 = vpop.f32.mrf.mxu0
    %v4240 = vadd.f32 0.0, %v4239
    %4241 = vdwg.mxu0
    %v4242 = vlaneseq
    %v4243 = vshrl.u32 %v4242, 7
    %v4244 = vsub.s32 0, %v4243
    %v4245 = vrot.slane %v4164, %v4244
    %v4246 = vlaneseq
    %v4247 = vshrl.u32 %v4246, 7
    %v4248 = vsub.s32 0, %v4247
    %v4249 = vrot.slane %v4166, %v4248
    %v4250 = vmul.f32 %v3756, %v4245
    %v4251 = vmul.f32 %v3757, %v4249
    %v4252 = vmul.f32 %v3758, %v4245
    %v4253 = vmul.f32 %v3759, %v4249
    %v4254 = vmul.f32 %v3760, %v4245
    %v4255 = vmul.f32 %v3761, %v4249
    %v4256 = vlaneseq
    %v4257 = vshrl.u32 %v4256, 7
    %v4258 = vsub.s32 0, %v4257
    %v4259 = vrot.slane %v4238, %v4258
    %v4260 = vlaneseq
    %v4261 = vshrl.u32 %v4260, 7
    %v4262 = vsub.s32 0, %v4261
    %v4263 = vrot.slane %v4240, %v4262
    %v4264 = vadd.f32 %v4250, %v4259
    %v4265 = vadd.f32 %v4251, %v4263
    %v4266 = vadd.f32 %v4252, %v4259
    %v4267 = vadd.f32 %v4253, %v4263
    %v4268 = vadd.f32 %v4254, %v4259
    %v4269 = vadd.f32 %v4255, %v4263
    %v4270 = vmax.f32 %v4264, 0.0
    %v4271 = vmax.f32 %v4265, 0.0
    %v4272 = vmax.f32 %v4266, 0.0
    %v4273 = vmax.f32 %v4267, 0.0
    %v4274 = vmax.f32 %v4268, 0.0
    %v4275 = vmax.f32 %v4269, 0.0
    %v4282 = vcombine.low %v4270, %v4271
    %v4283 = vcombine.high %v4270, %v4271
    %v4285 = vunpack.c.l.s4 1983009808
    %v4286 = vunpack.c.0.s8 %v4285
    %v4287 = vlaneseq
    %v4288 = vshrl.u32 %v4287, 7
    %v4289 = vsub.s32 %v4286, %v4288
    %v4290 = vrot.slane %v4282, %v4289
    %v4292 = vunpack.c.l.s4 1983009808
    %v4293 = vunpack.c.0.s8 %v4292
    %v4294 = vlaneseq
    %v4295 = vshrl.u32 %v4294, 7
    %v4296 = vsub.s32 %v4293, %v4295
    %v4297 = vrot.slane %v4283, %v4296
    %v4298 = vcombine.high %v4290, %v4290
    %v4299 = vcombine.high %v4297, %v4297
    %v4300 = vcombine.low %v4272, %v4273
    %v4301 = vcombine.high %v4272, %v4273
    %v4303 = vunpack.c.l.s4 1983009808
    %v4304 = vunpack.c.0.s8 %v4303
    %v4305 = vlaneseq
    %v4306 = vshrl.u32 %v4305, 7
    %v4307 = vsub.s32 %v4304, %v4306
    %v4308 = vrot.slane %v4300, %v4307
    %v4310 = vunpack.c.l.s4 1983009808
    %v4311 = vunpack.c.0.s8 %v4310
    %v4312 = vlaneseq
    %v4313 = vshrl.u32 %v4312, 7
    %v4314 = vsub.s32 %v4311, %v4313
    %v4315 = vrot.slane %v4301, %v4314
    %v4316 = vcombine.high %v4308, %v4308
    %v4317 = vcombine.high %v4315, %v4315
    %v4318 = vcombine.low %v4274, %v4275
    %v4320 = vunpack.c.l.s4 1983009808
    %v4321 = vunpack.c.0.s8 %v4320
    %v4322 = vlaneseq
    %v4323 = vshrl.u32 %v4322, 7
    %v4324 = vsub.s32 %v4321, %v4323
    %v4325 = vrot.slane %v4318, %v4324
    %v4326 = vcombine.high %v4325, %v4325
    %v4328 = vunpack.c.l.s4 1983009808
    %v4329 = vunpack.c.0.s8 %v4328
    %v4330 = vlaneseq
    %v4331 = vshrl.u32 %v4330, 7
    %v4332 = vsub.s32 %v4329, %v4331
    %v4333 = vrot.slane %v4290, %v4332
    %v4334 = vcombine.high %v4333, %v4333
    %v4336 = vunpack.c.l.s4 1983009808
    %v4337 = vunpack.c.0.s8 %v4336
    %v4338 = vlaneseq
    %v4339 = vshrl.u32 %v4338, 7
    %v4340 = vsub.s32 %v4337, %v4339
    %v4341 = vrot.slane %v4298, %v4340
    %v4342 = vcombine.high %v4341, %v4341
    %v4344 = vunpack.c.l.s4 1983009808
    %v4345 = vunpack.c.0.s8 %v4344
    %v4346 = vlaneseq
    %v4347 = vshrl.u32 %v4346, 7
    %v4348 = vsub.s32 %v4345, %v4347
    %v4349 = vrot.slane %v4297, %v4348
    %v4350 = vcombine.high %v4349, %v4349
    %v4352 = vunpack.c.l.s4 1983009808
    %v4353 = vunpack.c.0.s8 %v4352
    %v4354 = vlaneseq
    %v4355 = vshrl.u32 %v4354, 7
    %v4356 = vsub.s32 %v4353, %v4355
    %v4357 = vrot.slane %v4299, %v4356
    %v4358 = vcombine.high %v4357, %v4357
    %v4360 = vunpack.c.l.s4 1983009808
    %v4361 = vunpack.c.0.s8 %v4360
    %v4362 = vlaneseq
    %v4363 = vshrl.u32 %v4362, 7
    %v4364 = vsub.s32 %v4361, %v4363
    %v4365 = vrot.slane %v4308, %v4364
    %v4366 = vcombine.high %v4365, %v4365
    %v4368 = vunpack.c.l.s4 1983009808
    %v4369 = vunpack.c.0.s8 %v4368
    %v4370 = vlaneseq
    %v4371 = vshrl.u32 %v4370, 7
    %v4372 = vsub.s32 %v4369, %v4371
    %v4373 = vrot.slane %v4316, %v4372
    %v4374 = vcombine.high %v4373, %v4373
    %v4376 = vunpack.c.l.s4 1983009808
    %v4377 = vunpack.c.0.s8 %v4376
    %v4378 = vlaneseq
    %v4379 = vshrl.u32 %v4378, 7
    %v4380 = vsub.s32 %v4377, %v4379
    %v4381 = vrot.slane %v4315, %v4380
    %v4382 = vcombine.high %v4381, %v4381
    %v4384 = vunpack.c.l.s4 1983009808
    %v4385 = vunpack.c.0.s8 %v4384
    %v4386 = vlaneseq
    %v4387 = vshrl.u32 %v4386, 7
    %v4388 = vsub.s32 %v4385, %v4387
    %v4389 = vrot.slane %v4317, %v4388
    %v4390 = vcombine.high %v4389, %v4389
    %v4392 = vunpack.c.l.s4 1983009808
    %v4393 = vunpack.c.0.s8 %v4392
    %v4394 = vlaneseq
    %v4395 = vshrl.u32 %v4394, 7
    %v4396 = vsub.s32 %v4393, %v4395
    %v4397 = vrot.slane %v4325, %v4396
    %v4398 = vcombine.high %v4397, %v4397
    %v4400 = vunpack.c.l.s4 1983009808
    %v4401 = vunpack.c.0.s8 %v4400
    %v4402 = vlaneseq
    %v4403 = vshrl.u32 %v4402, 7
    %v4404 = vsub.s32 %v4401, %v4403
    %v4405 = vrot.slane %v4326, %v4404
    %v4406 = vcombine.high %v4405, %v4405
    %v4427 = vsel %vm399, %v4333, -inf
    %v4428 = vrot.slane %v4427, 4
    %v4429 = vmax.f32 %v4427, %v4428
    %v4430 = vrot.slane %v4429, 2
    %v4431 = vmax.f32 %v4429, %v4430
    %v4432 = vrot.slane %v4431, 1
    %v4433 = vmax.f32 %v4431, %v4432
    %vm4434 = vcmask 254976
    %v4435 = vsel %vm4434, %v4334, -inf
    %v4436 = vrot.slane %v4435, 4
    %v4437 = vmax.f32 %v4435, %v4436
    %v4438 = vrot.slane %v4437, 2
    %v4439 = vmax.f32 %v4437, %v4438
    %v4440 = vrot.slane %v4439, 1
    %v4441 = vmax.f32 %v4439, %v4440
    %v4442 = vsel %vm399, %v4341, -inf
    %v4443 = vrot.slane %v4442, 4
    %v4444 = vmax.f32 %v4442, %v4443
    %v4445 = vrot.slane %v4444, 2
    %v4446 = vmax.f32 %v4444, %v4445
    %v4447 = vrot.slane %v4446, 1
    %v4448 = vmax.f32 %v4446, %v4447
    %v4449 = vsel %vm4434, %v4342, -inf
    %v4450 = vrot.slane %v4449, 4
    %v4451 = vmax.f32 %v4449, %v4450
    %v4452 = vrot.slane %v4451, 2
    %v4453 = vmax.f32 %v4451, %v4452
    %v4454 = vrot.slane %v4453, 1
    %v4455 = vmax.f32 %v4453, %v4454
    %v4456 = vsel %vm399, %v4349, -inf
    %v4457 = vrot.slane %v4456, 4
    %v4458 = vmax.f32 %v4456, %v4457
    %v4459 = vrot.slane %v4458, 2
    %v4460 = vmax.f32 %v4458, %v4459
    %v4461 = vrot.slane %v4460, 1
    %v4462 = vmax.f32 %v4460, %v4461
    %v4463 = vsel %vm4434, %v4350, -inf
    %v4464 = vrot.slane %v4463, 4
    %v4465 = vmax.f32 %v4463, %v4464
    %v4466 = vrot.slane %v4465, 2
    %v4467 = vmax.f32 %v4465, %v4466
    %v4468 = vrot.slane %v4467, 1
    %v4469 = vmax.f32 %v4467, %v4468
    %v4470 = vsel %vm399, %v4357, -inf
    %v4471 = vrot.slane %v4470, 4
    %v4472 = vmax.f32 %v4470, %v4471
    %v4473 = vrot.slane %v4472, 2
    %v4474 = vmax.f32 %v4472, %v4473
    %v4475 = vrot.slane %v4474, 1
    %v4476 = vmax.f32 %v4474, %v4475
    %v4477 = vsel %vm4434, %v4358, -inf
    %v4478 = vrot.slane %v4477, 4
    %v4479 = vmax.f32 %v4477, %v4478
    %v4480 = vrot.slane %v4479, 2
    %v4481 = vmax.f32 %v4479, %v4480
    %v4482 = vrot.slane %v4481, 1
    %v4483 = vmax.f32 %v4481, %v4482
    %v4484 = vsel %vm399, %v4365, -inf
    %v4485 = vrot.slane %v4484, 4
    %v4486 = vmax.f32 %v4484, %v4485
    %v4487 = vrot.slane %v4486, 2
    %v4488 = vmax.f32 %v4486, %v4487
    %v4489 = vrot.slane %v4488, 1
    %v4490 = vmax.f32 %v4488, %v4489
    %v4491 = vsel %vm4434, %v4366, -inf
    %v4492 = vrot.slane %v4491, 4
    %v4493 = vmax.f32 %v4491, %v4492
    %v4494 = vrot.slane %v4493, 2
    %v4495 = vmax.f32 %v4493, %v4494
    %v4496 = vrot.slane %v4495, 1
    %v4497 = vmax.f32 %v4495, %v4496
    %v4498 = vsel %vm399, %v4373, -inf
    %v4499 = vrot.slane %v4498, 4
    %v4500 = vmax.f32 %v4498, %v4499
    %v4501 = vrot.slane %v4500, 2
    %v4502 = vmax.f32 %v4500, %v4501
    %v4503 = vrot.slane %v4502, 1
    %v4504 = vmax.f32 %v4502, %v4503
    %v4505 = vsel %vm4434, %v4374, -inf
    %v4506 = vrot.slane %v4505, 4
    %v4507 = vmax.f32 %v4505, %v4506
    %v4508 = vrot.slane %v4507, 2
    %v4509 = vmax.f32 %v4507, %v4508
    %v4510 = vrot.slane %v4509, 1
    %v4511 = vmax.f32 %v4509, %v4510
    %v4512 = vsel %vm399, %v4381, -inf
    %v4513 = vrot.slane %v4512, 4
    %v4514 = vmax.f32 %v4512, %v4513
    %v4515 = vrot.slane %v4514, 2
    %v4516 = vmax.f32 %v4514, %v4515
    %v4517 = vrot.slane %v4516, 1
    %v4518 = vmax.f32 %v4516, %v4517
    %v4519 = vsel %vm4434, %v4382, -inf
    %v4520 = vrot.slane %v4519, 4
    %v4521 = vmax.f32 %v4519, %v4520
    %v4522 = vrot.slane %v4521, 2
    %v4523 = vmax.f32 %v4521, %v4522
    %v4524 = vrot.slane %v4523, 1
    %v4525 = vmax.f32 %v4523, %v4524
    %v4526 = vsel %vm399, %v4389, -inf
    %v4527 = vrot.slane %v4526, 4
    %v4528 = vmax.f32 %v4526, %v4527
    %v4529 = vrot.slane %v4528, 2
    %v4530 = vmax.f32 %v4528, %v4529
    %v4531 = vrot.slane %v4530, 1
    %v4532 = vmax.f32 %v4530, %v4531
    %v4533 = vsel %vm4434, %v4390, -inf
    %v4534 = vrot.slane %v4533, 4
    %v4535 = vmax.f32 %v4533, %v4534
    %v4536 = vrot.slane %v4535, 2
    %v4537 = vmax.f32 %v4535, %v4536
    %v4538 = vrot.slane %v4537, 1
    %v4539 = vmax.f32 %v4537, %v4538
    %v4540 = vsel %vm399, %v4397, -inf
    %v4541 = vrot.slane %v4540, 4
    %v4542 = vmax.f32 %v4540, %v4541
    %v4543 = vrot.slane %v4542, 2
    %v4544 = vmax.f32 %v4542, %v4543
    %v4545 = vrot.slane %v4544, 1
    %v4546 = vmax.f32 %v4544, %v4545
    %v4547 = vsel %vm4434, %v4398, -inf
    %v4548 = vrot.slane %v4547, 4
    %v4549 = vmax.f32 %v4547, %v4548
    %v4550 = vrot.slane %v4549, 2
    %v4551 = vmax.f32 %v4549, %v4550
    %v4552 = vrot.slane %v4551, 1
    %v4553 = vmax.f32 %v4551, %v4552
    %v4554 = vsel %vm399, %v4405, -inf
    %v4555 = vrot.slane %v4554, 4
    %v4556 = vmax.f32 %v4554, %v4555
    %v4557 = vrot.slane %v4556, 2
    %v4558 = vmax.f32 %v4556, %v4557
    %v4559 = vrot.slane %v4558, 1
    %v4560 = vmax.f32 %v4558, %v4559
    %v4561 = vsel %vm4434, %v4406, -inf
    %v4562 = vrot.slane %v4561, 4
    %v4563 = vmax.f32 %v4561, %v4562
    %v4564 = vrot.slane %v4563, 2
    %v4565 = vmax.f32 %v4563, %v4564
    %v4566 = vrot.slane %v4565, 1
    %v4567 = vmax.f32 %v4565, %v4566
    %v4588 = vsel %vm2563, %v4448, %v4433
    %v4589 = vsel %vm2565, %v4462, %v4588
    %v4590 = vsel %vm2567, %v4476, %v4589
    %v4591 = vsel %vm598, %v4490, %v4590
    %v4592 = vsel %vm2570, %v4504, %v4591
    %v4593 = vsel %vm2572, %v4518, %v4592
    %v4594 = vsel %vm2574, %v4532, %v4593
    %v4595 = vsel %vm2563, %v4455, %v4441
    %v4596 = vsel %vm2565, %v4469, %v4595
    %v4597 = vsel %vm2567, %v4483, %v4596
    %v4598 = vsel %vm598, %v4497, %v4597
    %v4599 = vsel %vm2570, %v4511, %v4598
    %v4600 = vsel %vm2572, %v4525, %v4599
    %v4601 = vsel %vm2574, %v4539, %v4600
    %v4602 = vsel %vm2563, %v4560, %v4546
    %v4603 = vsel %vm2563, %v4567, %v4553
    %v4606 = vsel %vm149, %v4601, 0
    %v4608 = vsel %vm149, %v4603, 0
    %4610 = vmatprep.subr.mxu0 0.0
    %4611 = vmatpush1.msra.mxu0 %v2437
    %4612 = vmatprep.subr.mxu0 0.0
    %4613 = vmatpush1.msra.mxu0 %v2436
    %4614 = vmatprep.subr.mxu0 0.0
    %4615 = vmatpush1.msra.mxu0 %v2435
    %4616 = vmatprep.subr.mxu0 0.0
    %4617 = vmatpush1.msra.mxu0 %v2434
    %4618 = vmatprep.subr.mxu0 0.0
    %4619 = vmatpush1.msra.mxu0 %v2433
    %4620 = vmatprep.subr.mxu0 0.0
    %4621 = vmatpush1.msra.mxu0 %v2432
    %4622 = vmatprep.subr.mxu0 0.0
    %4623 = vmatpush1.msra.mxu0 %v2431
    %4624 = vmatprep.subr.mxu0 0.0
    %4625 = vmatpush1.msra.mxu0 %v2430
    %4626 = vmatprep.subr.mxu0 0.0
    %4627 = vmatpush1.msra.mxu0 %v2429
    %4628 = vmatprep.subr.mxu0 0.0
    %4629 = vmatpush1.msra.mxu0 %v2428
    %4630 = vmatprep.subr.mxu0 0.0
    %4631 = vmatpush1.msra.mxu0 %v2427
    %4632 = vmatprep.subr.mxu0 0.0
    %4633 = vmatpush1.msra.mxu0 %v2426
    %4634 = vmatprep.subr.mxu0 0.0
    %4635 = vmatpush1.msra.mxu0 %v2425
    %4636 = vmatprep.subr.mxu0 0.0
    %4637 = vmatpush1.msra.mxu0 %v2424
    %4638 = vmatprep.subr.mxu0 0.0
    %4639 = vmatpush1.msra.mxu0 %v2423
    %4640 = vmatprep.subr.mxu0 0.0
    %4641 = vmatpush1.msra.mxu0 %v2422
    %4642 = vmatprep.subr.mxu0 0.0
    %4643 = vmatpush2.msra.mxu0 0.0
    %4644 = vmatprep.subr.mxu0 0.0
    %4645 = vmatpush2.msra.mxu0 0.0
    %4646 = vmatprep.subr.mxu0 0.0
    %4647 = vmatpush2.msra.mxu0 0.0
    %4648 = vmatprep.subr.mxu0 0.0
    %4649 = vmatpush2.msra.mxu0 0.0
    %4650 = vmatprep.subr.mxu0 0.0
    %4651 = vmatpush2.msra.mxu0 0.0
    %4652 = vmatprep.subr.mxu0 0.0
    %4653 = vmatpush2.msra.mxu0 0.0
    %4654 = vmatprep.subr.mxu0 0.0
    %4655 = vmatpush2.msra.mxu0 0.0
    %4656 = vmatprep.subr.mxu0 0.0
    %4657 = vmatpush2.msra.mxu0 0.0
    %4658 = vmatprep.subr.mxu0 0.0
    %4659 = vmatpush2.msra.mxu0 0.0
    %4660 = vmatprep.subr.mxu0 0.0
    %4661 = vmatpush2.msra.mxu0 0.0
    %4662 = vmatprep.subr.mxu0 0.0
    %4663 = vmatpush2.msra.mxu0 0.0
    %4664 = vmatprep.subr.mxu0 0.0
    %4665 = vmatpush2.msra.mxu0 0.0
    %4666 = vmatprep.subr.mxu0 0.0
    %4667 = vmatpush2.msra.mxu0 %v2441
    %4668 = vmatprep.subr.mxu0 0.0
    %4669 = vmatpush2.msra.mxu0 %v2440
    %4670 = vmatprep.subr.mxu0 0.0
    %4671 = vmatpush2.msra.mxu0 %v2439
    %4672 = vmatprep.subr.mxu0 0.0
    %4673 = vmatpush2.msra.mxu0 %v2438
    %4674 = vmatprep.mubr.f32.mxu0 %v4606
    %4675 = vmatmul.mubr.f32.gmra.mxu0 %v4594
    %v4676 = vpop.f32.mrf.mxu0
    %v4677 = vadd.f32 0.0, %v4676
    %v4678 = vpop.f32.mrf.mxu0
    %4679 = vmatprep.mubr.f32.mxu0 %v4608
    %4680 = vmatmul.mubr.f32.gmra.mxu0 %v4602
    %v4681 = vpop.f32.mrf.mxu0
    %v4682 = vadd.f32 0.0, %v4681
    %v4683 = vpop.f32.mrf.mxu0
    %4684 = vdwg.mxu0
    %4685 = vmatprep.subr.mxu0 0.0
    %4686 = vmatpush1.msra.mxu0 %v2501
    %4687 = vmatprep.subr.mxu0 0.0
    %4688 = vmatpush1.msra.mxu0 %v2500
    %4689 = vmatprep.subr.mxu0 0.0
    %4690 = vmatpush1.msra.mxu0 %v2499
    %4691 = vmatprep.subr.mxu0 0.0
    %4692 = vmatpush1.msra.mxu0 %v2498
    %4693 = vmatprep.subr.mxu0 0.0
    %4694 = vmatpush1.msra.mxu0 %v2497
    %4695 = vmatprep.subr.mxu0 0.0
    %4696 = vmatpush1.msra.mxu0 %v2496
    %4697 = vmatprep.subr.mxu0 0.0
    %4698 = vmatpush1.msra.mxu0 %v2495
    %4699 = vmatprep.subr.mxu0 0.0
    %4700 = vmatpush1.msra.mxu0 %v2494
    %4701 = vmatprep.subr.mxu0 0.0
    %4702 = vmatpush1.msra.mxu0 %v2493
    %4703 = vmatprep.subr.mxu0 0.0
    %4704 = vmatpush1.msra.mxu0 %v2492
    %4705 = vmatprep.subr.mxu0 0.0
    %4706 = vmatpush1.msra.mxu0 %v2491
    %4707 = vmatprep.subr.mxu0 0.0
    %4708 = vmatpush1.msra.mxu0 %v2490
    %4709 = vmatprep.subr.mxu0 0.0
    %4710 = vmatpush1.msra.mxu0 %v2489
    %4711 = vmatprep.subr.mxu0 0.0
    %4712 = vmatpush1.msra.mxu0 %v2488
    %4713 = vmatprep.subr.mxu0 0.0
    %4714 = vmatpush1.msra.mxu0 %v2487
    %4715 = vmatprep.subr.mxu0 0.0
    %4716 = vmatpush1.msra.mxu0 %v2486
    %4717 = vmatprep.subr.mxu0 0.0
    %4718 = vmatpush2.msra.mxu0 0.0
    %4719 = vmatprep.subr.mxu0 0.0
    %4720 = vmatpush2.msra.mxu0 0.0
    %4721 = vmatprep.subr.mxu0 0.0
    %4722 = vmatpush2.msra.mxu0 0.0
    %4723 = vmatprep.subr.mxu0 0.0
    %4724 = vmatpush2.msra.mxu0 0.0
    %4725 = vmatprep.subr.mxu0 0.0
    %4726 = vmatpush2.msra.mxu0 0.0
    %4727 = vmatprep.subr.mxu0 0.0
    %4728 = vmatpush2.msra.mxu0 0.0
    %4729 = vmatprep.subr.mxu0 0.0
    %4730 = vmatpush2.msra.mxu0 0.0
    %4731 = vmatprep.subr.mxu0 0.0
    %4732 = vmatpush2.msra.mxu0 0.0
    %4733 = vmatprep.subr.mxu0 0.0
    %4734 = vmatpush2.msra.mxu0 0.0
    %4735 = vmatprep.subr.mxu0 0.0
    %4736 = vmatpush2.msra.mxu0 0.0
    %4737 = vmatprep.subr.mxu0 0.0
    %4738 = vmatpush2.msra.mxu0 0.0
    %4739 = vmatprep.subr.mxu0 0.0
    %4740 = vmatpush2.msra.mxu0 0.0
    %4741 = vmatprep.subr.mxu0 0.0
    %4742 = vmatpush2.msra.mxu0 %v2505
    %4743 = vmatprep.subr.mxu0 0.0
    %4744 = vmatpush2.msra.mxu0 %v2504
    %4745 = vmatprep.subr.mxu0 0.0
    %4746 = vmatpush2.msra.mxu0 %v2503
    %4747 = vmatprep.subr.mxu0 0.0
    %4748 = vmatpush2.msra.mxu0 %v2502
    %4749 = vmatprep.mubr.f32.mxu0 %v4606
    %4750 = vmatmul.mubr.f32.gmra.mxu0 %v4594
    %v4751 = vpop.f32.mrf.mxu0
    %v4752 = vadd.f32 0.0, %v4751
    %v4753 = vpop.f32.mrf.mxu0
    %4754 = vmatprep.mubr.f32.mxu0 %v4608
    %4755 = vmatmul.mubr.f32.gmra.mxu0 %v4602
    %v4756 = vpop.f32.mrf.mxu0
    %v4757 = vadd.f32 0.0, %v4756
    %v4758 = vpop.f32.mrf.mxu0
    %4759 = vdwg.mxu0
    %v4760 = vmax.f32 %v4677, %v4752
    %v4761 = vmax.f32 %v4682, %v4757
    %v4764 = vcombine.high %v4760, %v4760
    %v4766 = vunpack.c.l.s4 1966171168
    %v4767 = vunpack.c.0.s8 %v4766
    %v4768 = vlaneseq
    %v4769 = vshrl.u32 %v4768, 7
    %v4770 = vsub.s32 %v4767, %v4769
    %v4771 = vrot.slane %v4760, %v4770
    %v4773 = vunpack.c.l.s4 1966171168
    %v4774 = vunpack.c.0.s8 %v4773
    %v4775 = vlaneseq
    %v4776 = vshrl.u32 %v4775, 7
    %v4777 = vsub.s32 %v4774, %v4776
    %v4778 = vrot.slane %v4764, %v4777
    %v4779 = vcombine.high %v4771, %v4771
    %v4780 = vcombine.high %v4778, %v4778
    %v4782 = vunpack.c.l.s4 1966171168
    %v4783 = vunpack.c.0.s8 %v4782
    %v4784 = vlaneseq
    %v4785 = vshrl.u32 %v4784, 7
    %v4786 = vsub.s32 %v4783, %v4785
    %v4787 = vrot.slane %v4771, %v4786
    %v4789 = vunpack.c.l.s4 1966171168
    %v4790 = vunpack.c.0.s8 %v4789
    %v4791 = vlaneseq
    %v4792 = vshrl.u32 %v4791, 7
    %v4793 = vsub.s32 %v4790, %v4792
    %v4794 = vrot.slane %v4778, %v4793
    %v4796 = vunpack.c.l.s4 1966171168
    %v4797 = vunpack.c.0.s8 %v4796
    %v4798 = vlaneseq
    %v4799 = vshrl.u32 %v4798, 7
    %v4800 = vsub.s32 %v4797, %v4799
    %v4801 = vrot.slane %v4779, %v4800
    %v4803 = vunpack.c.l.s4 1966171168
    %v4804 = vunpack.c.0.s8 %v4803
    %v4805 = vlaneseq
    %v4806 = vshrl.u32 %v4805, 7
    %v4807 = vsub.s32 %v4804, %v4806
    %v4808 = vrot.slane %v4780, %v4807
    %v4809 = vcombine.high %v4787, %v4787
    %v4810 = vcombine.high %v4794, %v4794
    %v4811 = vcombine.high %v4801, %v4801
    %v4812 = vcombine.high %v4808, %v4808
    %v4814 = vunpack.c.l.s4 1966171168
    %v4815 = vunpack.c.0.s8 %v4814
    %v4816 = vlaneseq
    %v4817 = vshrl.u32 %v4816, 7
    %v4818 = vsub.s32 %v4815, %v4817
    %v4819 = vrot.slane %v4761, %v4818
    %v4820 = vcombine.high %v4819, %v4819
    %v4822 = vunpack.c.l.s4 1966171168
    %v4823 = vunpack.c.0.s8 %v4822
    %v4824 = vlaneseq
    %v4825 = vshrl.u32 %v4824, 7
    %v4826 = vsub.s32 %v4823, %v4825
    %v4827 = vrot.slane %v4819, %v4826
    %v4829 = vunpack.c.l.s4 1966171168
    %v4830 = vunpack.c.0.s8 %v4829
    %v4831 = vlaneseq
    %v4832 = vshrl.u32 %v4831, 7
    %v4833 = vsub.s32 %v4830, %v4832
    %v4834 = vrot.slane %v4820, %v4833
    %v4835 = vcombine.low %v4787, %v4801
    %v4836 = vcombine.low %v4809, %v4811
    %v4838 = vunpack.c.l.s4 1966171168
    %v4839 = vunpack.c.0.s8 %v4838
    %v4840 = vlaneseq
    %v4841 = vshrl.u32 %v4840, 7
    %v4842 = vsub.s32 %v4839, %v4841
    %v4843 = vrot.slane %v4835, %v4842
    %v4845 = vunpack.c.l.s4 1966171168
    %v4846 = vunpack.c.0.s8 %v4845
    %v4847 = vlaneseq
    %v4848 = vshrl.u32 %v4847, 7
    %v4849 = vsub.s32 %v4846, %v4848
    %v4850 = vrot.slane %v4836, %v4849
    %v4852 = vunpack.c.l.s4 1966171168
    %v4853 = vunpack.c.0.s8 %v4852
    %v4854 = vlaneseq
    %v4855 = vshrl.u32 %v4854, 7
    %v4856 = vsub.s32 %v4853, %v4855
    %v4857 = vrot.slane %v4794, %v4856
    %v4858 = vcombine.low %v4843, %v4850
    %v4860 = vunpack.c.l.s4 1966171168
    %v4861 = vunpack.c.0.s8 %v4860
    %v4862 = vlaneseq
    %v4863 = vshrl.u32 %v4862, 7
    %v4864 = vsub.s32 %v4861, %v4863
    %v4865 = vrot.slane %v4858, %v4864
    %v4867 = vunpack.c.l.s4 1966171168
    %v4868 = vunpack.c.0.s8 %v4867
    %v4869 = vlaneseq
    %v4870 = vshrl.u32 %v4869, 7
    %v4871 = vsub.s32 %v4868, %v4870
    %v4872 = vrot.slane %v4857, %v4871
    %v4873 = vcombine.low %v4865, %v4872
    %v4874 = vcombine.low %v4808, %v4810
    %v4875 = vcombine.low %v4812, %v4827
    %v4877 = vunpack.c.l.s4 1966171168
    %v4878 = vunpack.c.0.s8 %v4877
    %v4879 = vlaneseq
    %v4880 = vshrl.u32 %v4879, 7
    %v4881 = vsub.s32 %v4878, %v4880
    %v4882 = vrot.slane %v4874, %v4881
    %v4884 = vunpack.c.l.s4 1966171168
    %v4885 = vunpack.c.0.s8 %v4884
    %v4886 = vlaneseq
    %v4887 = vshrl.u32 %v4886, 7
    %v4888 = vsub.s32 %v4885, %v4887
    %v4889 = vrot.slane %v4875, %v4888
    %v4891 = vunpack.c.l.s4 1966171168
    %v4892 = vunpack.c.0.s8 %v4891
    %v4893 = vlaneseq
    %v4894 = vshrl.u32 %v4893, 7
    %v4895 = vsub.s32 %v4892, %v4894
    %v4896 = vrot.slane %v4834, %v4895
    %v4897 = vcombine.low %v4882, %v4889
    %v4899 = vunpack.c.l.s4 1966171168
    %v4900 = vunpack.c.0.s8 %v4899
    %v4901 = vlaneseq
    %v4902 = vshrl.u32 %v4901, 7
    %v4903 = vsub.s32 %v4900, %v4902
    %v4904 = vrot.slane %v4897, %v4903
    %v4906 = vunpack.c.l.s4 1966171168
    %v4907 = vunpack.c.0.s8 %v4906
    %v4908 = vlaneseq
    %v4909 = vshrl.u32 %v4908, 7
    %v4910 = vsub.s32 %v4907, %v4909
    %v4911 = vrot.slane %v4896, %v4910
    %v4912 = vcombine.low %v4904, %v4911
    %vm4915 = vcmask 651264
    %4916 = vst.msk [vmem:[%s16] sm:$0x1f] %vm4915, %v4873
    %4917 = vst.msk [vmem:[%s16 + $0x8] sm:$0x1f] %vm4915, %v4912
    %v4918 = vld [vmem:[%s9] sm:$0xff]
    %v4919 = vld [vmem:[%s9 + $0x8] sm:$0xff]
    %v4920 = vld [vmem:[%s9 + $0x10] sm:$0xff]
    %v4921 = vld [vmem:[%s9 + $0x18] sm:$0xff]
    %v4922 = vld [vmem:[%s9 + $0x20] sm:$0xff]
    %v4923 = vld [vmem:[%s9 + $0x28] sm:$0xff]
    %v4924 = vld [vmem:[%s9 + $0x30] sm:$0xff]
    %v4925 = vld [vmem:[%s9 + $0x38] sm:$0xff]
    %v4926 = vld [vmem:[%s9 + $0x40] sm:$0xff]
    %v4927 = vld [vmem:[%s9 + $0x48] sm:$0xff]
    %s4928 = scalar_lea.vmem %s9, 80
    %v4929 = vld [vmem:[%s4928] sm:$0xff]
    %v4930 = vld [vmem:[%s4928 + $0x8] sm:$0xff]
    %v4931 = vld [vmem:[%s4928 + $0x10] sm:$0xff]
    %v4932 = vld [vmem:[%s4928 + $0x18] sm:$0xff]
    %v4933 = vld [vmem:[%s4928 + $0x20] sm:$0xff]
    %v4934 = vld [vmem:[%s4928 + $0x28] sm:$0xff]
    %v4935 = vld [vmem:[%s4928 + $0x30] sm:$0xff]
    %v4936 = vld [vmem:[%s4928 + $0x38] sm:$0xff]
    %v4937 = vld [vmem:[%s4928 + $0x40] sm:$0xff]
    %v4938 = vld [vmem:[%s4928 + $0x48] sm:$0xff]
    %v4939 = vcombine.low %v4801, %v4810
    %v4941 = vunpack.c.l.s4 1966171168
    %v4942 = vunpack.c.0.s8 %v4941
    %v4943 = vlaneseq
    %v4944 = vshrl.u32 %v4943, 7
    %v4945 = vsub.s32 %v4942, %v4944
    %v4946 = vrot.slane %v4939, %v4945
    %v4948 = vunpack.c.l.s4 1966171168
    %v4949 = vunpack.c.0.s8 %v4948
    %v4950 = vlaneseq
    %v4951 = vshrl.u32 %v4950, 7
    %v4952 = vsub.s32 %v4949, %v4951
    %v4953 = vrot.slane %v4946, %v4952
    %vm4954 = vcmask 654336
    %v4955 = vsel %vm4954, %v4953, 0
    %4957 = vmatprep.subr.mxu0 0.0
    %4958 = vmatpush1.msra.mxu0 0.0
    %4959 = vmatprep.subr.mxu0 0.0
    %4960 = vmatpush1.msra.mxu0 0.0
    %4961 = vmatprep.subr.mxu0 0.0
    %4962 = vmatpush1.msra.mxu0 0.0
    %4963 = vmatprep.subr.mxu0 0.0
    %4964 = vmatpush1.msra.mxu0 0.0
    %4965 = vmatprep.subr.mxu0 0.0
    %4966 = vmatpush1.msra.mxu0 0.0
    %4967 = vmatprep.subr.mxu0 0.0
    %4968 = vmatpush1.msra.mxu0 0.0
    %4969 = vmatprep.subr.mxu0 0.0
    %4970 = vmatpush1.msra.mxu0 %v4938
    %4971 = vmatprep.subr.mxu0 0.0
    %4972 = vmatpush1.msra.mxu0 %v4937
    %4973 = vmatprep.subr.mxu0 0.0
    %4974 = vmatpush1.msra.mxu0 %v4936
    %4975 = vmatprep.subr.mxu0 0.0
    %4976 = vmatpush1.msra.mxu0 %v4935
    %4977 = vmatprep.subr.mxu0 0.0
    %4978 = vmatpush1.msra.mxu0 %v4934
    %4979 = vmatprep.subr.mxu0 0.0
    %4980 = vmatpush1.msra.mxu0 %v4933
    %4981 = vmatprep.subr.mxu0 0.0
    %4982 = vmatpush1.msra.mxu0 %v4932
    %4983 = vmatprep.subr.mxu0 0.0
    %4984 = vmatpush1.msra.mxu0 %v4931
    %4985 = vmatprep.subr.mxu0 0.0
    %4986 = vmatpush1.msra.mxu0 %v4930
    %4987 = vmatprep.subr.mxu0 0.0
    %4988 = vmatpush1.msra.mxu0 %v4929
    %4989 = vmatprep.subr.mxu0 0.0
    %4990 = vmatpush2.msra.mxu0 0.0
    %4991 = vmatprep.subr.mxu0 0.0
    %4992 = vmatpush2.msra.mxu0 0.0
    %4993 = vmatprep.subr.mxu0 0.0
    %4994 = vmatpush2.msra.mxu0 0.0
    %4995 = vmatprep.subr.mxu0 0.0
    %4996 = vmatpush2.msra.mxu0 0.0
    %4997 = vmatprep.subr.mxu0 0.0
    %4998 = vmatpush2.msra.mxu0 0.0
    %4999 = vmatprep.subr.mxu0 0.0
    %5000 = vmatpush2.msra.mxu0 0.0
    %5001 = vmatprep.subr.mxu0 0.0
    %5002 = vmatpush2.msra.mxu0 0.0
    %5003 = vmatprep.subr.mxu0 0.0
    %5004 = vmatpush2.msra.mxu0 0.0
    %5005 = vmatprep.subr.mxu0 0.0
    %5006 = vmatpush2.msra.mxu0 0.0
    %5007 = vmatprep.subr.mxu0 0.0
    %5008 = vmatpush2.msra.mxu0 0.0
    %5009 = vmatprep.subr.mxu0 0.0
    %5010 = vmatpush2.msra.mxu0 0.0
    %5011 = vmatprep.subr.mxu0 0.0
    %5012 = vmatpush2.msra.mxu0 0.0
    %5013 = vmatprep.subr.mxu0 0.0
    %5014 = vmatpush2.msra.mxu0 0.0
    %5015 = vmatprep.subr.mxu0 0.0
    %5016 = vmatpush2.msra.mxu0 0.0
    %5017 = vmatprep.subr.mxu0 0.0
    %5018 = vmatpush2.msra.mxu0 0.0
    %5019 = vmatprep.subr.mxu0 0.0
    %5020 = vmatpush2.msra.mxu0 0.0
    %5021 = vmatprep.mubr.f32.mxu0 0.0
    %5022 = vmatmul.mubr.f32.gmra.mxu0 %v4955
    %v5023 = vpop.f32.mrf.mxu0
    %v5024 = vadd.f32 0.0, %v5023
    %v5025 = vpop.f32.mrf.mxu0
    %5026 = vdwg.mxu0
    %v5027 = vcombine.low %v4787, %v4808
    %v5029 = vunpack.c.l.s4 1966171168
    %v5030 = vunpack.c.0.s8 %v5029
    %v5031 = vlaneseq
    %v5032 = vshrl.u32 %v5031, 7
    %v5033 = vsub.s32 %v5030, %v5032
    %v5034 = vrot.slane %v5027, %v5033
    %v5036 = vunpack.c.l.s4 1966171168
    %v5037 = vunpack.c.0.s8 %v5036
    %v5038 = vlaneseq
    %v5039 = vshrl.u32 %v5038, 7
    %v5040 = vsub.s32 %v5037, %v5039
    %v5041 = vrot.slane %v5034, %v5040
    %v5042 = vsel %vm4954, %v5041, 0
    %5044 = vmatprep.subr.mxu0 0.0
    %5045 = vmatpush1.msra.mxu0 0.0
    %5046 = vmatprep.subr.mxu0 0.0
    %5047 = vmatpush1.msra.mxu0 0.0
    %5048 = vmatprep.subr.mxu0 0.0
    %5049 = vmatpush1.msra.mxu0 0.0
    %5050 = vmatprep.subr.mxu0 0.0
    %5051 = vmatpush1.msra.mxu0 0.0
    %5052 = vmatprep.subr.mxu0 0.0
    %5053 = vmatpush1.msra.mxu0 0.0
    %5054 = vmatprep.subr.mxu0 0.0
    %5055 = vmatpush1.msra.mxu0 0.0
    %5056 = vmatprep.subr.mxu0 0.0
    %5057 = vmatpush1.msra.mxu0 %v4927
    %5058 = vmatprep.subr.mxu0 0.0
    %5059 = vmatpush1.msra.mxu0 %v4926
    %5060 = vmatprep.subr.mxu0 0.0
    %5061 = vmatpush1.msra.mxu0 %v4925
    %5062 = vmatprep.subr.mxu0 0.0
    %5063 = vmatpush1.msra.mxu0 %v4924
    %5064 = vmatprep.subr.mxu0 0.0
    %5065 = vmatpush1.msra.mxu0 %v4923
    %5066 = vmatprep.subr.mxu0 0.0
    %5067 = vmatpush1.msra.mxu0 %v4922
    %5068 = vmatprep.subr.mxu0 0.0
    %5069 = vmatpush1.msra.mxu0 %v4921
    %5070 = vmatprep.subr.mxu0 0.0
    %5071 = vmatpush1.msra.mxu0 %v4920
    %5072 = vmatprep.subr.mxu0 0.0
    %5073 = vmatpush1.msra.mxu0 %v4919
    %5074 = vmatprep.subr.mxu0 0.0
    %5075 = vmatpush1.msra.mxu0 %v4918
    %5076 = vmatprep.subr.mxu0 0.0
    %5077 = vmatpush2.msra.mxu0 0.0
    %5078 = vmatprep.subr.mxu0 0.0
    %5079 = vmatpush2.msra.mxu0 0.0
    %5080 = vmatprep.subr.mxu0 0.0
    %5081 = vmatpush2.msra.mxu0 0.0
    %5082 = vmatprep.subr.mxu0 0.0
    %5083 = vmatpush2.msra.mxu0 0.0
    %5084 = vmatprep.subr.mxu0 0.0
    %5085 = vmatpush2.msra.mxu0 0.0
    %5086 = vmatprep.subr.mxu0 0.0
    %5087 = vmatpush2.msra.mxu0 0.0
    %5088 = vmatprep.subr.mxu0 0.0
    %5089 = vmatpush2.msra.mxu0 0.0
    %5090 = vmatprep.subr.mxu0 0.0
    %5091 = vmatpush2.msra.mxu0 0.0
    %5092 = vmatprep.subr.mxu0 0.0
    %5093 = vmatpush2.msra.mxu0 0.0
    %5094 = vmatprep.subr.mxu0 0.0
    %5095 = vmatpush2.msra.mxu0 0.0
    %5096 = vmatprep.subr.mxu0 0.0
    %5097 = vmatpush2.msra.mxu0 0.0
    %5098 = vmatprep.subr.mxu0 0.0
    %5099 = vmatpush2.msra.mxu0 0.0
    %5100 = vmatprep.subr.mxu0 0.0
    %5101 = vmatpush2.msra.mxu0 0.0
    %5102 = vmatprep.subr.mxu0 0.0
    %5103 = vmatpush2.msra.mxu0 0.0
    %5104 = vmatprep.subr.mxu0 0.0
    %5105 = vmatpush2.msra.mxu0 0.0
    %5106 = vmatprep.subr.mxu0 0.0
    %5107 = vmatpush2.msra.mxu0 0.0
    %5108 = vmatprep.mubr.f32.mxu0 0.0
    %5109 = vmatmul.mubr.f32.gmra.mxu0 %v5042
    %v5110 = vpop.f32.mrf.mxu0
    %v5111 = vadd.f32 %v5024, %v5110
    %v5112 = vpop.f32.mrf.mxu0
    %5113 = vdwg.mxu0
    %s5114 = scalar_lea.vmem %s9, 160
    %v5115 = vld [vmem:[%s5114] sm:$0xff]
    %v5116 = vld [vmem:[%s5114 + $0x8] sm:$0xff]
    %v5117 = vld [vmem:[%s5114 + $0x10] sm:$0xff]
    %v5118 = vld [vmem:[%s5114 + $0x18] sm:$0xff]
    %v5119 = vld [vmem:[%s5114 + $0x20] sm:$0xff]
    %v5120 = vld [vmem:[%s5114 + $0x28] sm:$0xff]
    %v5121 = vld [vmem:[%s5114 + $0x30] sm:$0xff]
    %v5122 = vld [vmem:[%s5114 + $0x38] sm:$0xff]
    %v5123 = vld [vmem:[%s5114 + $0x40] sm:$0xff]
    %v5124 = vld [vmem:[%s5114 + $0x48] sm:$0xff]
    %v5125 = vcombine.low %v4809, %v4812
    %v5127 = vunpack.c.l.s4 1966171168
    %v5128 = vunpack.c.0.s8 %v5127
    %v5129 = vlaneseq
    %v5130 = vshrl.u32 %v5129, 7
    %v5131 = vsub.s32 %v5128, %v5130
    %v5132 = vrot.slane %v5125, %v5131
    %v5134 = vunpack.c.l.s4 1966171168
    %v5135 = vunpack.c.0.s8 %v5134
    %v5136 = vlaneseq
    %v5137 = vshrl.u32 %v5136, 7
    %v5138 = vsub.s32 %v5135, %v5137
    %v5139 = vrot.slane %v5132, %v5138
    %v5140 = vsel %vm4954, %v5139, 0
    %5142 = vmatprep.subr.mxu0 0.0
    %5143 = vmatpush1.msra.mxu0 0.0
    %5144 = vmatprep.subr.mxu0 0.0
    %5145 = vmatpush1.msra.mxu0 0.0
    %5146 = vmatprep.subr.mxu0 0.0
    %5147 = vmatpush1.msra.mxu0 0.0
    %5148 = vmatprep.subr.mxu0 0.0
    %5149 = vmatpush1.msra.mxu0 0.0
    %5150 = vmatprep.subr.mxu0 0.0
    %5151 = vmatpush1.msra.mxu0 0.0
    %5152 = vmatprep.subr.mxu0 0.0
    %5153 = vmatpush1.msra.mxu0 0.0
    %5154 = vmatprep.subr.mxu0 0.0
    %5155 = vmatpush1.msra.mxu0 %v5124
    %5156 = vmatprep.subr.mxu0 0.0
    %5157 = vmatpush1.msra.mxu0 %v5123
    %5158 = vmatprep.subr.mxu0 0.0
    %5159 = vmatpush1.msra.mxu0 %v5122
    %5160 = vmatprep.subr.mxu0 0.0
    %5161 = vmatpush1.msra.mxu0 %v5121
    %5162 = vmatprep.subr.mxu0 0.0
    %5163 = vmatpush1.msra.mxu0 %v5120
    %5164 = vmatprep.subr.mxu0 0.0
    %5165 = vmatpush1.msra.mxu0 %v5119
    %5166 = vmatprep.subr.mxu0 0.0
    %5167 = vmatpush1.msra.mxu0 %v5118
    %5168 = vmatprep.subr.mxu0 0.0
    %5169 = vmatpush1.msra.mxu0 %v5117
    %5170 = vmatprep.subr.mxu0 0.0
    %5171 = vmatpush1.msra.mxu0 %v5116
    %5172 = vmatprep.subr.mxu0 0.0
    %5173 = vmatpush1.msra.mxu0 %v5115
    %5174 = vmatprep.subr.mxu0 0.0
    %5175 = vmatpush2.msra.mxu0 0.0
    %5176 = vmatprep.subr.mxu0 0.0
    %5177 = vmatpush2.msra.mxu0 0.0
    %5178 = vmatprep.subr.mxu0 0.0
    %5179 = vmatpush2.msra.mxu0 0.0
    %5180 = vmatprep.subr.mxu0 0.0
    %5181 = vmatpush2.msra.mxu0 0.0
    %5182 = vmatprep.subr.mxu0 0.0
    %5183 = vmatpush2.msra.mxu0 0.0
    %5184 = vmatprep.subr.mxu0 0.0
    %5185 = vmatpush2.msra.mxu0 0.0
    %5186 = vmatprep.subr.mxu0 0.0
    %5187 = vmatpush2.msra.mxu0 0.0
    %5188 = vmatprep.subr.mxu0 0.0
    %5189 = vmatpush2.msra.mxu0 0.0
    %5190 = vmatprep.subr.mxu0 0.0
    %5191 = vmatpush2.msra.mxu0 0.0
    %5192 = vmatprep.subr.mxu0 0.0
    %5193 = vmatpush2.msra.mxu0 0.0
    %5194 = vmatprep.subr.mxu0 0.0
    %5195 = vmatpush2.msra.mxu0 0.0
    %5196 = vmatprep.subr.mxu0 0.0
    %5197 = vmatpush2.msra.mxu0 0.0
    %5198 = vmatprep.subr.mxu0 0.0
    %5199 = vmatpush2.msra.mxu0 0.0
    %5200 = vmatprep.subr.mxu0 0.0
    %5201 = vmatpush2.msra.mxu0 0.0
    %5202 = vmatprep.subr.mxu0 0.0
    %5203 = vmatpush2.msra.mxu0 0.0
    %5204 = vmatprep.subr.mxu0 0.0
    %5205 = vmatpush2.msra.mxu0 0.0
    %5206 = vmatprep.mubr.f32.mxu0 0.0
    %5207 = vmatmul.mubr.f32.gmra.mxu0 %v5140
    %v5208 = vpop.f32.mrf.mxu0
    %v5209 = vadd.f32 0.0, %v5208
    %v5210 = vpop.f32.mrf.mxu0
    %5211 = vdwg.mxu0
    %v5212 = vadd.f32 %v5111, %v5209
    %s5213 = scalar_lea.vmem %s9, 240
    %v5214 = vld [vmem:[%s5213] sm:$0xff]
    %v5215 = vld [vmem:[%s5213 + $0x8] sm:$0xff]
    %v5216 = vld [vmem:[%s5213 + $0x10] sm:$0xff]
    %v5217 = vld [vmem:[%s5213 + $0x18] sm:$0xff]
    %v5218 = vld [vmem:[%s5213 + $0x20] sm:$0xff]
    %v5219 = vld [vmem:[%s5213 + $0x28] sm:$0xff]
    %v5220 = vld [vmem:[%s5213 + $0x30] sm:$0xff]
    %v5221 = vld [vmem:[%s5213 + $0x38] sm:$0xff]
    %v5222 = vld [vmem:[%s5213 + $0x40] sm:$0xff]
    %v5223 = vld [vmem:[%s5213 + $0x48] sm:$0xff]
    %v5224 = vcombine.low %v4811, %v4827
    %v5226 = vunpack.c.l.s4 1966171168
    %v5227 = vunpack.c.0.s8 %v5226
    %v5228 = vlaneseq
    %v5229 = vshrl.u32 %v5228, 7
    %v5230 = vsub.s32 %v5227, %v5229
    %v5231 = vrot.slane %v5224, %v5230
    %v5233 = vunpack.c.l.s4 1966171168
    %v5234 = vunpack.c.0.s8 %v5233
    %v5235 = vlaneseq
    %v5236 = vshrl.u32 %v5235, 7
    %v5237 = vsub.s32 %v5234, %v5236
    %v5238 = vrot.slane %v5231, %v5237
    %v5239 = vsel %vm4954, %v5238, 0
    %5241 = vmatprep.subr.mxu0 0.0
    %5242 = vmatpush1.msra.mxu0 0.0
    %5243 = vmatprep.subr.mxu0 0.0
    %5244 = vmatpush1.msra.mxu0 0.0
    %5245 = vmatprep.subr.mxu0 0.0
    %5246 = vmatpush1.msra.mxu0 0.0
    %5247 = vmatprep.subr.mxu0 0.0
    %5248 = vmatpush1.msra.mxu0 0.0
    %5249 = vmatprep.subr.mxu0 0.0
    %5250 = vmatpush1.msra.mxu0 0.0
    %5251 = vmatprep.subr.mxu0 0.0
    %5252 = vmatpush1.msra.mxu0 0.0
    %5253 = vmatprep.subr.mxu0 0.0
    %5254 = vmatpush1.msra.mxu0 %v5223
    %5255 = vmatprep.subr.mxu0 0.0
    %5256 = vmatpush1.msra.mxu0 %v5222
    %5257 = vmatprep.subr.mxu0 0.0
    %5258 = vmatpush1.msra.mxu0 %v5221
    %5259 = vmatprep.subr.mxu0 0.0
    %5260 = vmatpush1.msra.mxu0 %v5220
    %5261 = vmatprep.subr.mxu0 0.0
    %5262 = vmatpush1.msra.mxu0 %v5219
    %5263 = vmatprep.subr.mxu0 0.0
    %5264 = vmatpush1.msra.mxu0 %v5218
    %5265 = vmatprep.subr.mxu0 0.0
    %5266 = vmatpush1.msra.mxu0 %v5217
    %5267 = vmatprep.subr.mxu0 0.0
    %5268 = vmatpush1.msra.mxu0 %v5216
    %5269 = vmatprep.subr.mxu0 0.0
    %5270 = vmatpush1.msra.mxu0 %v5215
    %5271 = vmatprep.subr.mxu0 0.0
    %5272 = vmatpush1.msra.mxu0 %v5214
    %5273 = vmatprep.subr.mxu0 0.0
    %5274 = vmatpush2.msra.mxu0 0.0
    %5275 = vmatprep.subr.mxu0 0.0
    %5276 = vmatpush2.msra.mxu0 0.0
    %5277 = vmatprep.subr.mxu0 0.0
    %5278 = vmatpush2.msra.mxu0 0.0
    %5279 = vmatprep.subr.mxu0 0.0
    %5280 = vmatpush2.msra.mxu0 0.0
    %5281 = vmatprep.subr.mxu0 0.0
    %5282 = vmatpush2.msra.mxu0 0.0
    %5283 = vmatprep.subr.mxu0 0.0
    %5284 = vmatpush2.msra.mxu0 0.0
    %5285 = vmatprep.subr.mxu0 0.0
    %5286 = vmatpush2.msra.mxu0 0.0
    %5287 = vmatprep.subr.mxu0 0.0
    %5288 = vmatpush2.msra.mxu0 0.0
    %5289 = vmatprep.subr.mxu0 0.0
    %5290 = vmatpush2.msra.mxu0 0.0
    %5291 = vmatprep.subr.mxu0 0.0
    %5292 = vmatpush2.msra.mxu0 0.0
    %5293 = vmatprep.subr.mxu0 0.0
    %5294 = vmatpush2.msra.mxu0 0.0
    %5295 = vmatprep.subr.mxu0 0.0
    %5296 = vmatpush2.msra.mxu0 0.0
    %5297 = vmatprep.subr.mxu0 0.0
    %5298 = vmatpush2.msra.mxu0 0.0
    %5299 = vmatprep.subr.mxu0 0.0
    %5300 = vmatpush2.msra.mxu0 0.0
    %5301 = vmatprep.subr.mxu0 0.0
    %5302 = vmatpush2.msra.mxu0 0.0
    %5303 = vmatprep.subr.mxu0 0.0
    %5304 = vmatpush2.msra.mxu0 0.0
    %5305 = vmatprep.mubr.f32.mxu0 0.0
    %5306 = vmatmul.mubr.f32.gmra.mxu0 %v5239
    %v5307 = vpop.f32.mrf.mxu0
    %v5308 = vadd.f32 0.0, %v5307
    %v5309 = vpop.f32.mrf.mxu0
    %5310 = vdwg.mxu0
    %v5311 = vadd.f32 %v5212, %v5308
    %s5312 = scalar_lea.vmem %s9, 320
    %v5313 = vld [vmem:[%s5312] sm:$0xff]
    %v5314 = vld [vmem:[%s5312 + $0x8] sm:$0xff]
    %v5315 = vld [vmem:[%s5312 + $0x10] sm:$0xff]
    %v5316 = vld [vmem:[%s5312 + $0x18] sm:$0xff]
    %v5317 = vld [vmem:[%s5312 + $0x20] sm:$0xff]
    %v5318 = vld [vmem:[%s5312 + $0x28] sm:$0xff]
    %v5319 = vld [vmem:[%s5312 + $0x30] sm:$0xff]
    %v5320 = vld [vmem:[%s5312 + $0x38] sm:$0xff]
    %v5321 = vld [vmem:[%s5312 + $0x40] sm:$0xff]
    %v5322 = vld [vmem:[%s5312 + $0x48] sm:$0xff]
    %v5323 = vcombine.low %v4794, %v4834
    %v5325 = vunpack.c.l.s4 1966171168
    %v5326 = vunpack.c.0.s8 %v5325
    %v5327 = vlaneseq
    %v5328 = vshrl.u32 %v5327, 7
    %v5329 = vsub.s32 %v5326, %v5328
    %v5330 = vrot.slane %v5323, %v5329
    %v5332 = vunpack.c.l.s4 1966171168
    %v5333 = vunpack.c.0.s8 %v5332
    %v5334 = vlaneseq
    %v5335 = vshrl.u32 %v5334, 7
    %v5336 = vsub.s32 %v5333, %v5335
    %v5337 = vrot.slane %v5330, %v5336
    %v5338 = vsel %vm4954, %v5337, 0
    %5340 = vmatprep.subr.mxu0 0.0
    %5341 = vmatpush1.msra.mxu0 0.0
    %5342 = vmatprep.subr.mxu0 0.0
    %5343 = vmatpush1.msra.mxu0 0.0
    %5344 = vmatprep.subr.mxu0 0.0
    %5345 = vmatpush1.msra.mxu0 0.0
    %5346 = vmatprep.subr.mxu0 0.0
    %5347 = vmatpush1.msra.mxu0 0.0
    %5348 = vmatprep.subr.mxu0 0.0
    %5349 = vmatpush1.msra.mxu0 0.0
    %5350 = vmatprep.subr.mxu0 0.0
    %5351 = vmatpush1.msra.mxu0 0.0
    %5352 = vmatprep.subr.mxu0 0.0
    %5353 = vmatpush1.msra.mxu0 %v5322
    %5354 = vmatprep.subr.mxu0 0.0
    %5355 = vmatpush1.msra.mxu0 %v5321
    %5356 = vmatprep.subr.mxu0 0.0
    %5357 = vmatpush1.msra.mxu0 %v5320
    %5358 = vmatprep.subr.mxu0 0.0
    %5359 = vmatpush1.msra.mxu0 %v5319
    %5360 = vmatprep.subr.mxu0 0.0
    %5361 = vmatpush1.msra.mxu0 %v5318
    %5362 = vmatprep.subr.mxu0 0.0
    %5363 = vmatpush1.msra.mxu0 %v5317
    %5364 = vmatprep.subr.mxu0 0.0
    %5365 = vmatpush1.msra.mxu0 %v5316
    %5366 = vmatprep.subr.mxu0 0.0
    %5367 = vmatpush1.msra.mxu0 %v5315
    %5368 = vmatprep.subr.mxu0 0.0
    %5369 = vmatpush1.msra.mxu0 %v5314
    %5370 = vmatprep.subr.mxu0 0.0
    %5371 = vmatpush1.msra.mxu0 %v5313
    %5372 = vmatprep.subr.mxu0 0.0
    %5373 = vmatpush2.msra.mxu0 0.0
    %5374 = vmatprep.subr.mxu0 0.0
    %5375 = vmatpush2.msra.mxu0 0.0
    %5376 = vmatprep.subr.mxu0 0.0
    %5377 = vmatpush2.msra.mxu0 0.0
    %5378 = vmatprep.subr.mxu0 0.0
    %5379 = vmatpush2.msra.mxu0 0.0
    %5380 = vmatprep.subr.mxu0 0.0
    %5381 = vmatpush2.msra.mxu0 0.0
    %5382 = vmatprep.subr.mxu0 0.0
    %5383 = vmatpush2.msra.mxu0 0.0
    %5384 = vmatprep.subr.mxu0 0.0
    %5385 = vmatpush2.msra.mxu0 0.0
    %5386 = vmatprep.subr.mxu0 0.0
    %5387 = vmatpush2.msra.mxu0 0.0
    %5388 = vmatprep.subr.mxu0 0.0
    %5389 = vmatpush2.msra.mxu0 0.0
    %5390 = vmatprep.subr.mxu0 0.0
    %5391 = vmatpush2.msra.mxu0 0.0
    %5392 = vmatprep.subr.mxu0 0.0
    %5393 = vmatpush2.msra.mxu0 0.0
    %5394 = vmatprep.subr.mxu0 0.0
    %5395 = vmatpush2.msra.mxu0 0.0
    %5396 = vmatprep.subr.mxu0 0.0
    %5397 = vmatpush2.msra.mxu0 0.0
    %5398 = vmatprep.subr.mxu0 0.0
    %5399 = vmatpush2.msra.mxu0 0.0
    %5400 = vmatprep.subr.mxu0 0.0
    %5401 = vmatpush2.msra.mxu0 0.0
    %5402 = vmatprep.subr.mxu0 0.0
    %5403 = vmatpush2.msra.mxu0 0.0
    %5404 = vmatprep.mubr.f32.mxu0 0.0
    %5405 = vmatmul.mubr.f32.gmra.mxu0 %v5338
    %v5406 = vpop.f32.mrf.mxu0
    %v5407 = vadd.f32 0.0, %v5406
    %v5408 = vpop.f32.mrf.mxu0
    %5409 = vdwg.mxu0
    %v5410 = vadd.f32 %v5311, %v5407
    %v5411 = vld [vmem:[%s10] sm:$0x1]
    %v5413 = vlaneseq
    %v5414 = vshrl.u32 %v5413, 7
    %v5415 = vsub.s32 0, %v5414
    %v5416 = vrot.slane %v5411, %v5415
    %v5418 = vadd.f32 %v5410, %v5416
    %v5419 = vmax.f32 %v5418, 0.0
    %v5420 = vld [vmem:[%s11] sm:$0xff]
    %v5421 = vld [vmem:[%s11 + $0x8] sm:$0xff]
    %v5422 = vld [vmem:[%s11 + $0x10] sm:$0xff]
    %v5423 = vld [vmem:[%s11 + $0x18] sm:$0xff]
    %v5424 = vld [vmem:[%s11 + $0x20] sm:$0xff]
    %v5425 = vld [vmem:[%s11 + $0x28] sm:$0xff]
    %v5426 = vld [vmem:[%s11 + $0x30] sm:$0xff]
    %v5427 = vld [vmem:[%s11 + $0x38] sm:$0xff]
    %v5428 = vld [vmem:[%s11 + $0x40] sm:$0xff]
    %v5429 = vld [vmem:[%s11 + $0x48] sm:$0xff]
    %v5430 = vld [vmem:[%s11 + $0x50] sm:$0xff]
    %v5431 = vld [vmem:[%s11 + $0x58] sm:$0xff]
    %v5432 = vld [vmem:[%s11 + $0x60] sm:$0xff]
    %v5433 = vld [vmem:[%s11 + $0x68] sm:$0xff]
    %v5434 = vld [vmem:[%s11 + $0x70] sm:$0xff]
    %v5435 = vld [vmem:[%s12] sm:$0x1]
    %v5437 = vlaneseq
    %v5438 = vshrl.u32 %v5437, 7
    %v5439 = vsub.s32 0, %v5438
    %v5440 = vrot.slane %v5435, %v5439
    %vm5442 = vcmask 982016
    %v5444 = vsel %vm5442, %v5419, 0
    %5446 = vmatprep.subr.mxu0 0.0
    %5447 = vmatpush1.msra.mxu0 0.0
    %5448 = vmatprep.subr.mxu0 0.0
    %5449 = vmatpush1.msra.mxu0 %v5434
    %5450 = vmatprep.subr.mxu0 0.0
    %5451 = vmatpush1.msra.mxu0 %v5433
    %5452 = vmatprep.subr.mxu0 0.0
    %5453 = vmatpush1.msra.mxu0 %v5432
    %5454 = vmatprep.subr.mxu0 0.0
    %5455 = vmatpush1.msra.mxu0 %v5431
    %5456 = vmatprep.subr.mxu0 0.0
    %5457 = vmatpush1.msra.mxu0 %v5430
    %5458 = vmatprep.subr.mxu0 0.0
    %5459 = vmatpush1.msra.mxu0 %v5429
    %5460 = vmatprep.subr.mxu0 0.0
    %5461 = vmatpush1.msra.mxu0 %v5428
    %5462 = vmatprep.subr.mxu0 0.0
    %5463 = vmatpush1.msra.mxu0 %v5427
    %5464 = vmatprep.subr.mxu0 0.0
    %5465 = vmatpush1.msra.mxu0 %v5426
    %5466 = vmatprep.subr.mxu0 0.0
    %5467 = vmatpush1.msra.mxu0 %v5425
    %5468 = vmatprep.subr.mxu0 0.0
    %5469 = vmatpush1.msra.mxu0 %v5424
    %5470 = vmatprep.subr.mxu0 0.0
    %5471 = vmatpush1.msra.mxu0 %v5423
    %5472 = vmatprep.subr.mxu0 0.0
    %5473 = vmatpush1.msra.mxu0 %v5422
    %5474 = vmatprep.subr.mxu0 0.0
    %5475 = vmatpush1.msra.mxu0 %v5421
    %5476 = vmatprep.subr.mxu0 0.0
    %5477 = vmatpush1.msra.mxu0 %v5420
    %5478 = vmatprep.subr.mxu0 0.0
    %5479 = vmatpush2.msra.mxu0 0.0
    %5480 = vmatprep.subr.mxu0 0.0
    %5481 = vmatpush2.msra.mxu0 0.0
    %5482 = vmatprep.subr.mxu0 0.0
    %5483 = vmatpush2.msra.mxu0 0.0
    %5484 = vmatprep.subr.mxu0 0.0
    %5485 = vmatpush2.msra.mxu0 0.0
    %5486 = vmatprep.subr.mxu0 0.0
    %5487 = vmatpush2.msra.mxu0 0.0
    %5488 = vmatprep.subr.mxu0 0.0
    %5489 = vmatpush2.msra.mxu0 0.0
    %5490 = vmatprep.subr.mxu0 0.0
    %5491 = vmatpush2.msra.mxu0 0.0
    %5492 = vmatprep.subr.mxu0 0.0
    %5493 = vmatpush2.msra.mxu0 0.0
    %5494 = vmatprep.subr.mxu0 0.0
    %5495 = vmatpush2.msra.mxu0 0.0
    %5496 = vmatprep.subr.mxu0 0.0
    %5497 = vmatpush2.msra.mxu0 0.0
    %5498 = vmatprep.subr.mxu0 0.0
    %5499 = vmatpush2.msra.mxu0 0.0
    %5500 = vmatprep.subr.mxu0 0.0
    %5501 = vmatpush2.msra.mxu0 0.0
    %5502 = vmatprep.subr.mxu0 0.0
    %5503 = vmatpush2.msra.mxu0 0.0
    %5504 = vmatprep.subr.mxu0 0.0
    %5505 = vmatpush2.msra.mxu0 0.0
    %5506 = vmatprep.subr.mxu0 0.0
    %5507 = vmatpush2.msra.mxu0 0.0
    %5508 = vmatprep.subr.mxu0 0.0
    %5509 = vmatpush2.msra.mxu0 0.0
    %5510 = vmatprep.mubr.f32.mxu0 0.0
    %5511 = vmatmul.mubr.f32.gmra.mxu0 %v5444
    %v5512 = vpop.f32.mrf.mxu0
    %v5513 = vadd.f32 %v5440, %v5512
    %v5514 = vpop.f32.mrf.mxu0
    %5515 = vdwg.mxu0
    %v5516 = vmax.f32 %v5513, 0.0
    %v5517 = vld [vmem:[%s13] sm:$0xff]
    %v5518 = vld [vmem:[%s13 + $0x8] sm:$0xff]
    %v5519 = vld [vmem:[%s13 + $0x10] sm:$0xff]
    %v5520 = vld [vmem:[%s13 + $0x18] sm:$0xff]
    %v5521 = vld [vmem:[%s13 + $0x20] sm:$0xff]
    %v5522 = vld [vmem:[%s13 + $0x28] sm:$0xff]
    %v5523 = vld [vmem:[%s13 + $0x30] sm:$0xff]
    %v5524 = vld [vmem:[%s13 + $0x38] sm:$0xff]
    %v5525 = vld [vmem:[%s13 + $0x40] sm:$0xff]
    %v5526 = vld [vmem:[%s13 + $0x48] sm:$0xff]
    %v5527 = vld [vmem:[%s13 + $0x50] sm:$0xf]
    %v5528 = vld [vmem:[%s14] sm:$0x1]
    %v5530 = vlaneseq
    %v5531 = vshrl.u32 %v5530, 7
    %v5532 = vsub.s32 0, %v5531
    %v5533 = vrot.slane %v5528, %v5532
    %v5536 = vsel %vm2936, %v5516, 0
    %v5539 = vsel %vm3070, %v5527, 0
    %5541 = vmatprep.subr.mxu0 0.0
    %5542 = vmatpush1.msra.mxu0 0.0
    %5543 = vmatprep.subr.mxu0 0.0
    %5544 = vmatpush1.msra.mxu0 0.0
    %5545 = vmatprep.subr.mxu0 0.0
    %5546 = vmatpush1.msra.mxu0 0.0
    %5547 = vmatprep.subr.mxu0 0.0
    %5548 = vmatpush1.msra.mxu0 0.0
    %5549 = vmatprep.subr.mxu0 0.0
    %5550 = vmatpush1.msra.mxu0 0.0
    %5551 = vmatprep.subr.mxu0 0.0
    %5552 = vmatpush1.msra.mxu0 %v5539
    %5553 = vmatprep.subr.mxu0 0.0
    %5554 = vmatpush1.msra.mxu0 %v5526
    %5555 = vmatprep.subr.mxu0 0.0
    %5556 = vmatpush1.msra.mxu0 %v5525
    %5557 = vmatprep.subr.mxu0 0.0
    %5558 = vmatpush1.msra.mxu0 %v5524
    %5559 = vmatprep.subr.mxu0 0.0
    %5560 = vmatpush1.msra.mxu0 %v5523
    %5561 = vmatprep.subr.mxu0 0.0
    %5562 = vmatpush1.msra.mxu0 %v5522
    %5563 = vmatprep.subr.mxu0 0.0
    %5564 = vmatpush1.msra.mxu0 %v5521
    %5565 = vmatprep.subr.mxu0 0.0
    %5566 = vmatpush1.msra.mxu0 %v5520
    %5567 = vmatprep.subr.mxu0 0.0
    %5568 = vmatpush1.msra.mxu0 %v5519
    %5569 = vmatprep.subr.mxu0 0.0
    %5570 = vmatpush1.msra.mxu0 %v5518
    %5571 = vmatprep.subr.mxu0 0.0
    %5572 = vmatpush1.msra.mxu0 %v5517
    %5573 = vmatprep.subr.mxu0 0.0
    %5574 = vmatpush2.msra.mxu0 0.0
    %5575 = vmatprep.subr.mxu0 0.0
    %5576 = vmatpush2.msra.mxu0 0.0
    %5577 = vmatprep.subr.mxu0 0.0
    %5578 = vmatpush2.msra.mxu0 0.0
    %5579 = vmatprep.subr.mxu0 0.0
    %5580 = vmatpush2.msra.mxu0 0.0
    %5581 = vmatprep.subr.mxu0 0.0
    %5582 = vmatpush2.msra.mxu0 0.0
    %5583 = vmatprep.subr.mxu0 0.0
    %5584 = vmatpush2.msra.mxu0 0.0
    %5585 = vmatprep.subr.mxu0 0.0
    %5586 = vmatpush2.msra.mxu0 0.0
    %5587 = vmatprep.subr.mxu0 0.0
    %5588 = vmatpush2.msra.mxu0 0.0
    %5589 = vmatprep.subr.mxu0 0.0
    %5590 = vmatpush2.msra.mxu0 0.0
    %5591 = vmatprep.subr.mxu0 0.0
    %5592 = vmatpush2.msra.mxu0 0.0
    %5593 = vmatprep.subr.mxu0 0.0
    %5594 = vmatpush2.msra.mxu0 0.0
    %5595 = vmatprep.subr.mxu0 0.0
    %5596 = vmatpush2.msra.mxu0 0.0
    %5597 = vmatprep.subr.mxu0 0.0
    %5598 = vmatpush2.msra.mxu0 0.0
    %5599 = vmatprep.subr.mxu0 0.0
    %5600 = vmatpush2.msra.mxu0 0.0
    %5601 = vmatprep.subr.mxu0 0.0
    %5602 = vmatpush2.msra.mxu0 0.0
    %5603 = vmatprep.subr.mxu0 0.0
    %5604 = vmatpush2.msra.mxu0 0.0
    %5605 = vmatprep.mubr.f32.mxu0 0.0
    %5606 = vmatmul.mubr.f32.gmra.mxu0 %v5536
    %v5607 = vpop.f32.mrf.mxu0
    %v5608 = vadd.f32 %v5533, %v5607
    %v5609 = vpop.f32.mrf.mxu0
    %5610 = vdwg.mxu0
    %vm5611 = vcmask 74752
    %5612 = vst.msk [vmem:[#allocation2] sm:$0x3] %vm5611, %v5608
    // Predicated region
    $region62: #{lenet5_forward.1} parent=1 // pred_check
      _
    $region63: #{lenet5_forward.1} parent=1 // pred_check_branch
      %5614 = sbr.rel (0) target = $region65
    $region64: #{lenet5_forward.1} parent=1 // pred_region
      _
    $region65: #{lenet5_forward.1} parent=1 // pred_fallthru
      _
    // Predicated region
    $region66: #{lenet5_forward.1} parent=1 // pred_check
      _
    $region67: #{lenet5_forward.1} parent=1 // pred_check_branch
      %5616 = sbr.rel (0) target = $region69
    $region68: #{lenet5_forward.1} parent=1 // pred_region
      _
    $region69: #{lenet5_forward.1} parent=1 // pred_fallthru
      _
    // Predicated region
    $region70: #{lenet5_forward.1} parent=1 // pred_check
      _
    $region71: #{lenet5_forward.1} parent=1 // pred_check_branch
      %5618 = sbr.rel (0) target = $region73
    $region72: #{lenet5_forward.1} parent=1 // pred_region
      %s5620 = ssub.s32 32, 32
      %5621 = vsyncadd [#allocation3], %s5620
      %s5623 = sshll.u32 [#allocation2], 4
      %s5624 = int_to_ptr.vmem [resolvable:$true] %s5623
      %5626 = dma.vmem_to_hbm [thread:$0]  %s5624, 32, %s17, [#allocation3]
    $region73: #{lenet5_forward.1} parent=1 // pred_fallthru
      _
    // Predicated region
    $region74: #{lenet5_forward.1} parent=1 // pred_check
      _
    $region75: #{lenet5_forward.1} parent=1 // pred_check_branch
      %5628 = sbr.rel (0) target = $region77
    $region76: #{lenet5_forward.1} parent=1 // pred_region
      _
    $region77: #{lenet5_forward.1} parent=1 // pred_fallthru
      _
    // Predicated region
    $region78: #{lenet5_forward.1} parent=1 // pred_check
      _
    $region79: #{lenet5_forward.1} parent=1 // pred_check_branch
      %5630 = sbr.rel (0) target = $region81
    $region80: #{lenet5_forward.1} parent=1 // pred_region
      _
    $region81: #{lenet5_forward.1} parent=1 // pred_fallthru
      _
    // Predicated region
    $region82: #{lenet5_forward.1} parent=1 // pred_check
      _
    $region83: #{lenet5_forward.1} parent=1 // pred_check_branch
      %5632 = sbr.rel (0) target = $region85
    $region84: #{lenet5_forward.1} parent=1 // pred_region
      %5633 = dma.done [#allocation3], 32
    $region85: #{lenet5_forward.1} parent=1 // pred_fallthru
      _
    %5634 = vsyncpa [#allocation3], 1

</llo_original>
